<compile_context>
chip_gen: v7x
topology: tpu7x:2x2x1
jax: 0.10.0
libtpu: 0.0.40
codegen_flags: <defaults>
</compile_context>

<pallas_src>
from functools import partial

import numpy as np

import jax
import jax.numpy as jnp
from jax import lax
from jax.experimental import pallas as pl
from jax.experimental.pallas import tpu as pltpu


# ----------------------------------------------------------------------------
# Packed-bias layout (all slice starts are 128-lane aligned)
# ----------------------------------------------------------------------------
_BIAS_FIELDS = ("b1", "b2", "bfc", "bproj", "bs1", "bs2")


def _bias_layout(n1, n2, nfc, nproj, ns1, ns2):
    sizes = dict(zip(_BIAS_FIELDS, (n1, n2, nfc, nproj, ns1, ns2)))
    layout, cur = {}, 0
    for name in _BIAS_FIELDS:
        n = sizes[name]
        layout[name] = (cur, n)
        cur += ((n + 127) // 128) * 128  # keep every slice start lane-aligned
    return layout, cur


# ----------------------------------------------------------------------------
# Fused Pallas kernel: conv1 -> conv2 -> FC, scalar (mean+MLP), split-proj
# ----------------------------------------------------------------------------
def _encoder_kernel(layout, img_feat, n_img_embed, n_scal_embed,
                    obs_ref, m1_ref, m2_ref, fc_ref,
                    sf_ref, sw2_ref, wproj_ref, bias_ref, out_ref):
    f32 = jnp.float32
    bf16 = jnp.bfloat16

    def bias(name):
        off, n = layout[name]
        return bias_ref[:, off:off + n]            # (1, n) f32, lane-aligned

    x = obs_ref[...]                               # (TB, 6*H*W) f32, one stream
    img = x[:, :img_feat].astype(bf16)             # NCHW-flattened image part
    scal = x[:, img_feat:].astype(bf16)            # NCHW-flattened scalar part

    # ---- image branch: dense-Toeplitz conv1/conv2 + FC (lane-dense matmuls) --
    h1 = jnp.dot(img, m1_ref[...], preferred_element_type=f32) + bias("b1")
    h1 = jnp.maximum(h1, 0.0)                                      # conv1 + ReLU
    h2 = jnp.dot(h1.astype(bf16), m2_ref[...],
                 preferred_element_type=f32) + bias("b2")
    h2 = jnp.maximum(h2, 0.0)                                      # conv2 + ReLU
    img_embed = jnp.dot(h2.astype(bf16), fc_ref[...],
                        preferred_element_type=f32) + bias("bfc")
    img_embed = jnp.maximum(img_embed, 0.0)                        # (TB, 256)

    # ---- scalar branch: (spatial mean folded into sf) -> 32 -> ReLU -> 64 ----
    hs = jnp.dot(scal, sf_ref[...], preferred_element_type=f32) + bias("bs1")
    hs = jnp.maximum(hs, 0.0)                                      # (TB, 32)
    se = jnp.dot(hs.astype(bf16), sw2_ref[...],
                 preferred_element_type=f32) + bias("bs2")
    se = jnp.maximum(se, 0.0)                                      # (TB, 64)

    # ---- relu(concat([img_embed, se], 1) @ Wp + bp) == split matmul ---------
    out = (jnp.dot(img_embed.astype(bf16), wproj_ref[0:n_img_embed, :],
                   preferred_element_type=f32)
           + jnp.dot(se.astype(bf16),
                     wproj_ref[n_img_embed:n_img_embed + n_scal_embed, :],
                     preferred_element_type=f32)
           + bias("bproj"))
    out_ref[...] = jnp.maximum(out, 0.0).astype(out_ref.dtype)


# ----------------------------------------------------------------------------
# Wrapper: free reshape of obs + one pallas_call over a batch grid
# ----------------------------------------------------------------------------
def combined_encoder(packed, obs, *, block_b=None, out_dtype=jnp.float32):
    """obs: (B, 6, H, W) float32 -> (B, base_dim) out_dtype."""
    B, C, H, W = obs.shape
    assert C == 6
    img_feat = packed["m1"].shape[0]
    assert img_feat == 3 * H * W, "packed params were built for a different H, W"
    assert packed["sfold"].shape[0] == 3 * H * W

    # Single input stream: NCHW obs flattened (a free view, no XLA prep pass).
    obs_flat = obs.reshape(B, 6 * H * W)

    # Batch tiling: big tiles (MXU M-utilization, fewer per-step overheads),
    # but prefer >=2 grid steps so both v7x TensorCores get work.
    if block_b is None:
        block_b = int(min(512, pl.next_power_of_2(max(B, 16))))
        if B > 16 and pl.cdiv(B, block_b) < 2:
            block_b = max(16, block_b // 2)
    grid_b = pl.cdiv(B, block_b)
    Bp = grid_b * block_b
    if Bp != B:
        obs_flat = jnp.pad(obs_flat, ((0, Bp - B), (0, 0)))

    n1 = packed["m1"].shape[1]
    n2 = packed["m2"].shape[1]
    nfc = packed["fc_w"].shape[1]
    nproj = packed["w_proj"].shape[1]
    ns1 = packed["sfold"].shape[1]
    ns2 = packed["sc_w2"].shape[1]
    layout, width = _bias_layout(n1, n2, nfc, nproj, ns1, ns2)
    assert packed["bias"].shape == (1, width)

    kernel = partial(_encoder_kernel, layout, img_feat, nfc, ns2)

    def full_spec(arr):
        # Constant index_map -> fetched once, revisited from VMEM.
        return pl.BlockSpec(arr.shape, lambda i: (0, 0))

    out = pl.pallas_call(
        kernel,
        out_shape=jax.ShapeDtypeStruct((Bp, nproj), out_dtype),
        grid=(grid_b,),
        in_specs=[
            pl.BlockSpec((block_b, 6 * H * W), lambda i: (i, 0)),
            full_spec(packed["m1"]),
            full_spec(packed["m2"]),
            full_spec(packed["fc_w"]),
            full_spec(packed["sfold"]),
            full_spec(packed["sc_w2"]),
            full_spec(packed["w_proj"]),
            full_spec(packed["bias"]),
        ],
        out_specs=pl.BlockSpec((block_b, nproj), lambda i: (i, 0)),
        compiler_params=pltpu.CompilerParams(
            dimension_semantics=("parallel",),
            vmem_limit_bytes=48 * 1024 * 1024),
    )(obs_flat, packed["m1"], packed["m2"], packed["fc_w"],
      packed["sfold"], packed["sc_w2"], packed["w_proj"], packed["bias"])
    return out[:B]


# ----------------------------------------------------------------------------
# Parameters (standard conv/linear layout) and exact dense-operator packing
# ----------------------------------------------------------------------------
def init_params(key, H=16, W=16, base_dim=256, scalar_out_dim=64):
    ks = jax.random.split(key, 12)

    def dense(k, shape, scale=0.05):
        return (scale * jax.random.normal(k, shape)).astype(jnp.float32)

    Ho2, Wo2 = H // 4, W // 4          # after two stride-2 convs (k3, pad 1)
    flat = Ho2 * Wo2 * 32
    return {
        "conv1_w": dense(ks[0], (3, 3, 3, 16)),       # HWIO
        "conv1_b": dense(ks[1], (16,)),
        "conv2_w": dense(ks[2], (3, 3, 16, 32)),      # HWIO
        "conv2_b": dense(ks[3], (32,)),
        "fc_w":    dense(ks[4], (flat, 256)),         # NHWC-flatten row order
        "fc_b":    dense(ks[5], (256,)),
        "sc_w1":   dense(ks[6], (3, 32)),
        "sc_b1":   dense(ks[7], (32,)),
        "sc_w2":   dense(ks[8], (32, scalar_out_dim)),
        "sc_b2":   dense(ks[9], (scalar_out_dim,)),
        "proj_w":  dense(ks[10], (256 + scalar_out_dim, base_dim)),
        "proj_b":  dense(ks[11], (base_dim,)),
    }


def _conv_to_dense_np(w_hwio, H, W, stride=2, pad=1, input_order="nhwc"):
    """Exact dense (block-Toeplitz) matrix of a 2-D cross-correlation.

    Row order is the flatten order of the input ("nchw": cin*H*W + i*W + j,
    "nhwc": (i*W + j)*Cin + cin); column order is the NHWC flatten of the
    output ((oi*Wo + oj)*Cout + cout)."""
    KH, KW, CIN, COUT = w_hwio.shape
    Ho = (H + 2 * pad - KH) // stride + 1
    Wo = (W + 2 * pad - KW) // stride + 1
    M = np.zeros((H * W * CIN, Ho * Wo * COUT), np.float32)
    for oi in range(Ho):
        for oj in range(Wo):
            c0 = (oi * Wo + oj) * COUT
            for kh in range(KH):
                for kw in range(KW):
                    i = oi * stride + kh - pad
                    j = oj * stride + kw - pad
                    if 0 <= i < H and 0 <= j < W:
                        if input_order == "nhwc":
                            r0 = (i * W + j) * CIN
                            M[r0:r0 + CIN, c0:c0 + COUT] = w_hwio[kh, kw]
                        else:  # "nchw"
                            for cin in range(CIN):
                                r = cin * H * W + i * W + j
                                M[r, c0:c0 + COUT] = w_hwio[kh, kw, cin]
    return M, Ho, Wo


def pack_params(params, H=16, W=16):
    """Build the kernel-side operands (bf16 weights, packed f32 biases)."""
    # conv1 consumes the raw NCHW-flattened image channels (permutation folded
    # into the matrix); conv2 consumes conv1's NHWC-flattened output.
    m1, Ho1, Wo1 = _conv_to_dense_np(np.asarray(params["conv1_w"]), H, W,
                                     input_order="nchw")
    m2, Ho2, Wo2 = _conv_to_dense_np(np.asarray(params["conv2_w"]), Ho1, Wo1,
                                     input_order="nhwc")
    n1 = Ho1 * Wo1 * params["conv1_w"].shape[3]
    n2 = Ho2 * Wo2 * params["conv2_w"].shape[3]
    assert params["fc_w"].shape[0] == n2
    nfc = params["fc_b"].shape[0]
    nproj = params["proj_b"].shape[0]
    ns1 = params["sc_b1"].shape[0]
    ns2 = params["sc_b2"].shape[0]

    # Fold the spatial mean into the first scalar layer:
    # mean(obs[:,3:]) @ sc_w1 == obs[:,3:].reshape(B,3*H*W) @ sfold,
    # sfold[cin*H*W + p, :] = sc_w1[cin, :] / (H*W)   (power-of-two scale).
    sc_w1 = np.asarray(params["sc_w1"], np.float32)
    sfold = np.zeros((3 * H * W, ns1), np.float32)
    for cin in range(3):
        sfold[cin * H * W:(cin + 1) * H * W, :] = sc_w1[cin][None, :] / (H * W)

    layout, width = _bias_layout(n1, n2, nfc, nproj, ns1, ns2)
    bias = np.zeros((1, width), np.float32)

    def put(name, vec):
        off, n = layout[name]
        bias[0, off:off + n] = np.asarray(vec, np.float32)

    put("b1", np.tile(np.asarray(params["conv1_b"]), Ho1 * Wo1))
    put("b2", np.tile(np.asarray(params["conv2_b"]), Ho2 * Wo2))
    put("bfc", params["fc_b"])
    put("bproj", params["proj_b"])
    put("bs1", params["sc_b1"])
    put("bs2", params["sc_b2"])

    bf16 = jnp.bfloat16
    return {
        "m1": jnp.asarray(m1, bf16),
        "m2": jnp.asarray(m2, bf16),
        "fc_w": params["fc_w"].astype(bf16),
        "sfold": jnp.asarray(sfold, bf16),
        "sc_w2": params["sc_w2"].astype(bf16),
        "w_proj": params["proj_w"].astype(bf16),
        "bias": jnp.asarray(bias),
    }


# ----------------------------------------------------------------------------
# Pure-JAX f32 reference (matches the PyTorch module's semantics)
# ----------------------------------------------------------------------------
def reference_forward(params, obs):
    dn = ("NHWC", "HWIO", "NHWC")
    B = obs.shape[0]

    img = jnp.transpose(obs[:, :3], (0, 2, 3, 1))                   # NHWC f32
    c1 = lax.conv_general_dilated(img, params["conv1_w"], (2, 2),
                                  ((1, 1), (1, 1)), dimension_numbers=dn)
    c1 = jnp.maximum(c1 + params["conv1_b"], 0.0)
    c2 = lax.conv_general_dilated(c1, params["conv2_w"], (2, 2),
                                  ((1, 1), (1, 1)), dimension_numbers=dn)
    c2 = jnp.maximum(c2 + params["conv2_b"], 0.0)
    flat = c2.reshape(B, -1)
    img_embed = jnp.maximum(flat @ params["fc_w"] + params["fc_b"], 0.0)

    svec = jnp.mean(obs[:, 3:], axis=(2, 3))                        # (B, 3)
    hs = jnp.maximum(svec @ params["sc_w1"] + params["sc_b1"], 0.0)
    se = jnp.maximum(hs @ params["sc_w2"] + params["sc_b2"], 0.0)

    comb = jnp.concatenate([img_embed, se], axis=1)
    return jnp.maximum(comb @ params["proj_w"] + params["proj_b"], 0.0)


# ----------------------------------------------------------------------------
if __name__ == "__main__":
    key = jax.random.PRNGKey(0)
    obs = jax.random.normal(key, (2, 6, 16, 16), dtype=jnp.float32)

    params = init_params(jax.random.PRNGKey(42), H=16, W=16)
    packed = pack_params(params, H=16, W=16)

    fwd = jax.jit(combined_encoder)
    out = jax.block_until_ready(fwd(packed, obs))
    ref = jax.block_until_ready(jax.jit(reference_forward)(params, obs))

    assert out.shape == (2, 256), out.shape
    assert out.dtype == jnp.float32
    assert bool(jnp.all(jnp.isfinite(out)))
    assert bool(jnp.all(out >= 0.0))            # final ReLU
    err = float(jnp.max(jnp.abs(out - ref.astype(jnp.float32))))
    assert err < 2e-2, f"mismatch vs f32 reference: {err}"
    print("KERNEL_OK")
</pallas_src>

<mosaic_0001>
module attributes {stable_mosaic.version = 11 : i64} {
  func.func @_encoder_kernel(%arg0: i32, %arg1: memref<16x1536xf32, #tpu.memory_space<vmem>>, %arg2: memref<768x1024xbf16, #tpu.memory_space<vmem>>, %arg3: memref<1024x512xbf16, #tpu.memory_space<vmem>>, %arg4: memref<512x256xbf16, #tpu.memory_space<vmem>>, %arg5: memref<768x32xbf16, #tpu.memory_space<vmem>>, %arg6: memref<32x64xbf16, #tpu.memory_space<vmem>>, %arg7: memref<320x256xbf16, #tpu.memory_space<vmem>>, %arg8: memref<1x2304xf32, #tpu.memory_space<vmem>>, %arg9: memref<16x256xf32, #tpu.memory_space<vmem>>) attributes {dimension_semantics = [#tpu.dimension_semantics<parallel>], iteration_bounds = array<i64: 1>, scalar_prefetch = 0 : i64, scratch_operands = 0 : i64, tpu.core_type = #tpu.core_type<tc>, window_params = [{transform_indices = @transform_0, window_bounds = array<i64: 16, 1536>}, {pipeline_mode = #tpu.pipeline_mode<synchronous>, transform_indices = @transform_1, window_bounds = array<i64: 768, 1024>}, {pipeline_mode = #tpu.pipeline_mode<synchronous>, transform_indices = @transform_2, window_bounds = array<i64: 1024, 512>}, {pipeline_mode = #tpu.pipeline_mode<synchronous>, transform_indices = @transform_3, window_bounds = array<i64: 512, 256>}, {pipeline_mode = #tpu.pipeline_mode<synchronous>, transform_indices = @transform_4, window_bounds = array<i64: 768, 32>}, {pipeline_mode = #tpu.pipeline_mode<synchronous>, transform_indices = @transform_5, window_bounds = array<i64: 32, 64>}, {pipeline_mode = #tpu.pipeline_mode<synchronous>, transform_indices = @transform_6, window_bounds = array<i64: 320, 256>}, {pipeline_mode = #tpu.pipeline_mode<synchronous>, transform_indices = @transform_7, window_bounds = array<i64: 1, 2304>}, {transform_indices = @transform_8, window_bounds = array<i64: 16, 256>}]} {
    %c0 = arith.constant 0 : index
    %c0_0 = arith.constant 0 : index
    %0 = vector.load %arg1[%c0, %c0_0] : memref<16x1536xf32, #tpu.memory_space<vmem>>, vector<16x1536xf32>
    %1 = vector.extract_strided_slice %0 {offsets = [0, 0], sizes = [16, 768], strides = [1, 1]} : vector<16x1536xf32> to vector<16x768xf32>
    %2 = arith.truncf %1 : vector<16x768xf32> to vector<16x768xbf16>
    %3 = vector.extract_strided_slice %0 {offsets = [0, 768], sizes = [16, 768], strides = [1, 1]} : vector<16x1536xf32> to vector<16x768xf32>
    %4 = arith.truncf %3 : vector<16x768xf32> to vector<16x768xbf16>
    %c0_1 = arith.constant 0 : index
    %c0_2 = arith.constant 0 : index
    %5 = vector.load %arg2[%c0_1, %c0_2] : memref<768x1024xbf16, #tpu.memory_space<vmem>>, vector<768x1024xbf16>
    %cst = arith.constant dense<0.000000e+00> : vector<16x1024xf32>
    %6 = tpu.matmul %2, %5, %cst {dimension_numbers = #tpu.dot_dimension_numbers<[1], [0], [0], [1], [0, 0, 1, 1], [], []>} : vector<16x768xbf16>, vector<768x1024xbf16>, vector<16x1024xf32> -> vector<16x1024xf32>
    %c0_3 = arith.constant 0 : index
    %c0_4 = arith.constant 0 : index
    %7 = vector.load %arg8[%c0_3, %c0_4] : memref<1x2304xf32, #tpu.memory_space<vmem>>, vector<1x1024xf32>
    %8 = vector.broadcast %7 : vector<1x1024xf32> to vector<16x1024xf32>
    %9 = arith.addf %6, %8 : vector<16x1024xf32>
    %cst_5 = arith.constant 0.000000e+00 : f32
    %10 = vector.broadcast %cst_5 : f32 to vector<16x1024xf32>
    %11 = arith.maximumf %9, %10 : vector<16x1024xf32>
    %12 = arith.truncf %11 : vector<16x1024xf32> to vector<16x1024xbf16>
    %c0_6 = arith.constant 0 : index
    %c0_7 = arith.constant 0 : index
    %13 = vector.load %arg3[%c0_6, %c0_7] : memref<1024x512xbf16, #tpu.memory_space<vmem>>, vector<1024x512xbf16>
    %cst_8 = arith.constant dense<0.000000e+00> : vector<16x512xf32>
    %14 = tpu.matmul %12, %13, %cst_8 {dimension_numbers = #tpu.dot_dimension_numbers<[1], [0], [0], [1], [0, 0, 1, 1], [], []>} : vector<16x1024xbf16>, vector<1024x512xbf16>, vector<16x512xf32> -> vector<16x512xf32>
    %c0_9 = arith.constant 0 : index
    %c1024 = arith.constant 1024 : index
    %15 = vector.load %arg8[%c0_9, %c1024] : memref<1x2304xf32, #tpu.memory_space<vmem>>, vector<1x512xf32>
    %16 = vector.broadcast %15 : vector<1x512xf32> to vector<16x512xf32>
    %17 = arith.addf %14, %16 : vector<16x512xf32>
    %cst_10 = arith.constant 0.000000e+00 : f32
    %18 = vector.broadcast %cst_10 : f32 to vector<16x512xf32>
    %19 = arith.maximumf %17, %18 : vector<16x512xf32>
    %20 = arith.truncf %19 : vector<16x512xf32> to vector<16x512xbf16>
    %c0_11 = arith.constant 0 : index
    %c0_12 = arith.constant 0 : index
    %21 = vector.load %arg4[%c0_11, %c0_12] : memref<512x256xbf16, #tpu.memory_space<vmem>>, vector<512x256xbf16>
    %cst_13 = arith.constant dense<0.000000e+00> : vector<16x256xf32>
    %22 = tpu.matmul %20, %21, %cst_13 {dimension_numbers = #tpu.dot_dimension_numbers<[1], [0], [0], [1], [0, 0, 1, 1], [], []>} : vector<16x512xbf16>, vector<512x256xbf16>, vector<16x256xf32> -> vector<16x256xf32>
    %c0_14 = arith.constant 0 : index
    %c1536 = arith.constant 1536 : index
    %23 = vector.load %arg8[%c0_14, %c1536] : memref<1x2304xf32, #tpu.memory_space<vmem>>, vector<1x256xf32>
    %24 = vector.broadcast %23 : vector<1x256xf32> to vector<16x256xf32>
    %25 = arith.addf %22, %24 : vector<16x256xf32>
    %cst_15 = arith.constant 0.000000e+00 : f32
    %26 = vector.broadcast %cst_15 : f32 to vector<16x256xf32>
    %27 = arith.maximumf %25, %26 : vector<16x256xf32>
    %c0_16 = arith.constant 0 : index
    %c0_17 = arith.constant 0 : index
    %28 = vector.load %arg5[%c0_16, %c0_17] : memref<768x32xbf16, #tpu.memory_space<vmem>>, vector<768x32xbf16>
    %cst_18 = arith.constant dense<0.000000e+00> : vector<16x32xf32>
    %29 = tpu.matmul %4, %28, %cst_18 {dimension_numbers = #tpu.dot_dimension_numbers<[1], [0], [0], [1], [0, 0, 1, 1], [], []>} : vector<16x768xbf16>, vector<768x32xbf16>, vector<16x32xf32> -> vector<16x32xf32>
    %c0_19 = arith.constant 0 : index
    %c2048 = arith.constant 2048 : index
    %30 = vector.load %arg8[%c0_19, %c2048] : memref<1x2304xf32, #tpu.memory_space<vmem>>, vector<1x32xf32>
    %31 = vector.broadcast %30 : vector<1x32xf32> to vector<16x32xf32>
    %32 = arith.addf %29, %31 : vector<16x32xf32>
    %cst_20 = arith.constant 0.000000e+00 : f32
    %33 = vector.broadcast %cst_20 : f32 to vector<16x32xf32>
    %34 = arith.maximumf %32, %33 : vector<16x32xf32>
    %35 = arith.truncf %34 : vector<16x32xf32> to vector<16x32xbf16>
    %c0_21 = arith.constant 0 : index
    %c0_22 = arith.constant 0 : index
    %36 = vector.load %arg6[%c0_21, %c0_22] : memref<32x64xbf16, #tpu.memory_space<vmem>>, vector<32x64xbf16>
    %cst_23 = arith.constant dense<0.000000e+00> : vector<16x64xf32>
    %37 = tpu.matmul %35, %36, %cst_23 {dimension_numbers = #tpu.dot_dimension_numbers<[1], [0], [0], [1], [0, 0, 1, 1], [], []>} : vector<16x32xbf16>, vector<32x64xbf16>, vector<16x64xf32> -> vector<16x64xf32>
    %c0_24 = arith.constant 0 : index
    %c2176 = arith.constant 2176 : index
    %38 = vector.load %arg8[%c0_24, %c2176] : memref<1x2304xf32, #tpu.memory_space<vmem>>, vector<1x64xf32>
    %39 = vector.broadcast %38 : vector<1x64xf32> to vector<16x64xf32>
    %40 = arith.addf %37, %39 : vector<16x64xf32>
    %cst_25 = arith.constant 0.000000e+00 : f32
    %41 = vector.broadcast %cst_25 : f32 to vector<16x64xf32>
    %42 = arith.maximumf %40, %41 : vector<16x64xf32>
    %43 = arith.truncf %27 : vector<16x256xf32> to vector<16x256xbf16>
    %c0_26 = arith.constant 0 : index
    %c0_27 = arith.constant 0 : index
    %44 = vector.load %arg7[%c0_26, %c0_27] : memref<320x256xbf16, #tpu.memory_space<vmem>>, vector<256x256xbf16>
    %cst_28 = arith.constant dense<0.000000e+00> : vector<16x256xf32>
    %45 = tpu.matmul %43, %44, %cst_28 {dimension_numbers = #tpu.dot_dimension_numbers<[1], [0], [0], [1], [0, 0, 1, 1], [], []>} : vector<16x256xbf16>, vector<256x256xbf16>, vector<16x256xf32> -> vector<16x256xf32>
    %46 = arith.truncf %42 : vector<16x64xf32> to vector<16x64xbf16>
    %c256 = arith.constant 256 : index
    %c0_29 = arith.constant 0 : index
    %47 = vector.load %arg7[%c256, %c0_29] : memref<320x256xbf16, #tpu.memory_space<vmem>>, vector<64x256xbf16>
    %cst_30 = arith.constant dense<0.000000e+00> : vector<16x256xf32>
    %48 = tpu.matmul %46, %47, %cst_30 {dimension_numbers = #tpu.dot_dimension_numbers<[1], [0], [0], [1], [0, 0, 1, 1], [], []>} : vector<16x64xbf16>, vector<64x256xbf16>, vector<16x256xf32> -> vector<16x256xf32>
    %49 = arith.addf %45, %48 : vector<16x256xf32>
    %c0_31 = arith.constant 0 : index
    %c1792 = arith.constant 1792 : index
    %50 = vector.load %arg8[%c0_31, %c1792] : memref<1x2304xf32, #tpu.memory_space<vmem>>, vector<1x256xf32>
    %51 = vector.broadcast %50 : vector<1x256xf32> to vector<16x256xf32>
    %52 = arith.addf %49, %51 : vector<16x256xf32>
    %cst_32 = arith.constant 0.000000e+00 : f32
    %53 = vector.broadcast %cst_32 : f32 to vector<16x256xf32>
    %54 = arith.maximumf %52, %53 : vector<16x256xf32>
    %c0_33 = arith.constant 0 : index
    %c0_34 = arith.constant 0 : index
    %55 = vector.load %arg9[%c0_33, %c0_34] : memref<16x256xf32, #tpu.memory_space<vmem>>, vector<16x256xf32>
    tpu.vector_store %arg9[%c0_33, %c0_34], %54 {strides = array<i32>} : memref<16x256xf32, #tpu.memory_space<vmem>>, vector<16x256xf32>,
    return
  }
  func.func @transform_0(%arg0: i32) -> (i32, i32) {
    %c0_i32 = arith.constant 0 : i32
    %c0_i32_0 = arith.constant 0 : i32
    return %arg0, %c0_i32 : i32, i32
  }
  func.func @transform_1(%arg0: i32) -> (i32, i32) {
    %c0_i32 = arith.constant 0 : i32
    %c0_i32_0 = arith.constant 0 : i32
    %c0_i32_1 = arith.constant 0 : i32
    return %c0_i32, %c0_i32_0 : i32, i32
  }
  func.func @transform_2(%arg0: i32) -> (i32, i32) {
    %c0_i32 = arith.constant 0 : i32
    %c0_i32_0 = arith.constant 0 : i32
    %c0_i32_1 = arith.constant 0 : i32
    return %c0_i32, %c0_i32_0 : i32, i32
  }
  func.func @transform_3(%arg0: i32) -> (i32, i32) {
    %c0_i32 = arith.constant 0 : i32
    %c0_i32_0 = arith.constant 0 : i32
    %c0_i32_1 = arith.constant 0 : i32
    return %c0_i32, %c0_i32_0 : i32, i32
  }
  func.func @transform_4(%arg0: i32) -> (i32, i32) {
    %c0_i32 = arith.constant 0 : i32
    %c0_i32_0 = arith.constant 0 : i32
    %c0_i32_1 = arith.constant 0 : i32
    return %c0_i32, %c0_i32_0 : i32, i32
  }
  func.func @transform_5(%arg0: i32) -> (i32, i32) {
    %c0_i32 = arith.constant 0 : i32
    %c0_i32_0 = arith.constant 0 : i32
    %c0_i32_1 = arith.constant 0 : i32
    return %c0_i32, %c0_i32_0 : i32, i32
  }
  func.func @transform_6(%arg0: i32) -> (i32, i32) {
    %c0_i32 = arith.constant 0 : i32
    %c0_i32_0 = arith.constant 0 : i32
    %c0_i32_1 = arith.constant 0 : i32
    return %c0_i32, %c0_i32_0 : i32, i32
  }
  func.func @transform_7(%arg0: i32) -> (i32, i32) {
    %c0_i32 = arith.constant 0 : i32
    %c0_i32_0 = arith.constant 0 : i32
    %c0_i32_1 = arith.constant 0 : i32
    return %c0_i32, %c0_i32_0 : i32, i32
  }
  func.func @transform_8(%arg0: i32) -> (i32, i32) {
    %c0_i32 = arith.constant 0 : i32
    %c0_i32_0 = arith.constant 0 : i32
    return %arg0, %c0_i32 : i32, i32
  }
}

</mosaic_0001>

<llo_original>
// kernel: combined_encoder.1
$region0: #{combined_encoder.1}
  #allocation0 [shape = 'u32[]', space=smem, size = 0x4, offset = 0x4, fixed_abs, tag = 'smem constant byte address 0x4 - core index']
  #allocation1 [shape = 'u32[144,128]{1,0:T(1,128)}', space=vmem, size = 0x12000, scoped, tag = 'internal scratch']
  %s0 = inlined_call_operand.vmem [shape: f32[16,1536], index: 0, kind: input, shape index: {}]
  %s1 = inlined_call_operand.hbm [shape: bf16[768,1024], index: 1, kind: input, shape index: {}]
  %s2 = inlined_call_operand.hbm [shape: bf16[1024,512], index: 2, kind: input, shape index: {}]
  %s3 = inlined_call_operand.hbm [shape: bf16[512,256], index: 3, kind: input, shape index: {}]
  %s4 = inlined_call_operand.vmem [shape: bf16[768,32], index: 4, kind: input, shape index: {}]
  %s5 = inlined_call_operand.hbm [shape: bf16[32,64], index: 5, kind: input, shape index: {}]
  %s6 = inlined_call_operand.hbm [shape: bf16[320,256], index: 6, kind: input, shape index: {}]
  %s7 = inlined_call_operand.hbm [shape: f32[1,2304], index: 7, kind: input, shape index: {}]
  %s8 = inlined_call_operand.vmem [shape: f32[16,256], index: 8, kind: output, shape index: {}]
  %s9 = sld [smem:[#allocation0]]
  $region66: #{combined_encoder.1} parent=0
    _
  %s11 = ssub.s32 1, %s9
  %s12 = scalar_select 0, %s11, %s9
  $region1: #{combined_encoder.1} parent=0
    #allocation2 [shape = 'u8[1572864]{0}', space=vmem, size = 0x180000, scoped, tag = 'input window, operand 1, single buffered']
    #allocation3 [shape = 's32[1]{0}', space=sflag, size = 0x4, scoped, tag = 'scoped memory for combined_encoder.1']
    #allocation4 [shape = 'u8[1048576]{0}', space=vmem, size = 0x100000, scoped, tag = 'input window, operand 2, single buffered']
    #allocation5 [shape = 's32[1]{0}', space=sflag, size = 0x4, scoped, tag = 'scoped memory for combined_encoder.1']
    #allocation6 [shape = 'u8[262144]{0}', space=vmem, size = 0x40000, scoped, tag = 'input window, operand 3, single buffered']
    #allocation7 [shape = 'u8[8192]{0}', space=vmem, size = 0x2000, scoped, tag = 'input window, operand 5, single buffered']
    #allocation8 [shape = 's32[1]{0}', space=sflag, size = 0x4, scoped, tag = 'scoped memory for combined_encoder.1']
    #allocation9 [shape = 'u8[163840]{0}', space=vmem, size = 0x28000, scoped, tag = 'input window, operand 6, single buffered']
    #allocation10 [shape = 'u8[9216]{0}', space=vmem, size = 0x2400, scoped, tag = 'input window, operand 7, single buffered']
    #allocation11 [shape = 's32[1]{0}', space=sflag, size = 0x4, scoped, tag = 'scoped memory for combined_encoder.1']
    %13 = vsyncpa [#allocation3], 0
    %14 = vsyncpa [#allocation5], 0
    %15 = vsyncpa [#allocation8], 0
    %16 = vsyncpa [#allocation11], 0
    // Predicated region
    $region2: #{combined_encoder.1} parent=1 // pred_check
      _
    $region3: #{combined_encoder.1} parent=1 // pred_check_branch
      %18 = sbr.rel (0) target = $region5
    $region4: #{combined_encoder.1} parent=1 // pred_region
      _
    $region5: #{combined_encoder.1} parent=1 // pred_fallthru
      _
    // Predicated region
    $region6: #{combined_encoder.1} parent=1 // pred_check
      _
    $region7: #{combined_encoder.1} parent=1 // pred_check_branch
      %20 = sbr.rel (0) target = $region9
    $region8: #{combined_encoder.1} parent=1 // pred_region
      %s22 = ssub.s32 49152, 49152
      %23 = vsyncadd [#allocation3], %s22
      %s24 = sshll.u32 [#allocation2], 4
      %s25 = int_to_ptr.vmem [resolvable:$true] %s24
      %30 = dma.hbm_to_vmem [thread:$0]  %s1, 49152, %s25, [#allocation3], 512, 512, 32
    $region9: #{combined_encoder.1} parent=1 // pred_fallthru
      _
    // Predicated region
    $region10: #{combined_encoder.1} parent=1 // pred_check
      _
    $region11: #{combined_encoder.1} parent=1 // pred_check_branch
      %32 = sbr.rel (0) target = $region13
    $region12: #{combined_encoder.1} parent=1 // pred_region
      %s34 = ssub.s32 32768, 32768
      %35 = vsyncadd [#allocation5], %s34
      %s36 = sshll.u32 [#allocation4], 4
      %s37 = int_to_ptr.vmem [resolvable:$true] %s36
      %42 = dma.hbm_to_vmem [thread:$0]  %s2, 32768, %s37, [#allocation5], 256, 256, 16
    $region13: #{combined_encoder.1} parent=1 // pred_fallthru
      _
    // Predicated region
    $region14: #{combined_encoder.1} parent=1 // pred_check
      _
    $region15: #{combined_encoder.1} parent=1 // pred_check_branch
      %44 = sbr.rel (0) target = $region17
    $region16: #{combined_encoder.1} parent=1 // pred_region
      %s46 = ssub.s32 8192, 8192
      %47 = vsyncadd [#allocation5], %s46
      %s48 = sshll.u32 [#allocation6], 4
      %s49 = int_to_ptr.vmem [resolvable:$true] %s48
      %54 = dma.hbm_to_vmem [thread:$0]  %s3, 8192, %s49, [#allocation5], 128, 128, 8
    $region17: #{combined_encoder.1} parent=1 // pred_fallthru
      _
    // Predicated region
    $region18: #{combined_encoder.1} parent=1 // pred_check
      _
    $region19: #{combined_encoder.1} parent=1 // pred_check_branch
      %56 = sbr.rel (0) target = $region21
    $region20: #{combined_encoder.1} parent=1 // pred_region
      _
    $region21: #{combined_encoder.1} parent=1 // pred_fallthru
      _
    // Predicated region
    $region22: #{combined_encoder.1} parent=1 // pred_check
      _
    $region23: #{combined_encoder.1} parent=1 // pred_check_branch
      %58 = sbr.rel (0) target = $region25
    $region24: #{combined_encoder.1} parent=1 // pred_region
      %s60 = ssub.s32 256, 256
      %61 = vsyncadd [#allocation8], %s60
      %s62 = sshll.u32 [#allocation7], 4
      %s63 = int_to_ptr.vmem [resolvable:$true] %s62
      %68 = dma.hbm_to_vmem [thread:$0]  %s5, 256, %s63, [#allocation8], 64, 64, 4
    $region25: #{combined_encoder.1} parent=1 // pred_fallthru
      _
    // Predicated region
    $region26: #{combined_encoder.1} parent=1 // pred_check
      _
    $region27: #{combined_encoder.1} parent=1 // pred_check_branch
      %70 = sbr.rel (0) target = $region29
    $region28: #{combined_encoder.1} parent=1 // pred_region
      %s72 = ssub.s32 5120, 5120
      %73 = vsyncadd [#allocation8], %s72
      %s74 = sshll.u32 [#allocation9], 4
      %s75 = int_to_ptr.vmem [resolvable:$true] %s74
      %80 = dma.hbm_to_vmem [thread:$0]  %s6, 5120, %s75, [#allocation8], 128, 128, 8
    $region29: #{combined_encoder.1} parent=1 // pred_fallthru
      _
    // Predicated region
    $region30: #{combined_encoder.1} parent=1 // pred_check
      _
    $region31: #{combined_encoder.1} parent=1 // pred_check_branch
      %82 = sbr.rel (0) target = $region33
    $region32: #{combined_encoder.1} parent=1 // pred_region
      %s84 = ssub.s32 288, 288
      %85 = vsyncadd [#allocation11], %s84
      %s87 = sshll.u32 [#allocation10], 4
      %s88 = int_to_ptr.vmem [resolvable:$true] %s87
      %90 = dma.hbm_to_vmem [thread:$0]  %s7, 288, %s88, [#allocation11]
    $region33: #{combined_encoder.1} parent=1 // pred_fallthru
      _
    // Predicated region
    $region34: #{combined_encoder.1} parent=1 // pred_check
      _
    $region35: #{combined_encoder.1} parent=1 // pred_check_branch
      %92 = sbr.rel (0) target = $region37
    $region36: #{combined_encoder.1} parent=1 // pred_region
      %93 = dma.done [#allocation3], 49152
    $region37: #{combined_encoder.1} parent=1 // pred_fallthru
      _
    // Predicated region
    $region38: #{combined_encoder.1} parent=1 // pred_check
      _
    $region39: #{combined_encoder.1} parent=1 // pred_check_branch
      %95 = sbr.rel (0) target = $region41
    $region40: #{combined_encoder.1} parent=1 // pred_region
      %96 = dma.done [#allocation5], 32768
    $region41: #{combined_encoder.1} parent=1 // pred_fallthru
      _
    // Predicated region
    $region42: #{combined_encoder.1} parent=1 // pred_check
      _
    $region43: #{combined_encoder.1} parent=1 // pred_check_branch
      %98 = sbr.rel (0) target = $region45
    $region44: #{combined_encoder.1} parent=1 // pred_region
      %99 = dma.done [#allocation5], 8192
    $region45: #{combined_encoder.1} parent=1 // pred_fallthru
      _
    // Predicated region
    $region46: #{combined_encoder.1} parent=1 // pred_check
      _
    $region47: #{combined_encoder.1} parent=1 // pred_check_branch
      %101 = sbr.rel (0) target = $region49
    $region48: #{combined_encoder.1} parent=1 // pred_region
      %102 = dma.done [#allocation8], 256
    $region49: #{combined_encoder.1} parent=1 // pred_fallthru
      _
    // Predicated region
    $region50: #{combined_encoder.1} parent=1 // pred_check
      _
    $region51: #{combined_encoder.1} parent=1 // pred_check_branch
      %104 = sbr.rel (0) target = $region53
    $region52: #{combined_encoder.1} parent=1 // pred_region
      %105 = dma.done [#allocation8], 5120
    $region53: #{combined_encoder.1} parent=1 // pred_fallthru
      _
    // Predicated region
    $region54: #{combined_encoder.1} parent=1 // pred_check
      _
    $region55: #{combined_encoder.1} parent=1 // pred_check_branch
      %107 = sbr.rel (0) target = $region57
    $region56: #{combined_encoder.1} parent=1 // pred_region
      %108 = dma.done [#allocation11], 288
    $region57: #{combined_encoder.1} parent=1 // pred_fallthru
      _
    %v110 = vld [vmem:[%s0] sm:$0xff]
    %v111 = vld [vmem:[%s0 + $0x8] sm:$0xff]
    %v112 = vld [vmem:[%s0 + $0x10] sm:$0xff]
    %v113 = vld [vmem:[%s0 + $0x18] sm:$0xff]
    %v114 = vld [vmem:[%s0 + $0x20] sm:$0xff]
    %v115 = vld [vmem:[%s0 + $0x28] sm:$0xff]
    %v116 = vld [vmem:[%s0 + $0x30] sm:$0xff]
    %v117 = vld [vmem:[%s0 + $0x38] sm:$0xff]
    %v118 = vld [vmem:[%s0 + $0x40] sm:$0xff]
    %v119 = vld [vmem:[%s0 + $0x48] sm:$0xff]
    %v120 = vld [vmem:[%s0 + $0x50] sm:$0xff]
    %v121 = vld [vmem:[%s0 + $0x58] sm:$0xff]
    %v122 = vld [vmem:[%s0 + $0x60] sm:$0xff]
    %v123 = vld [vmem:[%s0 + $0x68] sm:$0xff]
    %v124 = vld [vmem:[%s0 + $0x70] sm:$0xff]
    %v125 = vld [vmem:[%s0 + $0x78] sm:$0xff]
    %v126 = vld [vmem:[%s0 + $0x80] sm:$0xff]
    %v127 = vld [vmem:[%s0 + $0x88] sm:$0xff]
    %v128 = vld [vmem:[%s0 + $0x90] sm:$0xff]
    %v129 = vld [vmem:[%s0 + $0x98] sm:$0xff]
    %v130 = vld [vmem:[%s0 + $0xa0] sm:$0xff]
    %v131 = vld [vmem:[%s0 + $0xa8] sm:$0xff]
    %v132 = vld [vmem:[%s0 + $0xb0] sm:$0xff]
    %v133 = vld [vmem:[%s0 + $0xb8] sm:$0xff]
    %v134 = vpack.c.bf16 %v122, %v110
    %v135 = vpack.c.bf16 %v123, %v111
    %v136 = vpack.c.bf16 %v124, %v112
    %v137 = vpack.c.bf16 %v125, %v113
    %v138 = vpack.c.bf16 %v126, %v114
    %v139 = vpack.c.bf16 %v127, %v115
    %v140 = vpack.c.bf16 %v128, %v116
    %v141 = vpack.c.bf16 %v129, %v117
    %v142 = vpack.c.bf16 %v130, %v118
    %v143 = vpack.c.bf16 %v131, %v119
    %v144 = vpack.c.bf16 %v132, %v120
    %v145 = vpack.c.bf16 %v133, %v121
    %v146 = vld [vmem:[#allocation2] sm:$0xff]
    %v147 = vld [vmem:[#allocation2 + $0x8] sm:$0xff]
    %v148 = vld [vmem:[#allocation2 + $0x10] sm:$0xff]
    %v149 = vld [vmem:[#allocation2 + $0x18] sm:$0xff]
    %v150 = vld [vmem:[#allocation2 + $0x20] sm:$0xff]
    %v151 = vld [vmem:[#allocation2 + $0x28] sm:$0xff]
    %v152 = vld [vmem:[#allocation2 + $0x30] sm:$0xff]
    %v153 = vld [vmem:[#allocation2 + $0x38] sm:$0xff]
    %v154 = vld [vmem:[#allocation2 + $0x40] sm:$0xff]
    %v155 = vld [vmem:[#allocation2 + $0x48] sm:$0xff]
    %v156 = vld [vmem:[#allocation2 + $0x50] sm:$0xff]
    %v157 = vld [vmem:[#allocation2 + $0x58] sm:$0xff]
    %v158 = vld [vmem:[#allocation2 + $0x60] sm:$0xff]
    %v159 = vld [vmem:[#allocation2 + $0x68] sm:$0xff]
    %v160 = vld [vmem:[#allocation2 + $0x70] sm:$0xff]
    %v161 = vld [vmem:[#allocation2 + $0x78] sm:$0xff]
    %v162 = vld [vmem:[#allocation2 + $0x80] sm:$0xff]
    %v163 = vld [vmem:[#allocation2 + $0x88] sm:$0xff]
    %v164 = vld [vmem:[#allocation2 + $0x90] sm:$0xff]
    %v165 = vld [vmem:[#allocation2 + $0x98] sm:$0xff]
    %v166 = vld [vmem:[#allocation2 + $0xa0] sm:$0xff]
    %v167 = vld [vmem:[#allocation2 + $0xa8] sm:$0xff]
    %v168 = vld [vmem:[#allocation2 + $0xb0] sm:$0xff]
    %v169 = vld [vmem:[#allocation2 + $0xb8] sm:$0xff]
    %v170 = vld [vmem:[#allocation2 + $0xc0] sm:$0xff]
    %v171 = vld [vmem:[#allocation2 + $0xc8] sm:$0xff]
    %v172 = vld [vmem:[#allocation2 + $0xd0] sm:$0xff]
    %v173 = vld [vmem:[#allocation2 + $0xd8] sm:$0xff]
    %v174 = vld [vmem:[#allocation2 + $0xe0] sm:$0xff]
    %v175 = vld [vmem:[#allocation2 + $0xe8] sm:$0xff]
    %v176 = vld [vmem:[#allocation2 + $0xf0] sm:$0xff]
    %v177 = vld [vmem:[#allocation2 + $0xf8] sm:$0xff]
    %v178 = vld [vmem:[#allocation2 + $0x100] sm:$0xff]
    %v179 = vld [vmem:[#allocation2 + $0x108] sm:$0xff]
    %v180 = vld [vmem:[#allocation2 + $0x110] sm:$0xff]
    %v181 = vld [vmem:[#allocation2 + $0x118] sm:$0xff]
    %v182 = vld [vmem:[#allocation2 + $0x120] sm:$0xff]
    %v183 = vld [vmem:[#allocation2 + $0x128] sm:$0xff]
    %v184 = vld [vmem:[#allocation2 + $0x130] sm:$0xff]
    %v185 = vld [vmem:[#allocation2 + $0x138] sm:$0xff]
    %v186 = vld [vmem:[#allocation2 + $0x140] sm:$0xff]
    %v187 = vld [vmem:[#allocation2 + $0x148] sm:$0xff]
    %v188 = vld [vmem:[#allocation2 + $0x150] sm:$0xff]
    %v189 = vld [vmem:[#allocation2 + $0x158] sm:$0xff]
    %v190 = vld [vmem:[#allocation2 + $0x160] sm:$0xff]
    %v191 = vld [vmem:[#allocation2 + $0x168] sm:$0xff]
    %v192 = vld [vmem:[#allocation2 + $0x170] sm:$0xff]
    %v193 = vld [vmem:[#allocation2 + $0x178] sm:$0xff]
    %v194 = vld [vmem:[#allocation2 + $0x180] sm:$0xff]
    %v195 = vld [vmem:[#allocation2 + $0x188] sm:$0xff]
    %v196 = vld [vmem:[#allocation2 + $0x190] sm:$0xff]
    %v197 = vld [vmem:[#allocation2 + $0x198] sm:$0xff]
    %v198 = vld [vmem:[#allocation2 + $0x1a0] sm:$0xff]
    %v199 = vld [vmem:[#allocation2 + $0x1a8] sm:$0xff]
    %v200 = vld [vmem:[#allocation2 + $0x1b0] sm:$0xff]
    %v201 = vld [vmem:[#allocation2 + $0x1b8] sm:$0xff]
    %v202 = vld [vmem:[#allocation2 + $0x1c0] sm:$0xff]
    %v203 = vld [vmem:[#allocation2 + $0x1c8] sm:$0xff]
    %v204 = vld [vmem:[#allocation2 + $0x1d0] sm:$0xff]
    %v205 = vld [vmem:[#allocation2 + $0x1d8] sm:$0xff]
    %v206 = vld [vmem:[#allocation2 + $0x1e0] sm:$0xff]
    %v207 = vld [vmem:[#allocation2 + $0x1e8] sm:$0xff]
    %v208 = vld [vmem:[#allocation2 + $0x1f0] sm:$0xff]
    %v209 = vld [vmem:[#allocation2 + $0x1f8] sm:$0xff]
    %v210 = vld [vmem:[#allocation2 + $0x200] sm:$0xff]
    %v211 = vld [vmem:[#allocation2 + $0x208] sm:$0xff]
    %v212 = vld [vmem:[#allocation2 + $0x210] sm:$0xff]
    %v213 = vld [vmem:[#allocation2 + $0x218] sm:$0xff]
    %v214 = vld [vmem:[#allocation2 + $0x220] sm:$0xff]
    %v215 = vld [vmem:[#allocation2 + $0x228] sm:$0xff]
    %v216 = vld [vmem:[#allocation2 + $0x230] sm:$0xff]
    %v217 = vld [vmem:[#allocation2 + $0x238] sm:$0xff]
    %v218 = vld [vmem:[#allocation2 + $0x240] sm:$0xff]
    %v219 = vld [vmem:[#allocation2 + $0x248] sm:$0xff]
    %v220 = vld [vmem:[#allocation2 + $0x250] sm:$0xff]
    %v221 = vld [vmem:[#allocation2 + $0x258] sm:$0xff]
    %v222 = vld [vmem:[#allocation2 + $0x260] sm:$0xff]
    %v223 = vld [vmem:[#allocation2 + $0x268] sm:$0xff]
    %v224 = vld [vmem:[#allocation2 + $0x270] sm:$0xff]
    %v225 = vld [vmem:[#allocation2 + $0x278] sm:$0xff]
    %v226 = vld [vmem:[#allocation2 + $0x280] sm:$0xff]
    %v227 = vld [vmem:[#allocation2 + $0x288] sm:$0xff]
    %v228 = vld [vmem:[#allocation2 + $0x290] sm:$0xff]
    %v229 = vld [vmem:[#allocation2 + $0x298] sm:$0xff]
    %v230 = vld [vmem:[#allocation2 + $0x2a0] sm:$0xff]
    %v231 = vld [vmem:[#allocation2 + $0x2a8] sm:$0xff]
    %v232 = vld [vmem:[#allocation2 + $0x2b0] sm:$0xff]
    %v233 = vld [vmem:[#allocation2 + $0x2b8] sm:$0xff]
    %v234 = vld [vmem:[#allocation2 + $0x2c0] sm:$0xff]
    %v235 = vld [vmem:[#allocation2 + $0x2c8] sm:$0xff]
    %v236 = vld [vmem:[#allocation2 + $0x2d0] sm:$0xff]
    %v237 = vld [vmem:[#allocation2 + $0x2d8] sm:$0xff]
    %v238 = vld [vmem:[#allocation2 + $0x2e0] sm:$0xff]
    %v239 = vld [vmem:[#allocation2 + $0x2e8] sm:$0xff]
    %v240 = vld [vmem:[#allocation2 + $0x2f0] sm:$0xff]
    %v241 = vld [vmem:[#allocation2 + $0x2f8] sm:$0xff]
    %v242 = vld [vmem:[#allocation2 + $0x300] sm:$0xff]
    %v243 = vld [vmem:[#allocation2 + $0x308] sm:$0xff]
    %v244 = vld [vmem:[#allocation2 + $0x310] sm:$0xff]
    %v245 = vld [vmem:[#allocation2 + $0x318] sm:$0xff]
    %v246 = vld [vmem:[#allocation2 + $0x320] sm:$0xff]
    %v247 = vld [vmem:[#allocation2 + $0x328] sm:$0xff]
    %v248 = vld [vmem:[#allocation2 + $0x330] sm:$0xff]
    %v249 = vld [vmem:[#allocation2 + $0x338] sm:$0xff]
    %v250 = vld [vmem:[#allocation2 + $0x340] sm:$0xff]
    %v251 = vld [vmem:[#allocation2 + $0x348] sm:$0xff]
    %v252 = vld [vmem:[#allocation2 + $0x350] sm:$0xff]
    %v253 = vld [vmem:[#allocation2 + $0x358] sm:$0xff]
    %v254 = vld [vmem:[#allocation2 + $0x360] sm:$0xff]
    %v255 = vld [vmem:[#allocation2 + $0x368] sm:$0xff]
    %v256 = vld [vmem:[#allocation2 + $0x370] sm:$0xff]
    %v257 = vld [vmem:[#allocation2 + $0x378] sm:$0xff]
    %v258 = vld [vmem:[#allocation2 + $0x380] sm:$0xff]
    %v259 = vld [vmem:[#allocation2 + $0x388] sm:$0xff]
    %v260 = vld [vmem:[#allocation2 + $0x390] sm:$0xff]
    %v261 = vld [vmem:[#allocation2 + $0x398] sm:$0xff]
    %v262 = vld [vmem:[#allocation2 + $0x3a0] sm:$0xff]
    %v263 = vld [vmem:[#allocation2 + $0x3a8] sm:$0xff]
    %v264 = vld [vmem:[#allocation2 + $0x3b0] sm:$0xff]
    %v265 = vld [vmem:[#allocation2 + $0x3b8] sm:$0xff]
    %v266 = vld [vmem:[#allocation2 + $0x3c0] sm:$0xff]
    %v267 = vld [vmem:[#allocation2 + $0x3c8] sm:$0xff]
    %v268 = vld [vmem:[#allocation2 + $0x3d0] sm:$0xff]
    %v269 = vld [vmem:[#allocation2 + $0x3d8] sm:$0xff]
    %v270 = vld [vmem:[#allocation2 + $0x3e0] sm:$0xff]
    %v271 = vld [vmem:[#allocation2 + $0x3e8] sm:$0xff]
    %v272 = vld [vmem:[#allocation2 + $0x3f0] sm:$0xff]
    %v273 = vld [vmem:[#allocation2 + $0x3f8] sm:$0xff]
    %v274 = vld [vmem:[#allocation2 + $0x400] sm:$0xff]
    %v275 = vld [vmem:[#allocation2 + $0x408] sm:$0xff]
    %v276 = vld [vmem:[#allocation2 + $0x410] sm:$0xff]
    %v277 = vld [vmem:[#allocation2 + $0x418] sm:$0xff]
    %v278 = vld [vmem:[#allocation2 + $0x420] sm:$0xff]
    %v279 = vld [vmem:[#allocation2 + $0x428] sm:$0xff]
    %v280 = vld [vmem:[#allocation2 + $0x430] sm:$0xff]
    %v281 = vld [vmem:[#allocation2 + $0x438] sm:$0xff]
    %v282 = vld [vmem:[#allocation2 + $0x440] sm:$0xff]
    %v283 = vld [vmem:[#allocation2 + $0x448] sm:$0xff]
    %v284 = vld [vmem:[#allocation2 + $0x450] sm:$0xff]
    %v285 = vld [vmem:[#allocation2 + $0x458] sm:$0xff]
    %v286 = vld [vmem:[#allocation2 + $0x460] sm:$0xff]
    %v287 = vld [vmem:[#allocation2 + $0x468] sm:$0xff]
    %v288 = vld [vmem:[#allocation2 + $0x470] sm:$0xff]
    %v289 = vld [vmem:[#allocation2 + $0x478] sm:$0xff]
    %v290 = vld [vmem:[#allocation2 + $0x480] sm:$0xff]
    %v291 = vld [vmem:[#allocation2 + $0x488] sm:$0xff]
    %v292 = vld [vmem:[#allocation2 + $0x490] sm:$0xff]
    %v293 = vld [vmem:[#allocation2 + $0x498] sm:$0xff]
    %v294 = vld [vmem:[#allocation2 + $0x4a0] sm:$0xff]
    %v295 = vld [vmem:[#allocation2 + $0x4a8] sm:$0xff]
    %v296 = vld [vmem:[#allocation2 + $0x4b0] sm:$0xff]
    %v297 = vld [vmem:[#allocation2 + $0x4b8] sm:$0xff]
    %v298 = vld [vmem:[#allocation2 + $0x4c0] sm:$0xff]
    %v299 = vld [vmem:[#allocation2 + $0x4c8] sm:$0xff]
    %v300 = vld [vmem:[#allocation2 + $0x4d0] sm:$0xff]
    %v301 = vld [vmem:[#allocation2 + $0x4d8] sm:$0xff]
    %v302 = vld [vmem:[#allocation2 + $0x4e0] sm:$0xff]
    %v303 = vld [vmem:[#allocation2 + $0x4e8] sm:$0xff]
    %v304 = vld [vmem:[#allocation2 + $0x4f0] sm:$0xff]
    %v305 = vld [vmem:[#allocation2 + $0x4f8] sm:$0xff]
    %v306 = vld [vmem:[#allocation2 + $0x500] sm:$0xff]
    %v307 = vld [vmem:[#allocation2 + $0x508] sm:$0xff]
    %v308 = vld [vmem:[#allocation2 + $0x510] sm:$0xff]
    %v309 = vld [vmem:[#allocation2 + $0x518] sm:$0xff]
    %v310 = vld [vmem:[#allocation2 + $0x520] sm:$0xff]
    %v311 = vld [vmem:[#allocation2 + $0x528] sm:$0xff]
    %v312 = vld [vmem:[#allocation2 + $0x530] sm:$0xff]
    %v313 = vld [vmem:[#allocation2 + $0x538] sm:$0xff]
    %v314 = vld [vmem:[#allocation2 + $0x540] sm:$0xff]
    %v315 = vld [vmem:[#allocation2 + $0x548] sm:$0xff]
    %v316 = vld [vmem:[#allocation2 + $0x550] sm:$0xff]
    %v317 = vld [vmem:[#allocation2 + $0x558] sm:$0xff]
    %v318 = vld [vmem:[#allocation2 + $0x560] sm:$0xff]
    %v319 = vld [vmem:[#allocation2 + $0x568] sm:$0xff]
    %v320 = vld [vmem:[#allocation2 + $0x570] sm:$0xff]
    %v321 = vld [vmem:[#allocation2 + $0x578] sm:$0xff]
    %v322 = vld [vmem:[#allocation2 + $0x580] sm:$0xff]
    %v323 = vld [vmem:[#allocation2 + $0x588] sm:$0xff]
    %v324 = vld [vmem:[#allocation2 + $0x590] sm:$0xff]
    %v325 = vld [vmem:[#allocation2 + $0x598] sm:$0xff]
    %v326 = vld [vmem:[#allocation2 + $0x5a0] sm:$0xff]
    %v327 = vld [vmem:[#allocation2 + $0x5a8] sm:$0xff]
    %v328 = vld [vmem:[#allocation2 + $0x5b0] sm:$0xff]
    %v329 = vld [vmem:[#allocation2 + $0x5b8] sm:$0xff]
    %v330 = vld [vmem:[#allocation2 + $0x5c0] sm:$0xff]
    %v331 = vld [vmem:[#allocation2 + $0x5c8] sm:$0xff]
    %v332 = vld [vmem:[#allocation2 + $0x5d0] sm:$0xff]
    %v333 = vld [vmem:[#allocation2 + $0x5d8] sm:$0xff]
    %v334 = vld [vmem:[#allocation2 + $0x5e0] sm:$0xff]
    %v335 = vld [vmem:[#allocation2 + $0x5e8] sm:$0xff]
    %v336 = vld [vmem:[#allocation2 + $0x5f0] sm:$0xff]
    %v337 = vld [vmem:[#allocation2 + $0x5f8] sm:$0xff]
    %v338 = vld [vmem:[#allocation2 + $0x600] sm:$0xff]
    %v339 = vld [vmem:[#allocation2 + $0x608] sm:$0xff]
    %v340 = vld [vmem:[#allocation2 + $0x610] sm:$0xff]
    %v341 = vld [vmem:[#allocation2 + $0x618] sm:$0xff]
    %v342 = vld [vmem:[#allocation2 + $0x620] sm:$0xff]
    %v343 = vld [vmem:[#allocation2 + $0x628] sm:$0xff]
    %v344 = vld [vmem:[#allocation2 + $0x630] sm:$0xff]
    %v345 = vld [vmem:[#allocation2 + $0x638] sm:$0xff]
    %v346 = vld [vmem:[#allocation2 + $0x640] sm:$0xff]
    %v347 = vld [vmem:[#allocation2 + $0x648] sm:$0xff]
    %v348 = vld [vmem:[#allocation2 + $0x650] sm:$0xff]
    %v349 = vld [vmem:[#allocation2 + $0x658] sm:$0xff]
    %v350 = vld [vmem:[#allocation2 + $0x660] sm:$0xff]
    %v351 = vld [vmem:[#allocation2 + $0x668] sm:$0xff]
    %v352 = vld [vmem:[#allocation2 + $0x670] sm:$0xff]
    %v353 = vld [vmem:[#allocation2 + $0x678] sm:$0xff]
    %v354 = vld [vmem:[#allocation2 + $0x680] sm:$0xff]
    %v355 = vld [vmem:[#allocation2 + $0x688] sm:$0xff]
    %v356 = vld [vmem:[#allocation2 + $0x690] sm:$0xff]
    %v357 = vld [vmem:[#allocation2 + $0x698] sm:$0xff]
    %v358 = vld [vmem:[#allocation2 + $0x6a0] sm:$0xff]
    %v359 = vld [vmem:[#allocation2 + $0x6a8] sm:$0xff]
    %v360 = vld [vmem:[#allocation2 + $0x6b0] sm:$0xff]
    %v361 = vld [vmem:[#allocation2 + $0x6b8] sm:$0xff]
    %v362 = vld [vmem:[#allocation2 + $0x6c0] sm:$0xff]
    %v363 = vld [vmem:[#allocation2 + $0x6c8] sm:$0xff]
    %v364 = vld [vmem:[#allocation2 + $0x6d0] sm:$0xff]
    %v365 = vld [vmem:[#allocation2 + $0x6d8] sm:$0xff]
    %v366 = vld [vmem:[#allocation2 + $0x6e0] sm:$0xff]
    %v367 = vld [vmem:[#allocation2 + $0x6e8] sm:$0xff]
    %v368 = vld [vmem:[#allocation2 + $0x6f0] sm:$0xff]
    %v369 = vld [vmem:[#allocation2 + $0x6f8] sm:$0xff]
    %v370 = vld [vmem:[#allocation2 + $0x700] sm:$0xff]
    %v371 = vld [vmem:[#allocation2 + $0x708] sm:$0xff]
    %v372 = vld [vmem:[#allocation2 + $0x710] sm:$0xff]
    %v373 = vld [vmem:[#allocation2 + $0x718] sm:$0xff]
    %v374 = vld [vmem:[#allocation2 + $0x720] sm:$0xff]
    %v375 = vld [vmem:[#allocation2 + $0x728] sm:$0xff]
    %v376 = vld [vmem:[#allocation2 + $0x730] sm:$0xff]
    %v377 = vld [vmem:[#allocation2 + $0x738] sm:$0xff]
    %v378 = vld [vmem:[#allocation2 + $0x740] sm:$0xff]
    %v379 = vld [vmem:[#allocation2 + $0x748] sm:$0xff]
    %v380 = vld [vmem:[#allocation2 + $0x750] sm:$0xff]
    %v381 = vld [vmem:[#allocation2 + $0x758] sm:$0xff]
    %v382 = vld [vmem:[#allocation2 + $0x760] sm:$0xff]
    %v383 = vld [vmem:[#allocation2 + $0x768] sm:$0xff]
    %v384 = vld [vmem:[#allocation2 + $0x770] sm:$0xff]
    %v385 = vld [vmem:[#allocation2 + $0x778] sm:$0xff]
    %v386 = vld [vmem:[#allocation2 + $0x780] sm:$0xff]
    %v387 = vld [vmem:[#allocation2 + $0x788] sm:$0xff]
    %v388 = vld [vmem:[#allocation2 + $0x790] sm:$0xff]
    %v389 = vld [vmem:[#allocation2 + $0x798] sm:$0xff]
    %v390 = vld [vmem:[#allocation2 + $0x7a0] sm:$0xff]
    %v391 = vld [vmem:[#allocation2 + $0x7a8] sm:$0xff]
    %v392 = vld [vmem:[#allocation2 + $0x7b0] sm:$0xff]
    %v393 = vld [vmem:[#allocation2 + $0x7b8] sm:$0xff]
    %v394 = vld [vmem:[#allocation2 + $0x7c0] sm:$0xff]
    %v395 = vld [vmem:[#allocation2 + $0x7c8] sm:$0xff]
    %v396 = vld [vmem:[#allocation2 + $0x7d0] sm:$0xff]
    %v397 = vld [vmem:[#allocation2 + $0x7d8] sm:$0xff]
    %v398 = vld [vmem:[#allocation2 + $0x7e0] sm:$0xff]
    %v399 = vld [vmem:[#allocation2 + $0x7e8] sm:$0xff]
    %v400 = vld [vmem:[#allocation2 + $0x7f0] sm:$0xff]
    %v401 = vld [vmem:[#allocation2 + $0x7f8] sm:$0xff]
    %v402 = vld [vmem:[#allocation2 + $0x800] sm:$0xff]
    %v403 = vld [vmem:[#allocation2 + $0x808] sm:$0xff]
    %v404 = vld [vmem:[#allocation2 + $0x810] sm:$0xff]
    %v405 = vld [vmem:[#allocation2 + $0x818] sm:$0xff]
    %v406 = vld [vmem:[#allocation2 + $0x820] sm:$0xff]
    %v407 = vld [vmem:[#allocation2 + $0x828] sm:$0xff]
    %v408 = vld [vmem:[#allocation2 + $0x830] sm:$0xff]
    %v409 = vld [vmem:[#allocation2 + $0x838] sm:$0xff]
    %v410 = vld [vmem:[#allocation2 + $0x840] sm:$0xff]
    %v411 = vld [vmem:[#allocation2 + $0x848] sm:$0xff]
    %v412 = vld [vmem:[#allocation2 + $0x850] sm:$0xff]
    %v413 = vld [vmem:[#allocation2 + $0x858] sm:$0xff]
    %v414 = vld [vmem:[#allocation2 + $0x860] sm:$0xff]
    %v415 = vld [vmem:[#allocation2 + $0x868] sm:$0xff]
    %v416 = vld [vmem:[#allocation2 + $0x870] sm:$0xff]
    %v417 = vld [vmem:[#allocation2 + $0x878] sm:$0xff]
    %v418 = vld [vmem:[#allocation2 + $0x880] sm:$0xff]
    %v419 = vld [vmem:[#allocation2 + $0x888] sm:$0xff]
    %v420 = vld [vmem:[#allocation2 + $0x890] sm:$0xff]
    %v421 = vld [vmem:[#allocation2 + $0x898] sm:$0xff]
    %v422 = vld [vmem:[#allocation2 + $0x8a0] sm:$0xff]
    %v423 = vld [vmem:[#allocation2 + $0x8a8] sm:$0xff]
    %v424 = vld [vmem:[#allocation2 + $0x8b0] sm:$0xff]
    %v425 = vld [vmem:[#allocation2 + $0x8b8] sm:$0xff]
    %v426 = vld [vmem:[#allocation2 + $0x8c0] sm:$0xff]
    %v427 = vld [vmem:[#allocation2 + $0x8c8] sm:$0xff]
    %v428 = vld [vmem:[#allocation2 + $0x8d0] sm:$0xff]
    %v429 = vld [vmem:[#allocation2 + $0x8d8] sm:$0xff]
    %v430 = vld [vmem:[#allocation2 + $0x8e0] sm:$0xff]
    %v431 = vld [vmem:[#allocation2 + $0x8e8] sm:$0xff]
    %v432 = vld [vmem:[#allocation2 + $0x8f0] sm:$0xff]
    %v433 = vld [vmem:[#allocation2 + $0x8f8] sm:$0xff]
    %v434 = vld [vmem:[#allocation2 + $0x900] sm:$0xff]
    %v435 = vld [vmem:[#allocation2 + $0x908] sm:$0xff]
    %v436 = vld [vmem:[#allocation2 + $0x910] sm:$0xff]
    %v437 = vld [vmem:[#allocation2 + $0x918] sm:$0xff]
    %v438 = vld [vmem:[#allocation2 + $0x920] sm:$0xff]
    %v439 = vld [vmem:[#allocation2 + $0x928] sm:$0xff]
    %v440 = vld [vmem:[#allocation2 + $0x930] sm:$0xff]
    %v441 = vld [vmem:[#allocation2 + $0x938] sm:$0xff]
    %v442 = vld [vmem:[#allocation2 + $0x940] sm:$0xff]
    %v443 = vld [vmem:[#allocation2 + $0x948] sm:$0xff]
    %v444 = vld [vmem:[#allocation2 + $0x950] sm:$0xff]
    %v445 = vld [vmem:[#allocation2 + $0x958] sm:$0xff]
    %v446 = vld [vmem:[#allocation2 + $0x960] sm:$0xff]
    %v447 = vld [vmem:[#allocation2 + $0x968] sm:$0xff]
    %v448 = vld [vmem:[#allocation2 + $0x970] sm:$0xff]
    %v449 = vld [vmem:[#allocation2 + $0x978] sm:$0xff]
    %v450 = vld [vmem:[#allocation2 + $0x980] sm:$0xff]
    %v451 = vld [vmem:[#allocation2 + $0x988] sm:$0xff]
    %v452 = vld [vmem:[#allocation2 + $0x990] sm:$0xff]
    %v453 = vld [vmem:[#allocation2 + $0x998] sm:$0xff]
    %v454 = vld [vmem:[#allocation2 + $0x9a0] sm:$0xff]
    %v455 = vld [vmem:[#allocation2 + $0x9a8] sm:$0xff]
    %v456 = vld [vmem:[#allocation2 + $0x9b0] sm:$0xff]
    %v457 = vld [vmem:[#allocation2 + $0x9b8] sm:$0xff]
    %v458 = vld [vmem:[#allocation2 + $0x9c0] sm:$0xff]
    %v459 = vld [vmem:[#allocation2 + $0x9c8] sm:$0xff]
    %v460 = vld [vmem:[#allocation2 + $0x9d0] sm:$0xff]
    %v461 = vld [vmem:[#allocation2 + $0x9d8] sm:$0xff]
    %v462 = vld [vmem:[#allocation2 + $0x9e0] sm:$0xff]
    %v463 = vld [vmem:[#allocation2 + $0x9e8] sm:$0xff]
    %v464 = vld [vmem:[#allocation2 + $0x9f0] sm:$0xff]
    %v465 = vld [vmem:[#allocation2 + $0x9f8] sm:$0xff]
    %v466 = vld [vmem:[#allocation2 + $0xa00] sm:$0xff]
    %v467 = vld [vmem:[#allocation2 + $0xa08] sm:$0xff]
    %v468 = vld [vmem:[#allocation2 + $0xa10] sm:$0xff]
    %v469 = vld [vmem:[#allocation2 + $0xa18] sm:$0xff]
    %v470 = vld [vmem:[#allocation2 + $0xa20] sm:$0xff]
    %v471 = vld [vmem:[#allocation2 + $0xa28] sm:$0xff]
    %v472 = vld [vmem:[#allocation2 + $0xa30] sm:$0xff]
    %v473 = vld [vmem:[#allocation2 + $0xa38] sm:$0xff]
    %v474 = vld [vmem:[#allocation2 + $0xa40] sm:$0xff]
    %v475 = vld [vmem:[#allocation2 + $0xa48] sm:$0xff]
    %v476 = vld [vmem:[#allocation2 + $0xa50] sm:$0xff]
    %v477 = vld [vmem:[#allocation2 + $0xa58] sm:$0xff]
    %v478 = vld [vmem:[#allocation2 + $0xa60] sm:$0xff]
    %v479 = vld [vmem:[#allocation2 + $0xa68] sm:$0xff]
    %v480 = vld [vmem:[#allocation2 + $0xa70] sm:$0xff]
    %v481 = vld [vmem:[#allocation2 + $0xa78] sm:$0xff]
    %v482 = vld [vmem:[#allocation2 + $0xa80] sm:$0xff]
    %v483 = vld [vmem:[#allocation2 + $0xa88] sm:$0xff]
    %v484 = vld [vmem:[#allocation2 + $0xa90] sm:$0xff]
    %v485 = vld [vmem:[#allocation2 + $0xa98] sm:$0xff]
    %v486 = vld [vmem:[#allocation2 + $0xaa0] sm:$0xff]
    %v487 = vld [vmem:[#allocation2 + $0xaa8] sm:$0xff]
    %v488 = vld [vmem:[#allocation2 + $0xab0] sm:$0xff]
    %v489 = vld [vmem:[#allocation2 + $0xab8] sm:$0xff]
    %v490 = vld [vmem:[#allocation2 + $0xac0] sm:$0xff]
    %v491 = vld [vmem:[#allocation2 + $0xac8] sm:$0xff]
    %v492 = vld [vmem:[#allocation2 + $0xad0] sm:$0xff]
    %v493 = vld [vmem:[#allocation2 + $0xad8] sm:$0xff]
    %v494 = vld [vmem:[#allocation2 + $0xae0] sm:$0xff]
    %v495 = vld [vmem:[#allocation2 + $0xae8] sm:$0xff]
    %v496 = vld [vmem:[#allocation2 + $0xaf0] sm:$0xff]
    %v497 = vld [vmem:[#allocation2 + $0xaf8] sm:$0xff]
    %v498 = vld [vmem:[#allocation2 + $0xb00] sm:$0xff]
    %v499 = vld [vmem:[#allocation2 + $0xb08] sm:$0xff]
    %v500 = vld [vmem:[#allocation2 + $0xb10] sm:$0xff]
    %v501 = vld [vmem:[#allocation2 + $0xb18] sm:$0xff]
    %v502 = vld [vmem:[#allocation2 + $0xb20] sm:$0xff]
    %v503 = vld [vmem:[#allocation2 + $0xb28] sm:$0xff]
    %v504 = vld [vmem:[#allocation2 + $0xb30] sm:$0xff]
    %v505 = vld [vmem:[#allocation2 + $0xb38] sm:$0xff]
    %v506 = vld [vmem:[#allocation2 + $0xb40] sm:$0xff]
    %v507 = vld [vmem:[#allocation2 + $0xb48] sm:$0xff]
    %v508 = vld [vmem:[#allocation2 + $0xb50] sm:$0xff]
    %v509 = vld [vmem:[#allocation2 + $0xb58] sm:$0xff]
    %v510 = vld [vmem:[#allocation2 + $0xb60] sm:$0xff]
    %v511 = vld [vmem:[#allocation2 + $0xb68] sm:$0xff]
    %v512 = vld [vmem:[#allocation2 + $0xb70] sm:$0xff]
    %v513 = vld [vmem:[#allocation2 + $0xb78] sm:$0xff]
    %v514 = vld [vmem:[#allocation2 + $0xb80] sm:$0xff]
    %v515 = vld [vmem:[#allocation2 + $0xb88] sm:$0xff]
    %v516 = vld [vmem:[#allocation2 + $0xb90] sm:$0xff]
    %v517 = vld [vmem:[#allocation2 + $0xb98] sm:$0xff]
    %v518 = vld [vmem:[#allocation2 + $0xba0] sm:$0xff]
    %v519 = vld [vmem:[#allocation2 + $0xba8] sm:$0xff]
    %v520 = vld [vmem:[#allocation2 + $0xbb0] sm:$0xff]
    %v521 = vld [vmem:[#allocation2 + $0xbb8] sm:$0xff]
    %v522 = vld [vmem:[#allocation2 + $0xbc0] sm:$0xff]
    %v523 = vld [vmem:[#allocation2 + $0xbc8] sm:$0xff]
    %v524 = vld [vmem:[#allocation2 + $0xbd0] sm:$0xff]
    %v525 = vld [vmem:[#allocation2 + $0xbd8] sm:$0xff]
    %v526 = vld [vmem:[#allocation2 + $0xbe0] sm:$0xff]
    %v527 = vld [vmem:[#allocation2 + $0xbe8] sm:$0xff]
    %v528 = vld [vmem:[#allocation2 + $0xbf0] sm:$0xff]
    %v529 = vld [vmem:[#allocation2 + $0xbf8] sm:$0xff]
    %v530 = vld [vmem:[#allocation10] sm:$0xff]
    %v532 = vlaneseq
    %v533 = vshrl.u32 %v532, 7
    %v534 = vsub.s32 0, %v533
    %v535 = vrot.slane %v530, %v534
    %v536 = vlaneseq
    %v537 = vshrl.u32 %v536, 7
    %v538 = vsub.s32 1, %v537
    %v539 = vrot.slane %v530, %v538
    %v540 = vlaneseq
    %v541 = vshrl.u32 %v540, 7
    %v542 = vsub.s32 2, %v541
    %v543 = vrot.slane %v530, %v542
    %v544 = vlaneseq
    %v545 = vshrl.u32 %v544, 7
    %v546 = vsub.s32 3, %v545
    %v547 = vrot.slane %v530, %v546
    %v548 = vlaneseq
    %v549 = vshrl.u32 %v548, 7
    %v550 = vsub.s32 4, %v549
    %v551 = vrot.slane %v530, %v550
    %v552 = vlaneseq
    %v553 = vshrl.u32 %v552, 7
    %v554 = vsub.s32 5, %v553
    %v555 = vrot.slane %v530, %v554
    %v556 = vlaneseq
    %v557 = vshrl.u32 %v556, 7
    %v558 = vsub.s32 6, %v557
    %v559 = vrot.slane %v530, %v558
    %v560 = vlaneseq
    %v561 = vshrl.u32 %v560, 7
    %v562 = vsub.s32 7, %v561
    %v563 = vrot.slane %v530, %v562
    %v956 = vunpack.c.l.b16 %v146
    %v957 = vunpack.c.h.b16 %v146
    %v958 = vunpack.c.l.b16 %v147
    %v959 = vunpack.c.h.b16 %v147
    %v960 = vunpack.c.l.b16 %v148
    %v961 = vunpack.c.h.b16 %v148
    %v962 = vunpack.c.l.b16 %v149
    %v963 = vunpack.c.h.b16 %v149
    %v964 = vunpack.c.l.b16 %v150
    %v965 = vunpack.c.h.b16 %v150
    %v966 = vunpack.c.l.b16 %v151
    %v967 = vunpack.c.h.b16 %v151
    %v968 = vunpack.c.l.b16 %v152
    %v969 = vunpack.c.h.b16 %v152
    %v970 = vunpack.c.l.b16 %v153
    %v971 = vunpack.c.h.b16 %v153
    %v972 = vunpack.c.l.b16 %v154
    %v973 = vunpack.c.h.b16 %v154
    %v974 = vunpack.c.l.b16 %v155
    %v975 = vunpack.c.h.b16 %v155
    %v976 = vunpack.c.l.b16 %v156
    %v977 = vunpack.c.h.b16 %v156
    %v978 = vunpack.c.l.b16 %v157
    %v979 = vunpack.c.h.b16 %v157
    %v980 = vunpack.c.l.b16 %v158
    %v981 = vunpack.c.h.b16 %v158
    %v982 = vunpack.c.l.b16 %v159
    %v983 = vunpack.c.h.b16 %v159
    %v984 = vunpack.c.l.b16 %v160
    %v985 = vunpack.c.h.b16 %v160
    %v986 = vunpack.c.l.b16 %v161
    %v987 = vunpack.c.h.b16 %v161
    %v988 = vunpack.c.l.b16 %v162
    %v989 = vunpack.c.h.b16 %v162
    %v990 = vunpack.c.l.b16 %v163
    %v991 = vunpack.c.h.b16 %v163
    %v992 = vunpack.c.l.b16 %v164
    %v993 = vunpack.c.h.b16 %v164
    %v994 = vunpack.c.l.b16 %v165
    %v995 = vunpack.c.h.b16 %v165
    %v996 = vunpack.c.l.b16 %v166
    %v997 = vunpack.c.h.b16 %v166
    %v998 = vunpack.c.l.b16 %v167
    %v999 = vunpack.c.h.b16 %v167
    %v1000 = vunpack.c.l.b16 %v168
    %v1001 = vunpack.c.h.b16 %v168
    %v1002 = vunpack.c.l.b16 %v169
    %v1003 = vunpack.c.h.b16 %v169
    %v1004 = vunpack.c.l.b16 %v170
    %v1005 = vunpack.c.h.b16 %v170
    %v1006 = vunpack.c.l.b16 %v171
    %v1007 = vunpack.c.h.b16 %v171
    %v1008 = vunpack.c.l.b16 %v172
    %v1009 = vunpack.c.h.b16 %v172
    %v1010 = vunpack.c.l.b16 %v173
    %v1011 = vunpack.c.h.b16 %v173
    %v1012 = vunpack.c.l.b16 %v174
    %v1013 = vunpack.c.h.b16 %v174
    %v1014 = vunpack.c.l.b16 %v175
    %v1015 = vunpack.c.h.b16 %v175
    %v1016 = vunpack.c.l.b16 %v176
    %v1017 = vunpack.c.h.b16 %v176
    %v1018 = vunpack.c.l.b16 %v177
    %v1019 = vunpack.c.h.b16 %v177
    %v1020 = vunpack.c.l.b16 %v178
    %v1021 = vunpack.c.h.b16 %v178
    %v1022 = vunpack.c.l.b16 %v179
    %v1023 = vunpack.c.h.b16 %v179
    %v1024 = vunpack.c.l.b16 %v180
    %v1025 = vunpack.c.h.b16 %v180
    %v1026 = vunpack.c.l.b16 %v181
    %v1027 = vunpack.c.h.b16 %v181
    %v1028 = vunpack.c.l.b16 %v182
    %v1029 = vunpack.c.h.b16 %v182
    %v1030 = vunpack.c.l.b16 %v183
    %v1031 = vunpack.c.h.b16 %v183
    %v1032 = vunpack.c.l.b16 %v184
    %v1033 = vunpack.c.h.b16 %v184
    %v1034 = vunpack.c.l.b16 %v185
    %v1035 = vunpack.c.h.b16 %v185
    %v1036 = vunpack.c.l.b16 %v186
    %v1037 = vunpack.c.h.b16 %v186
    %v1038 = vunpack.c.l.b16 %v187
    %v1039 = vunpack.c.h.b16 %v187
    %v1040 = vunpack.c.l.b16 %v188
    %v1041 = vunpack.c.h.b16 %v188
    %v1042 = vunpack.c.l.b16 %v189
    %v1043 = vunpack.c.h.b16 %v189
    %v1044 = vunpack.c.l.b16 %v190
    %v1045 = vunpack.c.h.b16 %v190
    %v1046 = vunpack.c.l.b16 %v191
    %v1047 = vunpack.c.h.b16 %v191
    %v1048 = vunpack.c.l.b16 %v192
    %v1049 = vunpack.c.h.b16 %v192
    %v1050 = vunpack.c.l.b16 %v193
    %v1051 = vunpack.c.h.b16 %v193
    %v1052 = vunpack.c.l.b16 %v194
    %v1053 = vunpack.c.h.b16 %v194
    %v1054 = vunpack.c.l.b16 %v195
    %v1055 = vunpack.c.h.b16 %v195
    %v1056 = vunpack.c.l.b16 %v196
    %v1057 = vunpack.c.h.b16 %v196
    %v1058 = vunpack.c.l.b16 %v197
    %v1059 = vunpack.c.h.b16 %v197
    %v1060 = vunpack.c.l.b16 %v198
    %v1061 = vunpack.c.h.b16 %v198
    %v1062 = vunpack.c.l.b16 %v199
    %v1063 = vunpack.c.h.b16 %v199
    %v1064 = vunpack.c.l.b16 %v200
    %v1065 = vunpack.c.h.b16 %v200
    %v1066 = vunpack.c.l.b16 %v201
    %v1067 = vunpack.c.h.b16 %v201
    %v1068 = vunpack.c.l.b16 %v202
    %v1069 = vunpack.c.h.b16 %v202
    %v1070 = vunpack.c.l.b16 %v203
    %v1071 = vunpack.c.h.b16 %v203
    %v1072 = vunpack.c.l.b16 %v204
    %v1073 = vunpack.c.h.b16 %v204
    %v1074 = vunpack.c.l.b16 %v205
    %v1075 = vunpack.c.h.b16 %v205
    %v1076 = vunpack.c.l.b16 %v206
    %v1077 = vunpack.c.h.b16 %v206
    %v1078 = vunpack.c.l.b16 %v207
    %v1079 = vunpack.c.h.b16 %v207
    %v1080 = vunpack.c.l.b16 %v208
    %v1081 = vunpack.c.h.b16 %v208
    %v1082 = vunpack.c.l.b16 %v209
    %v1083 = vunpack.c.h.b16 %v209
    %v1084 = vunpack.c.l.b16 %v210
    %v1085 = vunpack.c.h.b16 %v210
    %v1086 = vunpack.c.l.b16 %v211
    %v1087 = vunpack.c.h.b16 %v211
    %v1088 = vunpack.c.l.b16 %v212
    %v1089 = vunpack.c.h.b16 %v212
    %v1090 = vunpack.c.l.b16 %v213
    %v1091 = vunpack.c.h.b16 %v213
    %v1092 = vunpack.c.l.b16 %v214
    %v1093 = vunpack.c.h.b16 %v214
    %v1094 = vunpack.c.l.b16 %v215
    %v1095 = vunpack.c.h.b16 %v215
    %v1096 = vunpack.c.l.b16 %v216
    %v1097 = vunpack.c.h.b16 %v216
    %v1098 = vunpack.c.l.b16 %v217
    %v1099 = vunpack.c.h.b16 %v217
    %v1100 = vunpack.c.l.b16 %v218
    %v1101 = vunpack.c.h.b16 %v218
    %v1102 = vunpack.c.l.b16 %v219
    %v1103 = vunpack.c.h.b16 %v219
    %v1104 = vunpack.c.l.b16 %v220
    %v1105 = vunpack.c.h.b16 %v220
    %v1106 = vunpack.c.l.b16 %v221
    %v1107 = vunpack.c.h.b16 %v221
    %v1108 = vunpack.c.l.b16 %v222
    %v1109 = vunpack.c.h.b16 %v222
    %v1110 = vunpack.c.l.b16 %v223
    %v1111 = vunpack.c.h.b16 %v223
    %v1112 = vunpack.c.l.b16 %v224
    %v1113 = vunpack.c.h.b16 %v224
    %v1114 = vunpack.c.l.b16 %v225
    %v1115 = vunpack.c.h.b16 %v225
    %v1116 = vunpack.c.l.b16 %v226
    %v1117 = vunpack.c.h.b16 %v226
    %v1118 = vunpack.c.l.b16 %v227
    %v1119 = vunpack.c.h.b16 %v227
    %v1120 = vunpack.c.l.b16 %v228
    %v1121 = vunpack.c.h.b16 %v228
    %v1122 = vunpack.c.l.b16 %v229
    %v1123 = vunpack.c.h.b16 %v229
    %v1124 = vunpack.c.l.b16 %v230
    %v1125 = vunpack.c.h.b16 %v230
    %v1126 = vunpack.c.l.b16 %v231
    %v1127 = vunpack.c.h.b16 %v231
    %v1128 = vunpack.c.l.b16 %v232
    %v1129 = vunpack.c.h.b16 %v232
    %v1130 = vunpack.c.l.b16 %v233
    %v1131 = vunpack.c.h.b16 %v233
    %v1132 = vunpack.c.l.b16 %v234
    %v1133 = vunpack.c.h.b16 %v234
    %v1134 = vunpack.c.l.b16 %v235
    %v1135 = vunpack.c.h.b16 %v235
    %v1136 = vunpack.c.l.b16 %v236
    %v1137 = vunpack.c.h.b16 %v236
    %v1138 = vunpack.c.l.b16 %v237
    %v1139 = vunpack.c.h.b16 %v237
    %v1140 = vunpack.c.l.b16 %v238
    %v1141 = vunpack.c.h.b16 %v238
    %v1142 = vunpack.c.l.b16 %v239
    %v1143 = vunpack.c.h.b16 %v239
    %v1144 = vunpack.c.l.b16 %v240
    %v1145 = vunpack.c.h.b16 %v240
    %v1146 = vunpack.c.l.b16 %v241
    %v1147 = vunpack.c.h.b16 %v241
    %v1148 = vunpack.c.l.b16 %v242
    %v1149 = vunpack.c.h.b16 %v242
    %v1150 = vunpack.c.l.b16 %v243
    %v1151 = vunpack.c.h.b16 %v243
    %v1152 = vunpack.c.l.b16 %v244
    %v1153 = vunpack.c.h.b16 %v244
    %v1154 = vunpack.c.l.b16 %v245
    %v1155 = vunpack.c.h.b16 %v245
    %v1156 = vunpack.c.l.b16 %v246
    %v1157 = vunpack.c.h.b16 %v246
    %v1158 = vunpack.c.l.b16 %v247
    %v1159 = vunpack.c.h.b16 %v247
    %v1160 = vunpack.c.l.b16 %v248
    %v1161 = vunpack.c.h.b16 %v248
    %v1162 = vunpack.c.l.b16 %v249
    %v1163 = vunpack.c.h.b16 %v249
    %v1164 = vunpack.c.l.b16 %v250
    %v1165 = vunpack.c.h.b16 %v250
    %v1166 = vunpack.c.l.b16 %v251
    %v1167 = vunpack.c.h.b16 %v251
    %v1168 = vunpack.c.l.b16 %v252
    %v1169 = vunpack.c.h.b16 %v252
    %v1170 = vunpack.c.l.b16 %v253
    %v1171 = vunpack.c.h.b16 %v253
    %v1172 = vunpack.c.l.b16 %v254
    %v1173 = vunpack.c.h.b16 %v254
    %v1174 = vunpack.c.l.b16 %v255
    %v1175 = vunpack.c.h.b16 %v255
    %v1176 = vunpack.c.l.b16 %v256
    %v1177 = vunpack.c.h.b16 %v256
    %v1178 = vunpack.c.l.b16 %v257
    %v1179 = vunpack.c.h.b16 %v257
    %v1180 = vunpack.c.l.b16 %v258
    %v1181 = vunpack.c.h.b16 %v258
    %v1182 = vunpack.c.l.b16 %v259
    %v1183 = vunpack.c.h.b16 %v259
    %v1184 = vunpack.c.l.b16 %v260
    %v1185 = vunpack.c.h.b16 %v260
    %v1186 = vunpack.c.l.b16 %v261
    %v1187 = vunpack.c.h.b16 %v261
    %v1188 = vunpack.c.l.b16 %v262
    %v1189 = vunpack.c.h.b16 %v262
    %v1190 = vunpack.c.l.b16 %v263
    %v1191 = vunpack.c.h.b16 %v263
    %v1192 = vunpack.c.l.b16 %v264
    %v1193 = vunpack.c.h.b16 %v264
    %v1194 = vunpack.c.l.b16 %v265
    %v1195 = vunpack.c.h.b16 %v265
    %v1196 = vunpack.c.l.b16 %v266
    %v1197 = vunpack.c.h.b16 %v266
    %v1198 = vunpack.c.l.b16 %v267
    %v1199 = vunpack.c.h.b16 %v267
    %v1200 = vunpack.c.l.b16 %v268
    %v1201 = vunpack.c.h.b16 %v268
    %v1202 = vunpack.c.l.b16 %v269
    %v1203 = vunpack.c.h.b16 %v269
    %v1204 = vunpack.c.l.b16 %v270
    %v1205 = vunpack.c.h.b16 %v270
    %v1206 = vunpack.c.l.b16 %v271
    %v1207 = vunpack.c.h.b16 %v271
    %v1208 = vunpack.c.l.b16 %v272
    %v1209 = vunpack.c.h.b16 %v272
    %v1210 = vunpack.c.l.b16 %v273
    %v1211 = vunpack.c.h.b16 %v273
    %v1212 = vunpack.c.l.b16 %v274
    %v1213 = vunpack.c.h.b16 %v274
    %v1214 = vunpack.c.l.b16 %v275
    %v1215 = vunpack.c.h.b16 %v275
    %v1216 = vunpack.c.l.b16 %v276
    %v1217 = vunpack.c.h.b16 %v276
    %v1218 = vunpack.c.l.b16 %v277
    %v1219 = vunpack.c.h.b16 %v277
    %v1220 = vunpack.c.l.b16 %v278
    %v1221 = vunpack.c.h.b16 %v278
    %v1222 = vunpack.c.l.b16 %v279
    %v1223 = vunpack.c.h.b16 %v279
    %v1224 = vunpack.c.l.b16 %v280
    %v1225 = vunpack.c.h.b16 %v280
    %v1226 = vunpack.c.l.b16 %v281
    %v1227 = vunpack.c.h.b16 %v281
    %v1228 = vunpack.c.l.b16 %v282
    %v1229 = vunpack.c.h.b16 %v282
    %v1230 = vunpack.c.l.b16 %v283
    %v1231 = vunpack.c.h.b16 %v283
    %v1232 = vunpack.c.l.b16 %v284
    %v1233 = vunpack.c.h.b16 %v284
    %v1234 = vunpack.c.l.b16 %v285
    %v1235 = vunpack.c.h.b16 %v285
    %v1236 = vunpack.c.l.b16 %v286
    %v1237 = vunpack.c.h.b16 %v286
    %v1238 = vunpack.c.l.b16 %v287
    %v1239 = vunpack.c.h.b16 %v287
    %v1240 = vunpack.c.l.b16 %v288
    %v1241 = vunpack.c.h.b16 %v288
    %v1242 = vunpack.c.l.b16 %v289
    %v1243 = vunpack.c.h.b16 %v289
    %v1244 = vunpack.c.l.b16 %v290
    %v1245 = vunpack.c.h.b16 %v290
    %v1246 = vunpack.c.l.b16 %v291
    %v1247 = vunpack.c.h.b16 %v291
    %v1248 = vunpack.c.l.b16 %v292
    %v1249 = vunpack.c.h.b16 %v292
    %v1250 = vunpack.c.l.b16 %v293
    %v1251 = vunpack.c.h.b16 %v293
    %v1252 = vunpack.c.l.b16 %v294
    %v1253 = vunpack.c.h.b16 %v294
    %v1254 = vunpack.c.l.b16 %v295
    %v1255 = vunpack.c.h.b16 %v295
    %v1256 = vunpack.c.l.b16 %v296
    %v1257 = vunpack.c.h.b16 %v296
    %v1258 = vunpack.c.l.b16 %v297
    %v1259 = vunpack.c.h.b16 %v297
    %v1260 = vunpack.c.l.b16 %v298
    %v1261 = vunpack.c.h.b16 %v298
    %v1262 = vunpack.c.l.b16 %v299
    %v1263 = vunpack.c.h.b16 %v299
    %v1264 = vunpack.c.l.b16 %v300
    %v1265 = vunpack.c.h.b16 %v300
    %v1266 = vunpack.c.l.b16 %v301
    %v1267 = vunpack.c.h.b16 %v301
    %v1268 = vunpack.c.l.b16 %v302
    %v1269 = vunpack.c.h.b16 %v302
    %v1270 = vunpack.c.l.b16 %v303
    %v1271 = vunpack.c.h.b16 %v303
    %v1272 = vunpack.c.l.b16 %v304
    %v1273 = vunpack.c.h.b16 %v304
    %v1274 = vunpack.c.l.b16 %v305
    %v1275 = vunpack.c.h.b16 %v305
    %v1276 = vunpack.c.l.b16 %v306
    %v1277 = vunpack.c.h.b16 %v306
    %v1278 = vunpack.c.l.b16 %v307
    %v1279 = vunpack.c.h.b16 %v307
    %v1280 = vunpack.c.l.b16 %v308
    %v1281 = vunpack.c.h.b16 %v308
    %v1282 = vunpack.c.l.b16 %v309
    %v1283 = vunpack.c.h.b16 %v309
    %v1284 = vunpack.c.l.b16 %v310
    %v1285 = vunpack.c.h.b16 %v310
    %v1286 = vunpack.c.l.b16 %v311
    %v1287 = vunpack.c.h.b16 %v311
    %v1288 = vunpack.c.l.b16 %v312
    %v1289 = vunpack.c.h.b16 %v312
    %v1290 = vunpack.c.l.b16 %v313
    %v1291 = vunpack.c.h.b16 %v313
    %v1292 = vunpack.c.l.b16 %v314
    %v1293 = vunpack.c.h.b16 %v314
    %v1294 = vunpack.c.l.b16 %v315
    %v1295 = vunpack.c.h.b16 %v315
    %v1296 = vunpack.c.l.b16 %v316
    %v1297 = vunpack.c.h.b16 %v316
    %v1298 = vunpack.c.l.b16 %v317
    %v1299 = vunpack.c.h.b16 %v317
    %v1300 = vunpack.c.l.b16 %v318
    %v1301 = vunpack.c.h.b16 %v318
    %v1302 = vunpack.c.l.b16 %v319
    %v1303 = vunpack.c.h.b16 %v319
    %v1304 = vunpack.c.l.b16 %v320
    %v1305 = vunpack.c.h.b16 %v320
    %v1306 = vunpack.c.l.b16 %v321
    %v1307 = vunpack.c.h.b16 %v321
    %v1308 = vunpack.c.l.b16 %v322
    %v1309 = vunpack.c.h.b16 %v322
    %v1310 = vunpack.c.l.b16 %v323
    %v1311 = vunpack.c.h.b16 %v323
    %v1312 = vunpack.c.l.b16 %v324
    %v1313 = vunpack.c.h.b16 %v324
    %v1314 = vunpack.c.l.b16 %v325
    %v1315 = vunpack.c.h.b16 %v325
    %v1316 = vunpack.c.l.b16 %v326
    %v1317 = vunpack.c.h.b16 %v326
    %v1318 = vunpack.c.l.b16 %v327
    %v1319 = vunpack.c.h.b16 %v327
    %v1320 = vunpack.c.l.b16 %v328
    %v1321 = vunpack.c.h.b16 %v328
    %v1322 = vunpack.c.l.b16 %v329
    %v1323 = vunpack.c.h.b16 %v329
    %v1324 = vunpack.c.l.b16 %v330
    %v1325 = vunpack.c.h.b16 %v330
    %v1326 = vunpack.c.l.b16 %v331
    %v1327 = vunpack.c.h.b16 %v331
    %v1328 = vunpack.c.l.b16 %v332
    %v1329 = vunpack.c.h.b16 %v332
    %v1330 = vunpack.c.l.b16 %v333
    %v1331 = vunpack.c.h.b16 %v333
    %v1332 = vunpack.c.l.b16 %v334
    %v1333 = vunpack.c.h.b16 %v334
    %v1334 = vunpack.c.l.b16 %v335
    %v1335 = vunpack.c.h.b16 %v335
    %v1336 = vunpack.c.l.b16 %v336
    %v1337 = vunpack.c.h.b16 %v336
    %v1338 = vunpack.c.l.b16 %v337
    %v1339 = vunpack.c.h.b16 %v337
    %v1340 = vunpack.c.l.b16 %v338
    %v1341 = vunpack.c.h.b16 %v338
    %v1342 = vunpack.c.l.b16 %v339
    %v1343 = vunpack.c.h.b16 %v339
    %v1344 = vunpack.c.l.b16 %v340
    %v1345 = vunpack.c.h.b16 %v340
    %v1346 = vunpack.c.l.b16 %v341
    %v1347 = vunpack.c.h.b16 %v341
    %v1348 = vunpack.c.l.b16 %v342
    %v1349 = vunpack.c.h.b16 %v342
    %v1350 = vunpack.c.l.b16 %v343
    %v1351 = vunpack.c.h.b16 %v343
    %v1352 = vunpack.c.l.b16 %v344
    %v1353 = vunpack.c.h.b16 %v344
    %v1354 = vunpack.c.l.b16 %v345
    %v1355 = vunpack.c.h.b16 %v345
    %v1356 = vunpack.c.l.b16 %v346
    %v1357 = vunpack.c.h.b16 %v346
    %v1358 = vunpack.c.l.b16 %v347
    %v1359 = vunpack.c.h.b16 %v347
    %v1360 = vunpack.c.l.b16 %v348
    %v1361 = vunpack.c.h.b16 %v348
    %v1362 = vunpack.c.l.b16 %v349
    %v1363 = vunpack.c.h.b16 %v349
    %v1364 = vunpack.c.l.b16 %v350
    %v1365 = vunpack.c.h.b16 %v350
    %v1366 = vunpack.c.l.b16 %v351
    %v1367 = vunpack.c.h.b16 %v351
    %v1368 = vunpack.c.l.b16 %v352
    %v1369 = vunpack.c.h.b16 %v352
    %v1370 = vunpack.c.l.b16 %v353
    %v1371 = vunpack.c.h.b16 %v353
    %v1372 = vunpack.c.l.b16 %v354
    %v1373 = vunpack.c.h.b16 %v354
    %v1374 = vunpack.c.l.b16 %v355
    %v1375 = vunpack.c.h.b16 %v355
    %v1376 = vunpack.c.l.b16 %v356
    %v1377 = vunpack.c.h.b16 %v356
    %v1378 = vunpack.c.l.b16 %v357
    %v1379 = vunpack.c.h.b16 %v357
    %v1380 = vunpack.c.l.b16 %v358
    %v1381 = vunpack.c.h.b16 %v358
    %v1382 = vunpack.c.l.b16 %v359
    %v1383 = vunpack.c.h.b16 %v359
    %v1384 = vunpack.c.l.b16 %v360
    %v1385 = vunpack.c.h.b16 %v360
    %v1386 = vunpack.c.l.b16 %v361
    %v1387 = vunpack.c.h.b16 %v361
    %v1388 = vunpack.c.l.b16 %v362
    %v1389 = vunpack.c.h.b16 %v362
    %v1390 = vunpack.c.l.b16 %v363
    %v1391 = vunpack.c.h.b16 %v363
    %v1392 = vunpack.c.l.b16 %v364
    %v1393 = vunpack.c.h.b16 %v364
    %v1394 = vunpack.c.l.b16 %v365
    %v1395 = vunpack.c.h.b16 %v365
    %v1396 = vunpack.c.l.b16 %v366
    %v1397 = vunpack.c.h.b16 %v366
    %v1398 = vunpack.c.l.b16 %v367
    %v1399 = vunpack.c.h.b16 %v367
    %v1400 = vunpack.c.l.b16 %v368
    %v1401 = vunpack.c.h.b16 %v368
    %v1402 = vunpack.c.l.b16 %v369
    %v1403 = vunpack.c.h.b16 %v369
    %v1404 = vunpack.c.l.b16 %v370
    %v1405 = vunpack.c.h.b16 %v370
    %v1406 = vunpack.c.l.b16 %v371
    %v1407 = vunpack.c.h.b16 %v371
    %v1408 = vunpack.c.l.b16 %v372
    %v1409 = vunpack.c.h.b16 %v372
    %v1410 = vunpack.c.l.b16 %v373
    %v1411 = vunpack.c.h.b16 %v373
    %v1412 = vunpack.c.l.b16 %v374
    %v1413 = vunpack.c.h.b16 %v374
    %v1414 = vunpack.c.l.b16 %v375
    %v1415 = vunpack.c.h.b16 %v375
    %v1416 = vunpack.c.l.b16 %v376
    %v1417 = vunpack.c.h.b16 %v376
    %v1418 = vunpack.c.l.b16 %v377
    %v1419 = vunpack.c.h.b16 %v377
    %v1420 = vunpack.c.l.b16 %v378
    %v1421 = vunpack.c.h.b16 %v378
    %v1422 = vunpack.c.l.b16 %v379
    %v1423 = vunpack.c.h.b16 %v379
    %v1424 = vunpack.c.l.b16 %v380
    %v1425 = vunpack.c.h.b16 %v380
    %v1426 = vunpack.c.l.b16 %v381
    %v1427 = vunpack.c.h.b16 %v381
    %v1428 = vunpack.c.l.b16 %v382
    %v1429 = vunpack.c.h.b16 %v382
    %v1430 = vunpack.c.l.b16 %v383
    %v1431 = vunpack.c.h.b16 %v383
    %v1432 = vunpack.c.l.b16 %v384
    %v1433 = vunpack.c.h.b16 %v384
    %v1434 = vunpack.c.l.b16 %v385
    %v1435 = vunpack.c.h.b16 %v385
    %v1436 = vunpack.c.l.b16 %v386
    %v1437 = vunpack.c.h.b16 %v386
    %v1438 = vunpack.c.l.b16 %v387
    %v1439 = vunpack.c.h.b16 %v387
    %v1440 = vunpack.c.l.b16 %v388
    %v1441 = vunpack.c.h.b16 %v388
    %v1442 = vunpack.c.l.b16 %v389
    %v1443 = vunpack.c.h.b16 %v389
    %v1444 = vunpack.c.l.b16 %v390
    %v1445 = vunpack.c.h.b16 %v390
    %v1446 = vunpack.c.l.b16 %v391
    %v1447 = vunpack.c.h.b16 %v391
    %v1448 = vunpack.c.l.b16 %v392
    %v1449 = vunpack.c.h.b16 %v392
    %v1450 = vunpack.c.l.b16 %v393
    %v1451 = vunpack.c.h.b16 %v393
    %v1452 = vunpack.c.l.b16 %v394
    %v1453 = vunpack.c.h.b16 %v394
    %v1454 = vunpack.c.l.b16 %v395
    %v1455 = vunpack.c.h.b16 %v395
    %v1456 = vunpack.c.l.b16 %v396
    %v1457 = vunpack.c.h.b16 %v396
    %v1458 = vunpack.c.l.b16 %v397
    %v1459 = vunpack.c.h.b16 %v397
    %v1460 = vunpack.c.l.b16 %v398
    %v1461 = vunpack.c.h.b16 %v398
    %v1462 = vunpack.c.l.b16 %v399
    %v1463 = vunpack.c.h.b16 %v399
    %v1464 = vunpack.c.l.b16 %v400
    %v1465 = vunpack.c.h.b16 %v400
    %v1466 = vunpack.c.l.b16 %v401
    %v1467 = vunpack.c.h.b16 %v401
    %v1468 = vunpack.c.l.b16 %v402
    %v1469 = vunpack.c.h.b16 %v402
    %v1470 = vunpack.c.l.b16 %v403
    %v1471 = vunpack.c.h.b16 %v403
    %v1472 = vunpack.c.l.b16 %v404
    %v1473 = vunpack.c.h.b16 %v404
    %v1474 = vunpack.c.l.b16 %v405
    %v1475 = vunpack.c.h.b16 %v405
    %v1476 = vunpack.c.l.b16 %v406
    %v1477 = vunpack.c.h.b16 %v406
    %v1478 = vunpack.c.l.b16 %v407
    %v1479 = vunpack.c.h.b16 %v407
    %v1480 = vunpack.c.l.b16 %v408
    %v1481 = vunpack.c.h.b16 %v408
    %v1482 = vunpack.c.l.b16 %v409
    %v1483 = vunpack.c.h.b16 %v409
    %v1484 = vunpack.c.l.b16 %v410
    %v1485 = vunpack.c.h.b16 %v410
    %v1486 = vunpack.c.l.b16 %v411
    %v1487 = vunpack.c.h.b16 %v411
    %v1488 = vunpack.c.l.b16 %v412
    %v1489 = vunpack.c.h.b16 %v412
    %v1490 = vunpack.c.l.b16 %v413
    %v1491 = vunpack.c.h.b16 %v413
    %v1492 = vunpack.c.l.b16 %v414
    %v1493 = vunpack.c.h.b16 %v414
    %v1494 = vunpack.c.l.b16 %v415
    %v1495 = vunpack.c.h.b16 %v415
    %v1496 = vunpack.c.l.b16 %v416
    %v1497 = vunpack.c.h.b16 %v416
    %v1498 = vunpack.c.l.b16 %v417
    %v1499 = vunpack.c.h.b16 %v417
    %v1500 = vunpack.c.l.b16 %v418
    %v1501 = vunpack.c.h.b16 %v418
    %v1502 = vunpack.c.l.b16 %v419
    %v1503 = vunpack.c.h.b16 %v419
    %v1504 = vunpack.c.l.b16 %v420
    %v1505 = vunpack.c.h.b16 %v420
    %v1506 = vunpack.c.l.b16 %v421
    %v1507 = vunpack.c.h.b16 %v421
    %v1508 = vunpack.c.l.b16 %v422
    %v1509 = vunpack.c.h.b16 %v422
    %v1510 = vunpack.c.l.b16 %v423
    %v1511 = vunpack.c.h.b16 %v423
    %v1512 = vunpack.c.l.b16 %v424
    %v1513 = vunpack.c.h.b16 %v424
    %v1514 = vunpack.c.l.b16 %v425
    %v1515 = vunpack.c.h.b16 %v425
    %v1516 = vunpack.c.l.b16 %v426
    %v1517 = vunpack.c.h.b16 %v426
    %v1518 = vunpack.c.l.b16 %v427
    %v1519 = vunpack.c.h.b16 %v427
    %v1520 = vunpack.c.l.b16 %v428
    %v1521 = vunpack.c.h.b16 %v428
    %v1522 = vunpack.c.l.b16 %v429
    %v1523 = vunpack.c.h.b16 %v429
    %v1524 = vunpack.c.l.b16 %v430
    %v1525 = vunpack.c.h.b16 %v430
    %v1526 = vunpack.c.l.b16 %v431
    %v1527 = vunpack.c.h.b16 %v431
    %v1528 = vunpack.c.l.b16 %v432
    %v1529 = vunpack.c.h.b16 %v432
    %v1530 = vunpack.c.l.b16 %v433
    %v1531 = vunpack.c.h.b16 %v433
    %v1532 = vunpack.c.l.b16 %v434
    %v1533 = vunpack.c.h.b16 %v434
    %v1534 = vunpack.c.l.b16 %v435
    %v1535 = vunpack.c.h.b16 %v435
    %v1536 = vunpack.c.l.b16 %v436
    %v1537 = vunpack.c.h.b16 %v436
    %v1538 = vunpack.c.l.b16 %v437
    %v1539 = vunpack.c.h.b16 %v437
    %v1540 = vunpack.c.l.b16 %v438
    %v1541 = vunpack.c.h.b16 %v438
    %v1542 = vunpack.c.l.b16 %v439
    %v1543 = vunpack.c.h.b16 %v439
    %v1544 = vunpack.c.l.b16 %v440
    %v1545 = vunpack.c.h.b16 %v440
    %v1546 = vunpack.c.l.b16 %v441
    %v1547 = vunpack.c.h.b16 %v441
    %v1548 = vunpack.c.l.b16 %v442
    %v1549 = vunpack.c.h.b16 %v442
    %v1550 = vunpack.c.l.b16 %v443
    %v1551 = vunpack.c.h.b16 %v443
    %v1552 = vunpack.c.l.b16 %v444
    %v1553 = vunpack.c.h.b16 %v444
    %v1554 = vunpack.c.l.b16 %v445
    %v1555 = vunpack.c.h.b16 %v445
    %v1556 = vunpack.c.l.b16 %v446
    %v1557 = vunpack.c.h.b16 %v446
    %v1558 = vunpack.c.l.b16 %v447
    %v1559 = vunpack.c.h.b16 %v447
    %v1560 = vunpack.c.l.b16 %v448
    %v1561 = vunpack.c.h.b16 %v448
    %v1562 = vunpack.c.l.b16 %v449
    %v1563 = vunpack.c.h.b16 %v449
    %v1564 = vunpack.c.l.b16 %v450
    %v1565 = vunpack.c.h.b16 %v450
    %v1566 = vunpack.c.l.b16 %v451
    %v1567 = vunpack.c.h.b16 %v451
    %v1568 = vunpack.c.l.b16 %v452
    %v1569 = vunpack.c.h.b16 %v452
    %v1570 = vunpack.c.l.b16 %v453
    %v1571 = vunpack.c.h.b16 %v453
    %v1572 = vunpack.c.l.b16 %v454
    %v1573 = vunpack.c.h.b16 %v454
    %v1574 = vunpack.c.l.b16 %v455
    %v1575 = vunpack.c.h.b16 %v455
    %v1576 = vunpack.c.l.b16 %v456
    %v1577 = vunpack.c.h.b16 %v456
    %v1578 = vunpack.c.l.b16 %v457
    %v1579 = vunpack.c.h.b16 %v457
    %v1580 = vunpack.c.l.b16 %v458
    %v1581 = vunpack.c.h.b16 %v458
    %v1582 = vunpack.c.l.b16 %v459
    %v1583 = vunpack.c.h.b16 %v459
    %v1584 = vunpack.c.l.b16 %v460
    %v1585 = vunpack.c.h.b16 %v460
    %v1586 = vunpack.c.l.b16 %v461
    %v1587 = vunpack.c.h.b16 %v461
    %v1588 = vunpack.c.l.b16 %v462
    %v1589 = vunpack.c.h.b16 %v462
    %v1590 = vunpack.c.l.b16 %v463
    %v1591 = vunpack.c.h.b16 %v463
    %v1592 = vunpack.c.l.b16 %v464
    %v1593 = vunpack.c.h.b16 %v464
    %v1594 = vunpack.c.l.b16 %v465
    %v1595 = vunpack.c.h.b16 %v465
    %v1596 = vunpack.c.l.b16 %v466
    %v1597 = vunpack.c.h.b16 %v466
    %v1598 = vunpack.c.l.b16 %v467
    %v1599 = vunpack.c.h.b16 %v467
    %v1600 = vunpack.c.l.b16 %v468
    %v1601 = vunpack.c.h.b16 %v468
    %v1602 = vunpack.c.l.b16 %v469
    %v1603 = vunpack.c.h.b16 %v469
    %v1604 = vunpack.c.l.b16 %v470
    %v1605 = vunpack.c.h.b16 %v470
    %v1606 = vunpack.c.l.b16 %v471
    %v1607 = vunpack.c.h.b16 %v471
    %v1608 = vunpack.c.l.b16 %v472
    %v1609 = vunpack.c.h.b16 %v472
    %v1610 = vunpack.c.l.b16 %v473
    %v1611 = vunpack.c.h.b16 %v473
    %v1612 = vunpack.c.l.b16 %v474
    %v1613 = vunpack.c.h.b16 %v474
    %v1614 = vunpack.c.l.b16 %v475
    %v1615 = vunpack.c.h.b16 %v475
    %v1616 = vunpack.c.l.b16 %v476
    %v1617 = vunpack.c.h.b16 %v476
    %v1618 = vunpack.c.l.b16 %v477
    %v1619 = vunpack.c.h.b16 %v477
    %v1620 = vunpack.c.l.b16 %v478
    %v1621 = vunpack.c.h.b16 %v478
    %v1622 = vunpack.c.l.b16 %v479
    %v1623 = vunpack.c.h.b16 %v479
    %v1624 = vunpack.c.l.b16 %v480
    %v1625 = vunpack.c.h.b16 %v480
    %v1626 = vunpack.c.l.b16 %v481
    %v1627 = vunpack.c.h.b16 %v481
    %v1628 = vunpack.c.l.b16 %v482
    %v1629 = vunpack.c.h.b16 %v482
    %v1630 = vunpack.c.l.b16 %v483
    %v1631 = vunpack.c.h.b16 %v483
    %v1632 = vunpack.c.l.b16 %v484
    %v1633 = vunpack.c.h.b16 %v484
    %v1634 = vunpack.c.l.b16 %v485
    %v1635 = vunpack.c.h.b16 %v485
    %v1636 = vunpack.c.l.b16 %v486
    %v1637 = vunpack.c.h.b16 %v486
    %v1638 = vunpack.c.l.b16 %v487
    %v1639 = vunpack.c.h.b16 %v487
    %v1640 = vunpack.c.l.b16 %v488
    %v1641 = vunpack.c.h.b16 %v488
    %v1642 = vunpack.c.l.b16 %v489
    %v1643 = vunpack.c.h.b16 %v489
    %v1644 = vunpack.c.l.b16 %v490
    %v1645 = vunpack.c.h.b16 %v490
    %v1646 = vunpack.c.l.b16 %v491
    %v1647 = vunpack.c.h.b16 %v491
    %v1648 = vunpack.c.l.b16 %v492
    %v1649 = vunpack.c.h.b16 %v492
    %v1650 = vunpack.c.l.b16 %v493
    %v1651 = vunpack.c.h.b16 %v493
    %v1652 = vunpack.c.l.b16 %v494
    %v1653 = vunpack.c.h.b16 %v494
    %v1654 = vunpack.c.l.b16 %v495
    %v1655 = vunpack.c.h.b16 %v495
    %v1656 = vunpack.c.l.b16 %v496
    %v1657 = vunpack.c.h.b16 %v496
    %v1658 = vunpack.c.l.b16 %v497
    %v1659 = vunpack.c.h.b16 %v497
    %v1660 = vunpack.c.l.b16 %v498
    %v1661 = vunpack.c.h.b16 %v498
    %v1662 = vunpack.c.l.b16 %v499
    %v1663 = vunpack.c.h.b16 %v499
    %v1664 = vunpack.c.l.b16 %v500
    %v1665 = vunpack.c.h.b16 %v500
    %v1666 = vunpack.c.l.b16 %v501
    %v1667 = vunpack.c.h.b16 %v501
    %v1668 = vunpack.c.l.b16 %v502
    %v1669 = vunpack.c.h.b16 %v502
    %v1670 = vunpack.c.l.b16 %v503
    %v1671 = vunpack.c.h.b16 %v503
    %v1672 = vunpack.c.l.b16 %v504
    %v1673 = vunpack.c.h.b16 %v504
    %v1674 = vunpack.c.l.b16 %v505
    %v1675 = vunpack.c.h.b16 %v505
    %v1676 = vunpack.c.l.b16 %v506
    %v1677 = vunpack.c.h.b16 %v506
    %v1678 = vunpack.c.l.b16 %v507
    %v1679 = vunpack.c.h.b16 %v507
    %v1680 = vunpack.c.l.b16 %v508
    %v1681 = vunpack.c.h.b16 %v508
    %v1682 = vunpack.c.l.b16 %v509
    %v1683 = vunpack.c.h.b16 %v509
    %v1684 = vunpack.c.l.b16 %v510
    %v1685 = vunpack.c.h.b16 %v510
    %v1686 = vunpack.c.l.b16 %v511
    %v1687 = vunpack.c.h.b16 %v511
    %v1688 = vunpack.c.l.b16 %v512
    %v1689 = vunpack.c.h.b16 %v512
    %v1690 = vunpack.c.l.b16 %v513
    %v1691 = vunpack.c.h.b16 %v513
    %v1692 = vunpack.c.l.b16 %v514
    %v1693 = vunpack.c.h.b16 %v514
    %v1694 = vunpack.c.l.b16 %v515
    %v1695 = vunpack.c.h.b16 %v515
    %v1696 = vunpack.c.l.b16 %v516
    %v1697 = vunpack.c.h.b16 %v516
    %v1698 = vunpack.c.l.b16 %v517
    %v1699 = vunpack.c.h.b16 %v517
    %v1700 = vunpack.c.l.b16 %v518
    %v1701 = vunpack.c.h.b16 %v518
    %v1702 = vunpack.c.l.b16 %v519
    %v1703 = vunpack.c.h.b16 %v519
    %v1704 = vunpack.c.l.b16 %v520
    %v1705 = vunpack.c.h.b16 %v520
    %v1706 = vunpack.c.l.b16 %v521
    %v1707 = vunpack.c.h.b16 %v521
    %v1708 = vunpack.c.l.b16 %v522
    %v1709 = vunpack.c.h.b16 %v522
    %v1710 = vunpack.c.l.b16 %v523
    %v1711 = vunpack.c.h.b16 %v523
    %v1712 = vunpack.c.l.b16 %v524
    %v1713 = vunpack.c.h.b16 %v524
    %v1714 = vunpack.c.l.b16 %v525
    %v1715 = vunpack.c.h.b16 %v525
    %v1716 = vunpack.c.l.b16 %v526
    %v1717 = vunpack.c.h.b16 %v526
    %v1718 = vunpack.c.l.b16 %v527
    %v1719 = vunpack.c.h.b16 %v527
    %v1720 = vunpack.c.l.b16 %v528
    %v1721 = vunpack.c.h.b16 %v528
    %v1722 = vunpack.c.l.b16 %v529
    %v1723 = vunpack.c.h.b16 %v529
    %v1724 = vpack.c.b16 %v964, %v956
    %v1725 = vpack.c.b16 %v965, %v957
    %v1726 = vpack.c.b16 %v966, %v958
    %v1727 = vpack.c.b16 %v967, %v959
    %v1728 = vpack.c.b16 %v968, %v960
    %v1729 = vpack.c.b16 %v969, %v961
    %v1730 = vpack.c.b16 %v970, %v962
    %v1731 = vpack.c.b16 %v971, %v963
    %v1732 = vpack.c.b16 %v980, %v972
    %v1733 = vpack.c.b16 %v981, %v973
    %v1734 = vpack.c.b16 %v982, %v974
    %v1735 = vpack.c.b16 %v983, %v975
    %v1736 = vpack.c.b16 %v984, %v976
    %v1737 = vpack.c.b16 %v985, %v977
    %v1738 = vpack.c.b16 %v986, %v978
    %v1739 = vpack.c.b16 %v987, %v979
    %v1740 = vpack.c.b16 %v996, %v988
    %v1741 = vpack.c.b16 %v997, %v989
    %v1742 = vpack.c.b16 %v998, %v990
    %v1743 = vpack.c.b16 %v999, %v991
    %v1744 = vpack.c.b16 %v1000, %v992
    %v1745 = vpack.c.b16 %v1001, %v993
    %v1746 = vpack.c.b16 %v1002, %v994
    %v1747 = vpack.c.b16 %v1003, %v995
    %v1748 = vpack.c.b16 %v1012, %v1004
    %v1749 = vpack.c.b16 %v1013, %v1005
    %v1750 = vpack.c.b16 %v1014, %v1006
    %v1751 = vpack.c.b16 %v1015, %v1007
    %v1752 = vpack.c.b16 %v1016, %v1008
    %v1753 = vpack.c.b16 %v1017, %v1009
    %v1754 = vpack.c.b16 %v1018, %v1010
    %v1755 = vpack.c.b16 %v1019, %v1011
    %v1756 = vpack.c.b16 %v1028, %v1020
    %v1757 = vpack.c.b16 %v1029, %v1021
    %v1758 = vpack.c.b16 %v1030, %v1022
    %v1759 = vpack.c.b16 %v1031, %v1023
    %v1760 = vpack.c.b16 %v1032, %v1024
    %v1761 = vpack.c.b16 %v1033, %v1025
    %v1762 = vpack.c.b16 %v1034, %v1026
    %v1763 = vpack.c.b16 %v1035, %v1027
    %v1764 = vpack.c.b16 %v1044, %v1036
    %v1765 = vpack.c.b16 %v1045, %v1037
    %v1766 = vpack.c.b16 %v1046, %v1038
    %v1767 = vpack.c.b16 %v1047, %v1039
    %v1768 = vpack.c.b16 %v1048, %v1040
    %v1769 = vpack.c.b16 %v1049, %v1041
    %v1770 = vpack.c.b16 %v1050, %v1042
    %v1771 = vpack.c.b16 %v1051, %v1043
    %v1772 = vpack.c.b16 %v1060, %v1052
    %v1773 = vpack.c.b16 %v1061, %v1053
    %v1774 = vpack.c.b16 %v1062, %v1054
    %v1775 = vpack.c.b16 %v1063, %v1055
    %v1776 = vpack.c.b16 %v1064, %v1056
    %v1777 = vpack.c.b16 %v1065, %v1057
    %v1778 = vpack.c.b16 %v1066, %v1058
    %v1779 = vpack.c.b16 %v1067, %v1059
    %v1780 = vpack.c.b16 %v1076, %v1068
    %v1781 = vpack.c.b16 %v1077, %v1069
    %v1782 = vpack.c.b16 %v1078, %v1070
    %v1783 = vpack.c.b16 %v1079, %v1071
    %v1784 = vpack.c.b16 %v1080, %v1072
    %v1785 = vpack.c.b16 %v1081, %v1073
    %v1786 = vpack.c.b16 %v1082, %v1074
    %v1787 = vpack.c.b16 %v1083, %v1075
    %v1788 = vpack.c.b16 %v1092, %v1084
    %v1789 = vpack.c.b16 %v1093, %v1085
    %v1790 = vpack.c.b16 %v1094, %v1086
    %v1791 = vpack.c.b16 %v1095, %v1087
    %v1792 = vpack.c.b16 %v1096, %v1088
    %v1793 = vpack.c.b16 %v1097, %v1089
    %v1794 = vpack.c.b16 %v1098, %v1090
    %v1795 = vpack.c.b16 %v1099, %v1091
    %v1796 = vpack.c.b16 %v1108, %v1100
    %v1797 = vpack.c.b16 %v1109, %v1101
    %v1798 = vpack.c.b16 %v1110, %v1102
    %v1799 = vpack.c.b16 %v1111, %v1103
    %v1800 = vpack.c.b16 %v1112, %v1104
    %v1801 = vpack.c.b16 %v1113, %v1105
    %v1802 = vpack.c.b16 %v1114, %v1106
    %v1803 = vpack.c.b16 %v1115, %v1107
    %v1804 = vpack.c.b16 %v1124, %v1116
    %v1805 = vpack.c.b16 %v1125, %v1117
    %v1806 = vpack.c.b16 %v1126, %v1118
    %v1807 = vpack.c.b16 %v1127, %v1119
    %v1808 = vpack.c.b16 %v1128, %v1120
    %v1809 = vpack.c.b16 %v1129, %v1121
    %v1810 = vpack.c.b16 %v1130, %v1122
    %v1811 = vpack.c.b16 %v1131, %v1123
    %v1812 = vpack.c.b16 %v1140, %v1132
    %v1813 = vpack.c.b16 %v1141, %v1133
    %v1814 = vpack.c.b16 %v1142, %v1134
    %v1815 = vpack.c.b16 %v1143, %v1135
    %v1816 = vpack.c.b16 %v1144, %v1136
    %v1817 = vpack.c.b16 %v1145, %v1137
    %v1818 = vpack.c.b16 %v1146, %v1138
    %v1819 = vpack.c.b16 %v1147, %v1139
    %v1820 = vpack.c.b16 %v1156, %v1148
    %v1821 = vpack.c.b16 %v1157, %v1149
    %v1822 = vpack.c.b16 %v1158, %v1150
    %v1823 = vpack.c.b16 %v1159, %v1151
    %v1824 = vpack.c.b16 %v1160, %v1152
    %v1825 = vpack.c.b16 %v1161, %v1153
    %v1826 = vpack.c.b16 %v1162, %v1154
    %v1827 = vpack.c.b16 %v1163, %v1155
    %v1828 = vpack.c.b16 %v1172, %v1164
    %v1829 = vpack.c.b16 %v1173, %v1165
    %v1830 = vpack.c.b16 %v1174, %v1166
    %v1831 = vpack.c.b16 %v1175, %v1167
    %v1832 = vpack.c.b16 %v1176, %v1168
    %v1833 = vpack.c.b16 %v1177, %v1169
    %v1834 = vpack.c.b16 %v1178, %v1170
    %v1835 = vpack.c.b16 %v1179, %v1171
    %v1836 = vpack.c.b16 %v1188, %v1180
    %v1837 = vpack.c.b16 %v1189, %v1181
    %v1838 = vpack.c.b16 %v1190, %v1182
    %v1839 = vpack.c.b16 %v1191, %v1183
    %v1840 = vpack.c.b16 %v1192, %v1184
    %v1841 = vpack.c.b16 %v1193, %v1185
    %v1842 = vpack.c.b16 %v1194, %v1186
    %v1843 = vpack.c.b16 %v1195, %v1187
    %v1844 = vpack.c.b16 %v1204, %v1196
    %v1845 = vpack.c.b16 %v1205, %v1197
    %v1846 = vpack.c.b16 %v1206, %v1198
    %v1847 = vpack.c.b16 %v1207, %v1199
    %v1848 = vpack.c.b16 %v1208, %v1200
    %v1849 = vpack.c.b16 %v1209, %v1201
    %v1850 = vpack.c.b16 %v1210, %v1202
    %v1851 = vpack.c.b16 %v1211, %v1203
    %v1852 = vpack.c.b16 %v1220, %v1212
    %v1853 = vpack.c.b16 %v1221, %v1213
    %v1854 = vpack.c.b16 %v1222, %v1214
    %v1855 = vpack.c.b16 %v1223, %v1215
    %v1856 = vpack.c.b16 %v1224, %v1216
    %v1857 = vpack.c.b16 %v1225, %v1217
    %v1858 = vpack.c.b16 %v1226, %v1218
    %v1859 = vpack.c.b16 %v1227, %v1219
    %v1860 = vpack.c.b16 %v1236, %v1228
    %v1861 = vpack.c.b16 %v1237, %v1229
    %v1862 = vpack.c.b16 %v1238, %v1230
    %v1863 = vpack.c.b16 %v1239, %v1231
    %v1864 = vpack.c.b16 %v1240, %v1232
    %v1865 = vpack.c.b16 %v1241, %v1233
    %v1866 = vpack.c.b16 %v1242, %v1234
    %v1867 = vpack.c.b16 %v1243, %v1235
    %v1868 = vpack.c.b16 %v1252, %v1244
    %v1869 = vpack.c.b16 %v1253, %v1245
    %v1870 = vpack.c.b16 %v1254, %v1246
    %v1871 = vpack.c.b16 %v1255, %v1247
    %v1872 = vpack.c.b16 %v1256, %v1248
    %v1873 = vpack.c.b16 %v1257, %v1249
    %v1874 = vpack.c.b16 %v1258, %v1250
    %v1875 = vpack.c.b16 %v1259, %v1251
    %v1876 = vpack.c.b16 %v1268, %v1260
    %v1877 = vpack.c.b16 %v1269, %v1261
    %v1878 = vpack.c.b16 %v1270, %v1262
    %v1879 = vpack.c.b16 %v1271, %v1263
    %v1880 = vpack.c.b16 %v1272, %v1264
    %v1881 = vpack.c.b16 %v1273, %v1265
    %v1882 = vpack.c.b16 %v1274, %v1266
    %v1883 = vpack.c.b16 %v1275, %v1267
    %v1884 = vpack.c.b16 %v1284, %v1276
    %v1885 = vpack.c.b16 %v1285, %v1277
    %v1886 = vpack.c.b16 %v1286, %v1278
    %v1887 = vpack.c.b16 %v1287, %v1279
    %v1888 = vpack.c.b16 %v1288, %v1280
    %v1889 = vpack.c.b16 %v1289, %v1281
    %v1890 = vpack.c.b16 %v1290, %v1282
    %v1891 = vpack.c.b16 %v1291, %v1283
    %v1892 = vpack.c.b16 %v1300, %v1292
    %v1893 = vpack.c.b16 %v1301, %v1293
    %v1894 = vpack.c.b16 %v1302, %v1294
    %v1895 = vpack.c.b16 %v1303, %v1295
    %v1896 = vpack.c.b16 %v1304, %v1296
    %v1897 = vpack.c.b16 %v1305, %v1297
    %v1898 = vpack.c.b16 %v1306, %v1298
    %v1899 = vpack.c.b16 %v1307, %v1299
    %v1900 = vpack.c.b16 %v1316, %v1308
    %v1901 = vpack.c.b16 %v1317, %v1309
    %v1902 = vpack.c.b16 %v1318, %v1310
    %v1903 = vpack.c.b16 %v1319, %v1311
    %v1904 = vpack.c.b16 %v1320, %v1312
    %v1905 = vpack.c.b16 %v1321, %v1313
    %v1906 = vpack.c.b16 %v1322, %v1314
    %v1907 = vpack.c.b16 %v1323, %v1315
    %v1908 = vpack.c.b16 %v1332, %v1324
    %v1909 = vpack.c.b16 %v1333, %v1325
    %v1910 = vpack.c.b16 %v1334, %v1326
    %v1911 = vpack.c.b16 %v1335, %v1327
    %v1912 = vpack.c.b16 %v1336, %v1328
    %v1913 = vpack.c.b16 %v1337, %v1329
    %v1914 = vpack.c.b16 %v1338, %v1330
    %v1915 = vpack.c.b16 %v1339, %v1331
    %v1916 = vpack.c.b16 %v1348, %v1340
    %v1917 = vpack.c.b16 %v1349, %v1341
    %v1918 = vpack.c.b16 %v1350, %v1342
    %v1919 = vpack.c.b16 %v1351, %v1343
    %v1920 = vpack.c.b16 %v1352, %v1344
    %v1921 = vpack.c.b16 %v1353, %v1345
    %v1922 = vpack.c.b16 %v1354, %v1346
    %v1923 = vpack.c.b16 %v1355, %v1347
    %v1924 = vpack.c.b16 %v1364, %v1356
    %v1925 = vpack.c.b16 %v1365, %v1357
    %v1926 = vpack.c.b16 %v1366, %v1358
    %v1927 = vpack.c.b16 %v1367, %v1359
    %v1928 = vpack.c.b16 %v1368, %v1360
    %v1929 = vpack.c.b16 %v1369, %v1361
    %v1930 = vpack.c.b16 %v1370, %v1362
    %v1931 = vpack.c.b16 %v1371, %v1363
    %v1932 = vpack.c.b16 %v1380, %v1372
    %v1933 = vpack.c.b16 %v1381, %v1373
    %v1934 = vpack.c.b16 %v1382, %v1374
    %v1935 = vpack.c.b16 %v1383, %v1375
    %v1936 = vpack.c.b16 %v1384, %v1376
    %v1937 = vpack.c.b16 %v1385, %v1377
    %v1938 = vpack.c.b16 %v1386, %v1378
    %v1939 = vpack.c.b16 %v1387, %v1379
    %v1940 = vpack.c.b16 %v1396, %v1388
    %v1941 = vpack.c.b16 %v1397, %v1389
    %v1942 = vpack.c.b16 %v1398, %v1390
    %v1943 = vpack.c.b16 %v1399, %v1391
    %v1944 = vpack.c.b16 %v1400, %v1392
    %v1945 = vpack.c.b16 %v1401, %v1393
    %v1946 = vpack.c.b16 %v1402, %v1394
    %v1947 = vpack.c.b16 %v1403, %v1395
    %v1948 = vpack.c.b16 %v1412, %v1404
    %v1949 = vpack.c.b16 %v1413, %v1405
    %v1950 = vpack.c.b16 %v1414, %v1406
    %v1951 = vpack.c.b16 %v1415, %v1407
    %v1952 = vpack.c.b16 %v1416, %v1408
    %v1953 = vpack.c.b16 %v1417, %v1409
    %v1954 = vpack.c.b16 %v1418, %v1410
    %v1955 = vpack.c.b16 %v1419, %v1411
    %v1956 = vpack.c.b16 %v1428, %v1420
    %v1957 = vpack.c.b16 %v1429, %v1421
    %v1958 = vpack.c.b16 %v1430, %v1422
    %v1959 = vpack.c.b16 %v1431, %v1423
    %v1960 = vpack.c.b16 %v1432, %v1424
    %v1961 = vpack.c.b16 %v1433, %v1425
    %v1962 = vpack.c.b16 %v1434, %v1426
    %v1963 = vpack.c.b16 %v1435, %v1427
    %v1964 = vpack.c.b16 %v1444, %v1436
    %v1965 = vpack.c.b16 %v1445, %v1437
    %v1966 = vpack.c.b16 %v1446, %v1438
    %v1967 = vpack.c.b16 %v1447, %v1439
    %v1968 = vpack.c.b16 %v1448, %v1440
    %v1969 = vpack.c.b16 %v1449, %v1441
    %v1970 = vpack.c.b16 %v1450, %v1442
    %v1971 = vpack.c.b16 %v1451, %v1443
    %v1972 = vpack.c.b16 %v1460, %v1452
    %v1973 = vpack.c.b16 %v1461, %v1453
    %v1974 = vpack.c.b16 %v1462, %v1454
    %v1975 = vpack.c.b16 %v1463, %v1455
    %v1976 = vpack.c.b16 %v1464, %v1456
    %v1977 = vpack.c.b16 %v1465, %v1457
    %v1978 = vpack.c.b16 %v1466, %v1458
    %v1979 = vpack.c.b16 %v1467, %v1459
    %v1980 = vpack.c.b16 %v1476, %v1468
    %v1981 = vpack.c.b16 %v1477, %v1469
    %v1982 = vpack.c.b16 %v1478, %v1470
    %v1983 = vpack.c.b16 %v1479, %v1471
    %v1984 = vpack.c.b16 %v1480, %v1472
    %v1985 = vpack.c.b16 %v1481, %v1473
    %v1986 = vpack.c.b16 %v1482, %v1474
    %v1987 = vpack.c.b16 %v1483, %v1475
    %v1988 = vpack.c.b16 %v1492, %v1484
    %v1989 = vpack.c.b16 %v1493, %v1485
    %v1990 = vpack.c.b16 %v1494, %v1486
    %v1991 = vpack.c.b16 %v1495, %v1487
    %v1992 = vpack.c.b16 %v1496, %v1488
    %v1993 = vpack.c.b16 %v1497, %v1489
    %v1994 = vpack.c.b16 %v1498, %v1490
    %v1995 = vpack.c.b16 %v1499, %v1491
    %v1996 = vpack.c.b16 %v1508, %v1500
    %v1997 = vpack.c.b16 %v1509, %v1501
    %v1998 = vpack.c.b16 %v1510, %v1502
    %v1999 = vpack.c.b16 %v1511, %v1503
    %v2000 = vpack.c.b16 %v1512, %v1504
    %v2001 = vpack.c.b16 %v1513, %v1505
    %v2002 = vpack.c.b16 %v1514, %v1506
    %v2003 = vpack.c.b16 %v1515, %v1507
    %v2004 = vpack.c.b16 %v1524, %v1516
    %v2005 = vpack.c.b16 %v1525, %v1517
    %v2006 = vpack.c.b16 %v1526, %v1518
    %v2007 = vpack.c.b16 %v1527, %v1519
    %v2008 = vpack.c.b16 %v1528, %v1520
    %v2009 = vpack.c.b16 %v1529, %v1521
    %v2010 = vpack.c.b16 %v1530, %v1522
    %v2011 = vpack.c.b16 %v1531, %v1523
    %v2012 = vpack.c.b16 %v1540, %v1532
    %v2013 = vpack.c.b16 %v1541, %v1533
    %v2014 = vpack.c.b16 %v1542, %v1534
    %v2015 = vpack.c.b16 %v1543, %v1535
    %v2016 = vpack.c.b16 %v1544, %v1536
    %v2017 = vpack.c.b16 %v1545, %v1537
    %v2018 = vpack.c.b16 %v1546, %v1538
    %v2019 = vpack.c.b16 %v1547, %v1539
    %v2020 = vpack.c.b16 %v1556, %v1548
    %v2021 = vpack.c.b16 %v1557, %v1549
    %v2022 = vpack.c.b16 %v1558, %v1550
    %v2023 = vpack.c.b16 %v1559, %v1551
    %v2024 = vpack.c.b16 %v1560, %v1552
    %v2025 = vpack.c.b16 %v1561, %v1553
    %v2026 = vpack.c.b16 %v1562, %v1554
    %v2027 = vpack.c.b16 %v1563, %v1555
    %v2028 = vpack.c.b16 %v1572, %v1564
    %v2029 = vpack.c.b16 %v1573, %v1565
    %v2030 = vpack.c.b16 %v1574, %v1566
    %v2031 = vpack.c.b16 %v1575, %v1567
    %v2032 = vpack.c.b16 %v1576, %v1568
    %v2033 = vpack.c.b16 %v1577, %v1569
    %v2034 = vpack.c.b16 %v1578, %v1570
    %v2035 = vpack.c.b16 %v1579, %v1571
    %v2036 = vpack.c.b16 %v1588, %v1580
    %v2037 = vpack.c.b16 %v1589, %v1581
    %v2038 = vpack.c.b16 %v1590, %v1582
    %v2039 = vpack.c.b16 %v1591, %v1583
    %v2040 = vpack.c.b16 %v1592, %v1584
    %v2041 = vpack.c.b16 %v1593, %v1585
    %v2042 = vpack.c.b16 %v1594, %v1586
    %v2043 = vpack.c.b16 %v1595, %v1587
    %v2044 = vpack.c.b16 %v1604, %v1596
    %v2045 = vpack.c.b16 %v1605, %v1597
    %v2046 = vpack.c.b16 %v1606, %v1598
    %v2047 = vpack.c.b16 %v1607, %v1599
    %v2048 = vpack.c.b16 %v1608, %v1600
    %v2049 = vpack.c.b16 %v1609, %v1601
    %v2050 = vpack.c.b16 %v1610, %v1602
    %v2051 = vpack.c.b16 %v1611, %v1603
    %v2052 = vpack.c.b16 %v1620, %v1612
    %v2053 = vpack.c.b16 %v1621, %v1613
    %v2054 = vpack.c.b16 %v1622, %v1614
    %v2055 = vpack.c.b16 %v1623, %v1615
    %v2056 = vpack.c.b16 %v1624, %v1616
    %v2057 = vpack.c.b16 %v1625, %v1617
    %v2058 = vpack.c.b16 %v1626, %v1618
    %v2059 = vpack.c.b16 %v1627, %v1619
    %v2060 = vpack.c.b16 %v1636, %v1628
    %v2061 = vpack.c.b16 %v1637, %v1629
    %v2062 = vpack.c.b16 %v1638, %v1630
    %v2063 = vpack.c.b16 %v1639, %v1631
    %v2064 = vpack.c.b16 %v1640, %v1632
    %v2065 = vpack.c.b16 %v1641, %v1633
    %v2066 = vpack.c.b16 %v1642, %v1634
    %v2067 = vpack.c.b16 %v1643, %v1635
    %v2068 = vpack.c.b16 %v1652, %v1644
    %v2069 = vpack.c.b16 %v1653, %v1645
    %v2070 = vpack.c.b16 %v1654, %v1646
    %v2071 = vpack.c.b16 %v1655, %v1647
    %v2072 = vpack.c.b16 %v1656, %v1648
    %v2073 = vpack.c.b16 %v1657, %v1649
    %v2074 = vpack.c.b16 %v1658, %v1650
    %v2075 = vpack.c.b16 %v1659, %v1651
    %v2076 = vpack.c.b16 %v1668, %v1660
    %v2077 = vpack.c.b16 %v1669, %v1661
    %v2078 = vpack.c.b16 %v1670, %v1662
    %v2079 = vpack.c.b16 %v1671, %v1663
    %v2080 = vpack.c.b16 %v1672, %v1664
    %v2081 = vpack.c.b16 %v1673, %v1665
    %v2082 = vpack.c.b16 %v1674, %v1666
    %v2083 = vpack.c.b16 %v1675, %v1667
    %v2084 = vpack.c.b16 %v1684, %v1676
    %v2085 = vpack.c.b16 %v1685, %v1677
    %v2086 = vpack.c.b16 %v1686, %v1678
    %v2087 = vpack.c.b16 %v1687, %v1679
    %v2088 = vpack.c.b16 %v1688, %v1680
    %v2089 = vpack.c.b16 %v1689, %v1681
    %v2090 = vpack.c.b16 %v1690, %v1682
    %v2091 = vpack.c.b16 %v1691, %v1683
    %v2092 = vpack.c.b16 %v1700, %v1692
    %v2093 = vpack.c.b16 %v1701, %v1693
    %v2094 = vpack.c.b16 %v1702, %v1694
    %v2095 = vpack.c.b16 %v1703, %v1695
    %v2096 = vpack.c.b16 %v1704, %v1696
    %v2097 = vpack.c.b16 %v1705, %v1697
    %v2098 = vpack.c.b16 %v1706, %v1698
    %v2099 = vpack.c.b16 %v1707, %v1699
    %v2100 = vpack.c.b16 %v1716, %v1708
    %v2101 = vpack.c.b16 %v1717, %v1709
    %v2102 = vpack.c.b16 %v1718, %v1710
    %v2103 = vpack.c.b16 %v1719, %v1711
    %v2104 = vpack.c.b16 %v1720, %v1712
    %v2105 = vpack.c.b16 %v1721, %v1713
    %v2106 = vpack.c.b16 %v1722, %v1714
    %v2107 = vpack.c.b16 %v1723, %v1715
    %2492 = vmatprep.subr.bf16.mxu0 %v1725
    %2493 = vmatpush1.bf16.msra.mxu0 %v1724
    %2494 = vmatprep.subr.bf16.mxu0 %v1733
    %2495 = vmatpush1.bf16.msra.mxu0 %v1732
    %2496 = vmatprep.subr.bf16.mxu0 %v1741
    %2497 = vmatpush1.bf16.msra.mxu0 %v1740
    %2498 = vmatprep.subr.bf16.mxu0 %v1749
    %2499 = vmatpush1.bf16.msra.mxu0 %v1748
    %2500 = vmatprep.subr.bf16.mxu0 %v1757
    %2501 = vmatpush1.bf16.msra.mxu0 %v1756
    %2502 = vmatprep.subr.bf16.mxu0 %v1765
    %2503 = vmatpush1.bf16.msra.mxu0 %v1764
    %2504 = vmatprep.subr.bf16.mxu0 %v1773
    %2505 = vmatpush1.bf16.msra.mxu0 %v1772
    %2506 = vmatprep.subr.bf16.mxu0 %v1781
    %2507 = vmatpush1.bf16.msra.mxu0 %v1780
    %2508 = vmatprep.subr.bf16.mxu0 %v1789
    %2509 = vmatpush1.bf16.msra.mxu0 %v1788
    %2510 = vmatprep.subr.bf16.mxu0 %v1797
    %2511 = vmatpush1.bf16.msra.mxu0 %v1796
    %2512 = vmatprep.subr.bf16.mxu0 %v1805
    %2513 = vmatpush1.bf16.msra.mxu0 %v1804
    %2514 = vmatprep.subr.bf16.mxu0 %v1813
    %2515 = vmatpush1.bf16.msra.mxu0 %v1812
    %2516 = vmatprep.subr.bf16.mxu0 %v1821
    %2517 = vmatpush1.bf16.msra.mxu0 %v1820
    %2518 = vmatprep.subr.bf16.mxu0 %v1829
    %2519 = vmatpush1.bf16.msra.mxu0 %v1828
    %2520 = vmatprep.subr.bf16.mxu0 %v1837
    %2521 = vmatpush1.bf16.msra.mxu0 %v1836
    %2522 = vmatprep.subr.bf16.mxu0 %v1845
    %2523 = vmatpush1.bf16.msra.mxu0 %v1844
    %2524 = vmatprep.mubr.bf16.mxu0 %v135
    %2525 = vmatmul.mubr.bf16.gmra.mrb[0].mxu0 %v134
    %v2526 = vpop.f32.mrb[0].mxu0
    %v2527 = vadd.f32 %v535, %v2526
    %v2528 = vpop.f32.mrb[0].mxu0
    %v2529 = vadd.f32 %v539, %v2528
    %v2530 = vpop.f32.mrb[0].mxu0
    %v2531 = vadd.f32 %v535, %v2530
    %v2532 = vpop.f32.mrb[0].mxu0
    %v2533 = vadd.f32 %v539, %v2532
    %2534 = vdwg.mxu0
    %2535 = vmatprep.subr.bf16.mxu0 %v1853
    %2536 = vmatpush1.bf16.msra.mxu0 %v1852
    %2537 = vmatprep.subr.bf16.mxu0 %v1861
    %2538 = vmatpush1.bf16.msra.mxu0 %v1860
    %2539 = vmatprep.subr.bf16.mxu0 %v1869
    %2540 = vmatpush1.bf16.msra.mxu0 %v1868
    %2541 = vmatprep.subr.bf16.mxu0 %v1877
    %2542 = vmatpush1.bf16.msra.mxu0 %v1876
    %2543 = vmatprep.subr.bf16.mxu0 %v1885
    %2544 = vmatpush1.bf16.msra.mxu0 %v1884
    %2545 = vmatprep.subr.bf16.mxu0 %v1893
    %2546 = vmatpush1.bf16.msra.mxu0 %v1892
    %2547 = vmatprep.subr.bf16.mxu0 %v1901
    %2548 = vmatpush1.bf16.msra.mxu0 %v1900
    %2549 = vmatprep.subr.bf16.mxu0 %v1909
    %2550 = vmatpush1.bf16.msra.mxu0 %v1908
    %2551 = vmatprep.subr.bf16.mxu0 %v1917
    %2552 = vmatpush1.bf16.msra.mxu0 %v1916
    %2553 = vmatprep.subr.bf16.mxu0 %v1925
    %2554 = vmatpush1.bf16.msra.mxu0 %v1924
    %2555 = vmatprep.subr.bf16.mxu0 %v1933
    %2556 = vmatpush1.bf16.msra.mxu0 %v1932
    %2557 = vmatprep.subr.bf16.mxu0 %v1941
    %2558 = vmatpush1.bf16.msra.mxu0 %v1940
    %2559 = vmatprep.subr.bf16.mxu0 %v1949
    %2560 = vmatpush1.bf16.msra.mxu0 %v1948
    %2561 = vmatprep.subr.bf16.mxu0 %v1957
    %2562 = vmatpush1.bf16.msra.mxu0 %v1956
    %2563 = vmatprep.subr.bf16.mxu0 %v1965
    %2564 = vmatpush1.bf16.msra.mxu0 %v1964
    %2565 = vmatprep.subr.bf16.mxu0 %v1973
    %2566 = vmatpush1.bf16.msra.mxu0 %v1972
    %2567 = vmatprep.mubr.bf16.mxu0 %v137
    %2568 = vmatmul.mubr.bf16.gmra.mrb[0].mxu0 %v136
    %v2569 = vpop.f32.mrb[0].mxu0
    %v2570 = vadd.f32 %v2527, %v2569
    %v2571 = vpop.f32.mrb[0].mxu0
    %v2572 = vadd.f32 %v2529, %v2571
    %v2573 = vpop.f32.mrb[0].mxu0
    %v2574 = vadd.f32 %v2531, %v2573
    %v2575 = vpop.f32.mrb[0].mxu0
    %v2576 = vadd.f32 %v2533, %v2575
    %2577 = vdwg.mxu0
    %2578 = vmatprep.subr.bf16.mxu0 %v1981
    %2579 = vmatpush1.bf16.msra.mxu0 %v1980
    %2580 = vmatprep.subr.bf16.mxu0 %v1989
    %2581 = vmatpush1.bf16.msra.mxu0 %v1988
    %2582 = vmatprep.subr.bf16.mxu0 %v1997
    %2583 = vmatpush1.bf16.msra.mxu0 %v1996
    %2584 = vmatprep.subr.bf16.mxu0 %v2005
    %2585 = vmatpush1.bf16.msra.mxu0 %v2004
    %2586 = vmatprep.subr.bf16.mxu0 %v2013
    %2587 = vmatpush1.bf16.msra.mxu0 %v2012
    %2588 = vmatprep.subr.bf16.mxu0 %v2021
    %2589 = vmatpush1.bf16.msra.mxu0 %v2020
    %2590 = vmatprep.subr.bf16.mxu0 %v2029
    %2591 = vmatpush1.bf16.msra.mxu0 %v2028
    %2592 = vmatprep.subr.bf16.mxu0 %v2037
    %2593 = vmatpush1.bf16.msra.mxu0 %v2036
    %2594 = vmatprep.subr.bf16.mxu0 %v2045
    %2595 = vmatpush1.bf16.msra.mxu0 %v2044
    %2596 = vmatprep.subr.bf16.mxu0 %v2053
    %2597 = vmatpush1.bf16.msra.mxu0 %v2052
    %2598 = vmatprep.subr.bf16.mxu0 %v2061
    %2599 = vmatpush1.bf16.msra.mxu0 %v2060
    %2600 = vmatprep.subr.bf16.mxu0 %v2069
    %2601 = vmatpush1.bf16.msra.mxu0 %v2068
    %2602 = vmatprep.subr.bf16.mxu0 %v2077
    %2603 = vmatpush1.bf16.msra.mxu0 %v2076
    %2604 = vmatprep.subr.bf16.mxu0 %v2085
    %2605 = vmatpush1.bf16.msra.mxu0 %v2084
    %2606 = vmatprep.subr.bf16.mxu0 %v2093
    %2607 = vmatpush1.bf16.msra.mxu0 %v2092
    %2608 = vmatprep.subr.bf16.mxu0 %v2101
    %2609 = vmatpush1.bf16.msra.mxu0 %v2100
    %2610 = vmatprep.mubr.bf16.mxu0 %v139
    %2611 = vmatmul.mubr.bf16.gmra.mrb[0].mxu0 %v138
    %v2612 = vpop.f32.mrb[0].mxu0
    %v2613 = vadd.f32 %v2570, %v2612
    %v2614 = vpop.f32.mrb[0].mxu0
    %v2615 = vadd.f32 %v2572, %v2614
    %v2616 = vpop.f32.mrb[0].mxu0
    %v2617 = vadd.f32 %v2574, %v2616
    %v2618 = vpop.f32.mrb[0].mxu0
    %v2619 = vadd.f32 %v2576, %v2618
    %2620 = vdwg.mxu0
    %2621 = vmatprep.subr.bf16.mxu0 %v1727
    %2622 = vmatpush1.bf16.msra.mxu0 %v1726
    %2623 = vmatprep.subr.bf16.mxu0 %v1735
    %2624 = vmatpush1.bf16.msra.mxu0 %v1734
    %2625 = vmatprep.subr.bf16.mxu0 %v1743
    %2626 = vmatpush1.bf16.msra.mxu0 %v1742
    %2627 = vmatprep.subr.bf16.mxu0 %v1751
    %2628 = vmatpush1.bf16.msra.mxu0 %v1750
    %2629 = vmatprep.subr.bf16.mxu0 %v1759
    %2630 = vmatpush1.bf16.msra.mxu0 %v1758
    %2631 = vmatprep.subr.bf16.mxu0 %v1767
    %2632 = vmatpush1.bf16.msra.mxu0 %v1766
    %2633 = vmatprep.subr.bf16.mxu0 %v1775
    %2634 = vmatpush1.bf16.msra.mxu0 %v1774
    %2635 = vmatprep.subr.bf16.mxu0 %v1783
    %2636 = vmatpush1.bf16.msra.mxu0 %v1782
    %2637 = vmatprep.subr.bf16.mxu0 %v1791
    %2638 = vmatpush1.bf16.msra.mxu0 %v1790
    %2639 = vmatprep.subr.bf16.mxu0 %v1799
    %2640 = vmatpush1.bf16.msra.mxu0 %v1798
    %2641 = vmatprep.subr.bf16.mxu0 %v1807
    %2642 = vmatpush1.bf16.msra.mxu0 %v1806
    %2643 = vmatprep.subr.bf16.mxu0 %v1815
    %2644 = vmatpush1.bf16.msra.mxu0 %v1814
    %2645 = vmatprep.subr.bf16.mxu0 %v1823
    %2646 = vmatpush1.bf16.msra.mxu0 %v1822
    %2647 = vmatprep.subr.bf16.mxu0 %v1831
    %2648 = vmatpush1.bf16.msra.mxu0 %v1830
    %2649 = vmatprep.subr.bf16.mxu0 %v1839
    %2650 = vmatpush1.bf16.msra.mxu0 %v1838
    %2651 = vmatprep.subr.bf16.mxu0 %v1847
    %2652 = vmatpush1.bf16.msra.mxu0 %v1846
    %2653 = vmatprep.mubr.bf16.mxu0 %v135
    %2654 = vmatmul.mubr.bf16.gmra.mrb[0].mxu0 %v134
    %v2655 = vpop.f32.mrb[0].mxu0
    %v2656 = vadd.f32 %v543, %v2655
    %v2657 = vpop.f32.mrb[0].mxu0
    %v2658 = vadd.f32 %v547, %v2657
    %v2659 = vpop.f32.mrb[0].mxu0
    %v2660 = vadd.f32 %v543, %v2659
    %v2661 = vpop.f32.mrb[0].mxu0
    %v2662 = vadd.f32 %v547, %v2661
    %2663 = vdwg.mxu0
    %2664 = vmatprep.subr.bf16.mxu0 %v1855
    %2665 = vmatpush1.bf16.msra.mxu0 %v1854
    %2666 = vmatprep.subr.bf16.mxu0 %v1863
    %2667 = vmatpush1.bf16.msra.mxu0 %v1862
    %2668 = vmatprep.subr.bf16.mxu0 %v1871
    %2669 = vmatpush1.bf16.msra.mxu0 %v1870
    %2670 = vmatprep.subr.bf16.mxu0 %v1879
    %2671 = vmatpush1.bf16.msra.mxu0 %v1878
    %2672 = vmatprep.subr.bf16.mxu0 %v1887
    %2673 = vmatpush1.bf16.msra.mxu0 %v1886
    %2674 = vmatprep.subr.bf16.mxu0 %v1895
    %2675 = vmatpush1.bf16.msra.mxu0 %v1894
    %2676 = vmatprep.subr.bf16.mxu0 %v1903
    %2677 = vmatpush1.bf16.msra.mxu0 %v1902
    %2678 = vmatprep.subr.bf16.mxu0 %v1911
    %2679 = vmatpush1.bf16.msra.mxu0 %v1910
    %2680 = vmatprep.subr.bf16.mxu0 %v1919
    %2681 = vmatpush1.bf16.msra.mxu0 %v1918
    %2682 = vmatprep.subr.bf16.mxu0 %v1927
    %2683 = vmatpush1.bf16.msra.mxu0 %v1926
    %2684 = vmatprep.subr.bf16.mxu0 %v1935
    %2685 = vmatpush1.bf16.msra.mxu0 %v1934
    %2686 = vmatprep.subr.bf16.mxu0 %v1943
    %2687 = vmatpush1.bf16.msra.mxu0 %v1942
    %2688 = vmatprep.subr.bf16.mxu0 %v1951
    %2689 = vmatpush1.bf16.msra.mxu0 %v1950
    %2690 = vmatprep.subr.bf16.mxu0 %v1959
    %2691 = vmatpush1.bf16.msra.mxu0 %v1958
    %2692 = vmatprep.subr.bf16.mxu0 %v1967
    %2693 = vmatpush1.bf16.msra.mxu0 %v1966
    %2694 = vmatprep.subr.bf16.mxu0 %v1975
    %2695 = vmatpush1.bf16.msra.mxu0 %v1974
    %2696 = vmatprep.mubr.bf16.mxu0 %v137
    %2697 = vmatmul.mubr.bf16.gmra.mrb[0].mxu0 %v136
    %v2698 = vpop.f32.mrb[0].mxu0
    %v2699 = vadd.f32 %v2656, %v2698
    %v2700 = vpop.f32.mrb[0].mxu0
    %v2701 = vadd.f32 %v2658, %v2700
    %v2702 = vpop.f32.mrb[0].mxu0
    %v2703 = vadd.f32 %v2660, %v2702
    %v2704 = vpop.f32.mrb[0].mxu0
    %v2705 = vadd.f32 %v2662, %v2704
    %2706 = vdwg.mxu0
    %2707 = vmatprep.subr.bf16.mxu0 %v1983
    %2708 = vmatpush1.bf16.msra.mxu0 %v1982
    %2709 = vmatprep.subr.bf16.mxu0 %v1991
    %2710 = vmatpush1.bf16.msra.mxu0 %v1990
    %2711 = vmatprep.subr.bf16.mxu0 %v1999
    %2712 = vmatpush1.bf16.msra.mxu0 %v1998
    %2713 = vmatprep.subr.bf16.mxu0 %v2007
    %2714 = vmatpush1.bf16.msra.mxu0 %v2006
    %2715 = vmatprep.subr.bf16.mxu0 %v2015
    %2716 = vmatpush1.bf16.msra.mxu0 %v2014
    %2717 = vmatprep.subr.bf16.mxu0 %v2023
    %2718 = vmatpush1.bf16.msra.mxu0 %v2022
    %2719 = vmatprep.subr.bf16.mxu0 %v2031
    %2720 = vmatpush1.bf16.msra.mxu0 %v2030
    %2721 = vmatprep.subr.bf16.mxu0 %v2039
    %2722 = vmatpush1.bf16.msra.mxu0 %v2038
    %2723 = vmatprep.subr.bf16.mxu0 %v2047
    %2724 = vmatpush1.bf16.msra.mxu0 %v2046
    %2725 = vmatprep.subr.bf16.mxu0 %v2055
    %2726 = vmatpush1.bf16.msra.mxu0 %v2054
    %2727 = vmatprep.subr.bf16.mxu0 %v2063
    %2728 = vmatpush1.bf16.msra.mxu0 %v2062
    %2729 = vmatprep.subr.bf16.mxu0 %v2071
    %2730 = vmatpush1.bf16.msra.mxu0 %v2070
    %2731 = vmatprep.subr.bf16.mxu0 %v2079
    %2732 = vmatpush1.bf16.msra.mxu0 %v2078
    %2733 = vmatprep.subr.bf16.mxu0 %v2087
    %2734 = vmatpush1.bf16.msra.mxu0 %v2086
    %2735 = vmatprep.subr.bf16.mxu0 %v2095
    %2736 = vmatpush1.bf16.msra.mxu0 %v2094
    %2737 = vmatprep.subr.bf16.mxu0 %v2103
    %2738 = vmatpush1.bf16.msra.mxu0 %v2102
    %2739 = vmatprep.mubr.bf16.mxu0 %v139
    %2740 = vmatmul.mubr.bf16.gmra.mrb[0].mxu0 %v138
    %v2741 = vpop.f32.mrb[0].mxu0
    %v2742 = vadd.f32 %v2699, %v2741
    %v2743 = vpop.f32.mrb[0].mxu0
    %v2744 = vadd.f32 %v2701, %v2743
    %v2745 = vpop.f32.mrb[0].mxu0
    %v2746 = vadd.f32 %v2703, %v2745
    %v2747 = vpop.f32.mrb[0].mxu0
    %v2748 = vadd.f32 %v2705, %v2747
    %2749 = vdwg.mxu0
    %2750 = vmatprep.subr.bf16.mxu0 %v1729
    %2751 = vmatpush1.bf16.msra.mxu0 %v1728
    %2752 = vmatprep.subr.bf16.mxu0 %v1737
    %2753 = vmatpush1.bf16.msra.mxu0 %v1736
    %2754 = vmatprep.subr.bf16.mxu0 %v1745
    %2755 = vmatpush1.bf16.msra.mxu0 %v1744
    %2756 = vmatprep.subr.bf16.mxu0 %v1753
    %2757 = vmatpush1.bf16.msra.mxu0 %v1752
    %2758 = vmatprep.subr.bf16.mxu0 %v1761
    %2759 = vmatpush1.bf16.msra.mxu0 %v1760
    %2760 = vmatprep.subr.bf16.mxu0 %v1769
    %2761 = vmatpush1.bf16.msra.mxu0 %v1768
    %2762 = vmatprep.subr.bf16.mxu0 %v1777
    %2763 = vmatpush1.bf16.msra.mxu0 %v1776
    %2764 = vmatprep.subr.bf16.mxu0 %v1785
    %2765 = vmatpush1.bf16.msra.mxu0 %v1784
    %2766 = vmatprep.subr.bf16.mxu0 %v1793
    %2767 = vmatpush1.bf16.msra.mxu0 %v1792
    %2768 = vmatprep.subr.bf16.mxu0 %v1801
    %2769 = vmatpush1.bf16.msra.mxu0 %v1800
    %2770 = vmatprep.subr.bf16.mxu0 %v1809
    %2771 = vmatpush1.bf16.msra.mxu0 %v1808
    %2772 = vmatprep.subr.bf16.mxu0 %v1817
    %2773 = vmatpush1.bf16.msra.mxu0 %v1816
    %2774 = vmatprep.subr.bf16.mxu0 %v1825
    %2775 = vmatpush1.bf16.msra.mxu0 %v1824
    %2776 = vmatprep.subr.bf16.mxu0 %v1833
    %2777 = vmatpush1.bf16.msra.mxu0 %v1832
    %2778 = vmatprep.subr.bf16.mxu0 %v1841
    %2779 = vmatpush1.bf16.msra.mxu0 %v1840
    %2780 = vmatprep.subr.bf16.mxu0 %v1849
    %2781 = vmatpush1.bf16.msra.mxu0 %v1848
    %2782 = vmatprep.mubr.bf16.mxu0 %v135
    %2783 = vmatmul.mubr.bf16.gmra.mrb[0].mxu0 %v134
    %v2784 = vpop.f32.mrb[0].mxu0
    %v2785 = vadd.f32 %v551, %v2784
    %v2786 = vpop.f32.mrb[0].mxu0
    %v2787 = vadd.f32 %v555, %v2786
    %v2788 = vpop.f32.mrb[0].mxu0
    %v2789 = vadd.f32 %v551, %v2788
    %v2790 = vpop.f32.mrb[0].mxu0
    %v2791 = vadd.f32 %v555, %v2790
    %2792 = vdwg.mxu0
    %2793 = vmatprep.subr.bf16.mxu0 %v1857
    %2794 = vmatpush1.bf16.msra.mxu0 %v1856
    %2795 = vmatprep.subr.bf16.mxu0 %v1865
    %2796 = vmatpush1.bf16.msra.mxu0 %v1864
    %2797 = vmatprep.subr.bf16.mxu0 %v1873
    %2798 = vmatpush1.bf16.msra.mxu0 %v1872
    %2799 = vmatprep.subr.bf16.mxu0 %v1881
    %2800 = vmatpush1.bf16.msra.mxu0 %v1880
    %2801 = vmatprep.subr.bf16.mxu0 %v1889
    %2802 = vmatpush1.bf16.msra.mxu0 %v1888
    %2803 = vmatprep.subr.bf16.mxu0 %v1897
    %2804 = vmatpush1.bf16.msra.mxu0 %v1896
    %2805 = vmatprep.subr.bf16.mxu0 %v1905
    %2806 = vmatpush1.bf16.msra.mxu0 %v1904
    %2807 = vmatprep.subr.bf16.mxu0 %v1913
    %2808 = vmatpush1.bf16.msra.mxu0 %v1912
    %2809 = vmatprep.subr.bf16.mxu0 %v1921
    %2810 = vmatpush1.bf16.msra.mxu0 %v1920
    %2811 = vmatprep.subr.bf16.mxu0 %v1929
    %2812 = vmatpush1.bf16.msra.mxu0 %v1928
    %2813 = vmatprep.subr.bf16.mxu0 %v1937
    %2814 = vmatpush1.bf16.msra.mxu0 %v1936
    %2815 = vmatprep.subr.bf16.mxu0 %v1945
    %2816 = vmatpush1.bf16.msra.mxu0 %v1944
    %2817 = vmatprep.subr.bf16.mxu0 %v1953
    %2818 = vmatpush1.bf16.msra.mxu0 %v1952
    %2819 = vmatprep.subr.bf16.mxu0 %v1961
    %2820 = vmatpush1.bf16.msra.mxu0 %v1960
    %2821 = vmatprep.subr.bf16.mxu0 %v1969
    %2822 = vmatpush1.bf16.msra.mxu0 %v1968
    %2823 = vmatprep.subr.bf16.mxu0 %v1977
    %2824 = vmatpush1.bf16.msra.mxu0 %v1976
    %2825 = vmatprep.mubr.bf16.mxu0 %v137
    %2826 = vmatmul.mubr.bf16.gmra.mrb[0].mxu0 %v136
    %v2827 = vpop.f32.mrb[0].mxu0
    %v2828 = vadd.f32 %v2785, %v2827
    %v2829 = vpop.f32.mrb[0].mxu0
    %v2830 = vadd.f32 %v2787, %v2829
    %v2831 = vpop.f32.mrb[0].mxu0
    %v2832 = vadd.f32 %v2789, %v2831
    %v2833 = vpop.f32.mrb[0].mxu0
    %v2834 = vadd.f32 %v2791, %v2833
    %2835 = vdwg.mxu0
    %2836 = vmatprep.subr.bf16.mxu0 %v1985
    %2837 = vmatpush1.bf16.msra.mxu0 %v1984
    %2838 = vmatprep.subr.bf16.mxu0 %v1993
    %2839 = vmatpush1.bf16.msra.mxu0 %v1992
    %2840 = vmatprep.subr.bf16.mxu0 %v2001
    %2841 = vmatpush1.bf16.msra.mxu0 %v2000
    %2842 = vmatprep.subr.bf16.mxu0 %v2009
    %2843 = vmatpush1.bf16.msra.mxu0 %v2008
    %2844 = vmatprep.subr.bf16.mxu0 %v2017
    %2845 = vmatpush1.bf16.msra.mxu0 %v2016
    %2846 = vmatprep.subr.bf16.mxu0 %v2025
    %2847 = vmatpush1.bf16.msra.mxu0 %v2024
    %2848 = vmatprep.subr.bf16.mxu0 %v2033
    %2849 = vmatpush1.bf16.msra.mxu0 %v2032
    %2850 = vmatprep.subr.bf16.mxu0 %v2041
    %2851 = vmatpush1.bf16.msra.mxu0 %v2040
    %2852 = vmatprep.subr.bf16.mxu0 %v2049
    %2853 = vmatpush1.bf16.msra.mxu0 %v2048
    %2854 = vmatprep.subr.bf16.mxu0 %v2057
    %2855 = vmatpush1.bf16.msra.mxu0 %v2056
    %2856 = vmatprep.subr.bf16.mxu0 %v2065
    %2857 = vmatpush1.bf16.msra.mxu0 %v2064
    %2858 = vmatprep.subr.bf16.mxu0 %v2073
    %2859 = vmatpush1.bf16.msra.mxu0 %v2072
    %2860 = vmatprep.subr.bf16.mxu0 %v2081
    %2861 = vmatpush1.bf16.msra.mxu0 %v2080
    %2862 = vmatprep.subr.bf16.mxu0 %v2089
    %2863 = vmatpush1.bf16.msra.mxu0 %v2088
    %2864 = vmatprep.subr.bf16.mxu0 %v2097
    %2865 = vmatpush1.bf16.msra.mxu0 %v2096
    %2866 = vmatprep.subr.bf16.mxu0 %v2105
    %2867 = vmatpush1.bf16.msra.mxu0 %v2104
    %2868 = vmatprep.mubr.bf16.mxu0 %v139
    %2869 = vmatmul.mubr.bf16.gmra.mrb[0].mxu0 %v138
    %v2870 = vpop.f32.mrb[0].mxu0
    %v2871 = vadd.f32 %v2828, %v2870
    %v2872 = vpop.f32.mrb[0].mxu0
    %v2873 = vadd.f32 %v2830, %v2872
    %v2874 = vpop.f32.mrb[0].mxu0
    %v2875 = vadd.f32 %v2832, %v2874
    %v2876 = vpop.f32.mrb[0].mxu0
    %v2877 = vadd.f32 %v2834, %v2876
    %2878 = vdwg.mxu0
    %2879 = vmatprep.subr.bf16.mxu0 %v1731
    %2880 = vmatpush1.bf16.msra.mxu0 %v1730
    %2881 = vmatprep.subr.bf16.mxu0 %v1739
    %2882 = vmatpush1.bf16.msra.mxu0 %v1738
    %2883 = vmatprep.subr.bf16.mxu0 %v1747
    %2884 = vmatpush1.bf16.msra.mxu0 %v1746
    %2885 = vmatprep.subr.bf16.mxu0 %v1755
    %2886 = vmatpush1.bf16.msra.mxu0 %v1754
    %2887 = vmatprep.subr.bf16.mxu0 %v1763
    %2888 = vmatpush1.bf16.msra.mxu0 %v1762
    %2889 = vmatprep.subr.bf16.mxu0 %v1771
    %2890 = vmatpush1.bf16.msra.mxu0 %v1770
    %2891 = vmatprep.subr.bf16.mxu0 %v1779
    %2892 = vmatpush1.bf16.msra.mxu0 %v1778
    %2893 = vmatprep.subr.bf16.mxu0 %v1787
    %2894 = vmatpush1.bf16.msra.mxu0 %v1786
    %2895 = vmatprep.subr.bf16.mxu0 %v1795
    %2896 = vmatpush1.bf16.msra.mxu0 %v1794
    %2897 = vmatprep.subr.bf16.mxu0 %v1803
    %2898 = vmatpush1.bf16.msra.mxu0 %v1802
    %2899 = vmatprep.subr.bf16.mxu0 %v1811
    %2900 = vmatpush1.bf16.msra.mxu0 %v1810
    %2901 = vmatprep.subr.bf16.mxu0 %v1819
    %2902 = vmatpush1.bf16.msra.mxu0 %v1818
    %2903 = vmatprep.subr.bf16.mxu0 %v1827
    %2904 = vmatpush1.bf16.msra.mxu0 %v1826
    %2905 = vmatprep.subr.bf16.mxu0 %v1835
    %2906 = vmatpush1.bf16.msra.mxu0 %v1834
    %2907 = vmatprep.subr.bf16.mxu0 %v1843
    %2908 = vmatpush1.bf16.msra.mxu0 %v1842
    %2909 = vmatprep.subr.bf16.mxu0 %v1851
    %2910 = vmatpush1.bf16.msra.mxu0 %v1850
    %2911 = vmatprep.mubr.bf16.mxu0 %v135
    %2912 = vmatmul.mubr.bf16.gmra.mrb[0].mxu0 %v134
    %v2913 = vpop.f32.mrb[0].mxu0
    %v2914 = vadd.f32 %v559, %v2913
    %v2915 = vpop.f32.mrb[0].mxu0
    %v2916 = vadd.f32 %v563, %v2915
    %v2917 = vpop.f32.mrb[0].mxu0
    %v2918 = vadd.f32 %v559, %v2917
    %v2919 = vpop.f32.mrb[0].mxu0
    %v2920 = vadd.f32 %v563, %v2919
    %2921 = vdwg.mxu0
    %2922 = vmatprep.subr.bf16.mxu0 %v1859
    %2923 = vmatpush1.bf16.msra.mxu0 %v1858
    %2924 = vmatprep.subr.bf16.mxu0 %v1867
    %2925 = vmatpush1.bf16.msra.mxu0 %v1866
    %2926 = vmatprep.subr.bf16.mxu0 %v1875
    %2927 = vmatpush1.bf16.msra.mxu0 %v1874
    %2928 = vmatprep.subr.bf16.mxu0 %v1883
    %2929 = vmatpush1.bf16.msra.mxu0 %v1882
    %2930 = vmatprep.subr.bf16.mxu0 %v1891
    %2931 = vmatpush1.bf16.msra.mxu0 %v1890
    %2932 = vmatprep.subr.bf16.mxu0 %v1899
    %2933 = vmatpush1.bf16.msra.mxu0 %v1898
    %2934 = vmatprep.subr.bf16.mxu0 %v1907
    %2935 = vmatpush1.bf16.msra.mxu0 %v1906
    %2936 = vmatprep.subr.bf16.mxu0 %v1915
    %2937 = vmatpush1.bf16.msra.mxu0 %v1914
    %2938 = vmatprep.subr.bf16.mxu0 %v1923
    %2939 = vmatpush1.bf16.msra.mxu0 %v1922
    %2940 = vmatprep.subr.bf16.mxu0 %v1931
    %2941 = vmatpush1.bf16.msra.mxu0 %v1930
    %2942 = vmatprep.subr.bf16.mxu0 %v1939
    %2943 = vmatpush1.bf16.msra.mxu0 %v1938
    %2944 = vmatprep.subr.bf16.mxu0 %v1947
    %2945 = vmatpush1.bf16.msra.mxu0 %v1946
    %2946 = vmatprep.subr.bf16.mxu0 %v1955
    %2947 = vmatpush1.bf16.msra.mxu0 %v1954
    %2948 = vmatprep.subr.bf16.mxu0 %v1963
    %2949 = vmatpush1.bf16.msra.mxu0 %v1962
    %2950 = vmatprep.subr.bf16.mxu0 %v1971
    %2951 = vmatpush1.bf16.msra.mxu0 %v1970
    %2952 = vmatprep.subr.bf16.mxu0 %v1979
    %2953 = vmatpush1.bf16.msra.mxu0 %v1978
    %2954 = vmatprep.mubr.bf16.mxu0 %v137
    %2955 = vmatmul.mubr.bf16.gmra.mrb[0].mxu0 %v136
    %v2956 = vpop.f32.mrb[0].mxu0
    %v2957 = vadd.f32 %v2914, %v2956
    %v2958 = vpop.f32.mrb[0].mxu0
    %v2959 = vadd.f32 %v2916, %v2958
    %v2960 = vpop.f32.mrb[0].mxu0
    %v2961 = vadd.f32 %v2918, %v2960
    %v2962 = vpop.f32.mrb[0].mxu0
    %v2963 = vadd.f32 %v2920, %v2962
    %2964 = vdwg.mxu0
    %2965 = vmatprep.subr.bf16.mxu0 %v1987
    %2966 = vmatpush1.bf16.msra.mxu0 %v1986
    %2967 = vmatprep.subr.bf16.mxu0 %v1995
    %2968 = vmatpush1.bf16.msra.mxu0 %v1994
    %2969 = vmatprep.subr.bf16.mxu0 %v2003
    %2970 = vmatpush1.bf16.msra.mxu0 %v2002
    %2971 = vmatprep.subr.bf16.mxu0 %v2011
    %2972 = vmatpush1.bf16.msra.mxu0 %v2010
    %2973 = vmatprep.subr.bf16.mxu0 %v2019
    %2974 = vmatpush1.bf16.msra.mxu0 %v2018
    %2975 = vmatprep.subr.bf16.mxu0 %v2027
    %2976 = vmatpush1.bf16.msra.mxu0 %v2026
    %2977 = vmatprep.subr.bf16.mxu0 %v2035
    %2978 = vmatpush1.bf16.msra.mxu0 %v2034
    %2979 = vmatprep.subr.bf16.mxu0 %v2043
    %2980 = vmatpush1.bf16.msra.mxu0 %v2042
    %2981 = vmatprep.subr.bf16.mxu0 %v2051
    %2982 = vmatpush1.bf16.msra.mxu0 %v2050
    %2983 = vmatprep.subr.bf16.mxu0 %v2059
    %2984 = vmatpush1.bf16.msra.mxu0 %v2058
    %2985 = vmatprep.subr.bf16.mxu0 %v2067
    %2986 = vmatpush1.bf16.msra.mxu0 %v2066
    %2987 = vmatprep.subr.bf16.mxu0 %v2075
    %2988 = vmatpush1.bf16.msra.mxu0 %v2074
    %2989 = vmatprep.subr.bf16.mxu0 %v2083
    %2990 = vmatpush1.bf16.msra.mxu0 %v2082
    %2991 = vmatprep.subr.bf16.mxu0 %v2091
    %2992 = vmatpush1.bf16.msra.mxu0 %v2090
    %2993 = vmatprep.subr.bf16.mxu0 %v2099
    %2994 = vmatpush1.bf16.msra.mxu0 %v2098
    %2995 = vmatprep.subr.bf16.mxu0 %v2107
    %2996 = vmatpush1.bf16.msra.mxu0 %v2106
    %2997 = vmatprep.mubr.bf16.mxu0 %v139
    %2998 = vmatmul.mubr.bf16.gmra.mrb[0].mxu0 %v138
    %v2999 = vpop.f32.mrb[0].mxu0
    %v3000 = vadd.f32 %v2957, %v2999
    %v3001 = vpop.f32.mrb[0].mxu0
    %v3002 = vadd.f32 %v2959, %v3001
    %v3003 = vpop.f32.mrb[0].mxu0
    %v3004 = vadd.f32 %v2961, %v3003
    %v3005 = vpop.f32.mrb[0].mxu0
    %v3006 = vadd.f32 %v2963, %v3005
    %3007 = vdwg.mxu0
    %v3008 = vmax.f32 %v2613, 0.0
    %v3009 = vmax.f32 %v2615, 0.0
    %v3010 = vmax.f32 %v2742, 0.0
    %v3011 = vmax.f32 %v2744, 0.0
    %v3012 = vmax.f32 %v2871, 0.0
    %v3013 = vmax.f32 %v2873, 0.0
    %v3014 = vmax.f32 %v3000, 0.0
    %v3015 = vmax.f32 %v3002, 0.0
    %v3016 = vmax.f32 %v2617, 0.0
    %v3017 = vmax.f32 %v2619, 0.0
    %v3018 = vmax.f32 %v2746, 0.0
    %v3019 = vmax.f32 %v2748, 0.0
    %v3020 = vmax.f32 %v2875, 0.0
    %v3021 = vmax.f32 %v2877, 0.0
    %v3022 = vmax.f32 %v3004, 0.0
    %v3023 = vmax.f32 %v3006, 0.0
    %v3024 = vpack.c.bf16 %v3016, %v3008
    %v3025 = vpack.c.bf16 %v3017, %v3009
    %v3026 = vpack.c.bf16 %v3018, %v3010
    %v3027 = vpack.c.bf16 %v3019, %v3011
    %v3028 = vpack.c.bf16 %v3020, %v3012
    %v3029 = vpack.c.bf16 %v3021, %v3013
    %v3030 = vpack.c.bf16 %v3022, %v3014
    %v3031 = vpack.c.bf16 %v3023, %v3015
    %v3032 = vld [vmem:[#allocation4] sm:$0xff]
    %v3033 = vld [vmem:[#allocation4 + $0x8] sm:$0xff]
    %v3034 = vld [vmem:[#allocation4 + $0x10] sm:$0xff]
    %v3035 = vld [vmem:[#allocation4 + $0x18] sm:$0xff]
    %v3036 = vld [vmem:[#allocation4 + $0x20] sm:$0xff]
    %v3037 = vld [vmem:[#allocation4 + $0x28] sm:$0xff]
    %v3038 = vld [vmem:[#allocation4 + $0x30] sm:$0xff]
    %v3039 = vld [vmem:[#allocation4 + $0x38] sm:$0xff]
    %v3040 = vld [vmem:[#allocation4 + $0x40] sm:$0xff]
    %v3041 = vld [vmem:[#allocation4 + $0x48] sm:$0xff]
    %v3042 = vld [vmem:[#allocation4 + $0x50] sm:$0xff]
    %v3043 = vld [vmem:[#allocation4 + $0x58] sm:$0xff]
    %v3044 = vld [vmem:[#allocation4 + $0x60] sm:$0xff]
    %v3045 = vld [vmem:[#allocation4 + $0x68] sm:$0xff]
    %v3046 = vld [vmem:[#allocation4 + $0x70] sm:$0xff]
    %v3047 = vld [vmem:[#allocation4 + $0x78] sm:$0xff]
    %v3048 = vld [vmem:[#allocation4 + $0x80] sm:$0xff]
    %v3049 = vld [vmem:[#allocation4 + $0x88] sm:$0xff]
    %v3050 = vld [vmem:[#allocation4 + $0x90] sm:$0xff]
    %v3051 = vld [vmem:[#allocation4 + $0x98] sm:$0xff]
    %v3052 = vld [vmem:[#allocation4 + $0xa0] sm:$0xff]
    %v3053 = vld [vmem:[#allocation4 + $0xa8] sm:$0xff]
    %v3054 = vld [vmem:[#allocation4 + $0xb0] sm:$0xff]
    %v3055 = vld [vmem:[#allocation4 + $0xb8] sm:$0xff]
    %v3056 = vld [vmem:[#allocation4 + $0xc0] sm:$0xff]
    %v3057 = vld [vmem:[#allocation4 + $0xc8] sm:$0xff]
    %v3058 = vld [vmem:[#allocation4 + $0xd0] sm:$0xff]
    %v3059 = vld [vmem:[#allocation4 + $0xd8] sm:$0xff]
    %v3060 = vld [vmem:[#allocation4 + $0xe0] sm:$0xff]
    %v3061 = vld [vmem:[#allocation4 + $0xe8] sm:$0xff]
    %v3062 = vld [vmem:[#allocation4 + $0xf0] sm:$0xff]
    %v3063 = vld [vmem:[#allocation4 + $0xf8] sm:$0xff]
    %v3064 = vld [vmem:[#allocation4 + $0x100] sm:$0xff]
    %v3065 = vld [vmem:[#allocation4 + $0x108] sm:$0xff]
    %v3066 = vld [vmem:[#allocation4 + $0x110] sm:$0xff]
    %v3067 = vld [vmem:[#allocation4 + $0x118] sm:$0xff]
    %v3068 = vld [vmem:[#allocation4 + $0x120] sm:$0xff]
    %v3069 = vld [vmem:[#allocation4 + $0x128] sm:$0xff]
    %v3070 = vld [vmem:[#allocation4 + $0x130] sm:$0xff]
    %v3071 = vld [vmem:[#allocation4 + $0x138] sm:$0xff]
    %v3072 = vld [vmem:[#allocation4 + $0x140] sm:$0xff]
    %v3073 = vld [vmem:[#allocation4 + $0x148] sm:$0xff]
    %v3074 = vld [vmem:[#allocation4 + $0x150] sm:$0xff]
    %v3075 = vld [vmem:[#allocation4 + $0x158] sm:$0xff]
    %v3076 = vld [vmem:[#allocation4 + $0x160] sm:$0xff]
    %v3077 = vld [vmem:[#allocation4 + $0x168] sm:$0xff]
    %v3078 = vld [vmem:[#allocation4 + $0x170] sm:$0xff]
    %v3079 = vld [vmem:[#allocation4 + $0x178] sm:$0xff]
    %v3080 = vld [vmem:[#allocation4 + $0x180] sm:$0xff]
    %v3081 = vld [vmem:[#allocation4 + $0x188] sm:$0xff]
    %v3082 = vld [vmem:[#allocation4 + $0x190] sm:$0xff]
    %v3083 = vld [vmem:[#allocation4 + $0x198] sm:$0xff]
    %v3084 = vld [vmem:[#allocation4 + $0x1a0] sm:$0xff]
    %v3085 = vld [vmem:[#allocation4 + $0x1a8] sm:$0xff]
    %v3086 = vld [vmem:[#allocation4 + $0x1b0] sm:$0xff]
    %v3087 = vld [vmem:[#allocation4 + $0x1b8] sm:$0xff]
    %v3088 = vld [vmem:[#allocation4 + $0x1c0] sm:$0xff]
    %v3089 = vld [vmem:[#allocation4 + $0x1c8] sm:$0xff]
    %v3090 = vld [vmem:[#allocation4 + $0x1d0] sm:$0xff]
    %v3091 = vld [vmem:[#allocation4 + $0x1d8] sm:$0xff]
    %v3092 = vld [vmem:[#allocation4 + $0x1e0] sm:$0xff]
    %v3093 = vld [vmem:[#allocation4 + $0x1e8] sm:$0xff]
    %v3094 = vld [vmem:[#allocation4 + $0x1f0] sm:$0xff]
    %v3095 = vld [vmem:[#allocation4 + $0x1f8] sm:$0xff]
    %v3096 = vld [vmem:[#allocation4 + $0x200] sm:$0xff]
    %v3097 = vld [vmem:[#allocation4 + $0x208] sm:$0xff]
    %v3098 = vld [vmem:[#allocation4 + $0x210] sm:$0xff]
    %v3099 = vld [vmem:[#allocation4 + $0x218] sm:$0xff]
    %v3100 = vld [vmem:[#allocation4 + $0x220] sm:$0xff]
    %v3101 = vld [vmem:[#allocation4 + $0x228] sm:$0xff]
    %v3102 = vld [vmem:[#allocation4 + $0x230] sm:$0xff]
    %v3103 = vld [vmem:[#allocation4 + $0x238] sm:$0xff]
    %v3104 = vld [vmem:[#allocation4 + $0x240] sm:$0xff]
    %v3105 = vld [vmem:[#allocation4 + $0x248] sm:$0xff]
    %v3106 = vld [vmem:[#allocation4 + $0x250] sm:$0xff]
    %v3107 = vld [vmem:[#allocation4 + $0x258] sm:$0xff]
    %v3108 = vld [vmem:[#allocation4 + $0x260] sm:$0xff]
    %v3109 = vld [vmem:[#allocation4 + $0x268] sm:$0xff]
    %v3110 = vld [vmem:[#allocation4 + $0x270] sm:$0xff]
    %v3111 = vld [vmem:[#allocation4 + $0x278] sm:$0xff]
    %v3112 = vld [vmem:[#allocation4 + $0x280] sm:$0xff]
    %v3113 = vld [vmem:[#allocation4 + $0x288] sm:$0xff]
    %v3114 = vld [vmem:[#allocation4 + $0x290] sm:$0xff]
    %v3115 = vld [vmem:[#allocation4 + $0x298] sm:$0xff]
    %v3116 = vld [vmem:[#allocation4 + $0x2a0] sm:$0xff]
    %v3117 = vld [vmem:[#allocation4 + $0x2a8] sm:$0xff]
    %v3118 = vld [vmem:[#allocation4 + $0x2b0] sm:$0xff]
    %v3119 = vld [vmem:[#allocation4 + $0x2b8] sm:$0xff]
    %v3120 = vld [vmem:[#allocation4 + $0x2c0] sm:$0xff]
    %v3121 = vld [vmem:[#allocation4 + $0x2c8] sm:$0xff]
    %v3122 = vld [vmem:[#allocation4 + $0x2d0] sm:$0xff]
    %v3123 = vld [vmem:[#allocation4 + $0x2d8] sm:$0xff]
    %v3124 = vld [vmem:[#allocation4 + $0x2e0] sm:$0xff]
    %v3125 = vld [vmem:[#allocation4 + $0x2e8] sm:$0xff]
    %v3126 = vld [vmem:[#allocation4 + $0x2f0] sm:$0xff]
    %v3127 = vld [vmem:[#allocation4 + $0x2f8] sm:$0xff]
    %v3128 = vld [vmem:[#allocation4 + $0x300] sm:$0xff]
    %v3129 = vld [vmem:[#allocation4 + $0x308] sm:$0xff]
    %v3130 = vld [vmem:[#allocation4 + $0x310] sm:$0xff]
    %v3131 = vld [vmem:[#allocation4 + $0x318] sm:$0xff]
    %v3132 = vld [vmem:[#allocation4 + $0x320] sm:$0xff]
    %v3133 = vld [vmem:[#allocation4 + $0x328] sm:$0xff]
    %v3134 = vld [vmem:[#allocation4 + $0x330] sm:$0xff]
    %v3135 = vld [vmem:[#allocation4 + $0x338] sm:$0xff]
    %v3136 = vld [vmem:[#allocation4 + $0x340] sm:$0xff]
    %v3137 = vld [vmem:[#allocation4 + $0x348] sm:$0xff]
    %v3138 = vld [vmem:[#allocation4 + $0x350] sm:$0xff]
    %v3139 = vld [vmem:[#allocation4 + $0x358] sm:$0xff]
    %v3140 = vld [vmem:[#allocation4 + $0x360] sm:$0xff]
    %v3141 = vld [vmem:[#allocation4 + $0x368] sm:$0xff]
    %v3142 = vld [vmem:[#allocation4 + $0x370] sm:$0xff]
    %v3143 = vld [vmem:[#allocation4 + $0x378] sm:$0xff]
    %v3144 = vld [vmem:[#allocation4 + $0x380] sm:$0xff]
    %v3145 = vld [vmem:[#allocation4 + $0x388] sm:$0xff]
    %v3146 = vld [vmem:[#allocation4 + $0x390] sm:$0xff]
    %v3147 = vld [vmem:[#allocation4 + $0x398] sm:$0xff]
    %v3148 = vld [vmem:[#allocation4 + $0x3a0] sm:$0xff]
    %v3149 = vld [vmem:[#allocation4 + $0x3a8] sm:$0xff]
    %v3150 = vld [vmem:[#allocation4 + $0x3b0] sm:$0xff]
    %v3151 = vld [vmem:[#allocation4 + $0x3b8] sm:$0xff]
    %v3152 = vld [vmem:[#allocation4 + $0x3c0] sm:$0xff]
    %v3153 = vld [vmem:[#allocation4 + $0x3c8] sm:$0xff]
    %v3154 = vld [vmem:[#allocation4 + $0x3d0] sm:$0xff]
    %v3155 = vld [vmem:[#allocation4 + $0x3d8] sm:$0xff]
    %v3156 = vld [vmem:[#allocation4 + $0x3e0] sm:$0xff]
    %v3157 = vld [vmem:[#allocation4 + $0x3e8] sm:$0xff]
    %v3158 = vld [vmem:[#allocation4 + $0x3f0] sm:$0xff]
    %v3159 = vld [vmem:[#allocation4 + $0x3f8] sm:$0xff]
    %v3160 = vld [vmem:[#allocation4 + $0x400] sm:$0xff]
    %v3161 = vld [vmem:[#allocation4 + $0x408] sm:$0xff]
    %v3162 = vld [vmem:[#allocation4 + $0x410] sm:$0xff]
    %v3163 = vld [vmem:[#allocation4 + $0x418] sm:$0xff]
    %v3164 = vld [vmem:[#allocation4 + $0x420] sm:$0xff]
    %v3165 = vld [vmem:[#allocation4 + $0x428] sm:$0xff]
    %v3166 = vld [vmem:[#allocation4 + $0x430] sm:$0xff]
    %v3167 = vld [vmem:[#allocation4 + $0x438] sm:$0xff]
    %v3168 = vld [vmem:[#allocation4 + $0x440] sm:$0xff]
    %v3169 = vld [vmem:[#allocation4 + $0x448] sm:$0xff]
    %v3170 = vld [vmem:[#allocation4 + $0x450] sm:$0xff]
    %v3171 = vld [vmem:[#allocation4 + $0x458] sm:$0xff]
    %v3172 = vld [vmem:[#allocation4 + $0x460] sm:$0xff]
    %v3173 = vld [vmem:[#allocation4 + $0x468] sm:$0xff]
    %v3174 = vld [vmem:[#allocation4 + $0x470] sm:$0xff]
    %v3175 = vld [vmem:[#allocation4 + $0x478] sm:$0xff]
    %v3176 = vld [vmem:[#allocation4 + $0x480] sm:$0xff]
    %v3177 = vld [vmem:[#allocation4 + $0x488] sm:$0xff]
    %v3178 = vld [vmem:[#allocation4 + $0x490] sm:$0xff]
    %v3179 = vld [vmem:[#allocation4 + $0x498] sm:$0xff]
    %v3180 = vld [vmem:[#allocation4 + $0x4a0] sm:$0xff]
    %v3181 = vld [vmem:[#allocation4 + $0x4a8] sm:$0xff]
    %v3182 = vld [vmem:[#allocation4 + $0x4b0] sm:$0xff]
    %v3183 = vld [vmem:[#allocation4 + $0x4b8] sm:$0xff]
    %v3184 = vld [vmem:[#allocation4 + $0x4c0] sm:$0xff]
    %v3185 = vld [vmem:[#allocation4 + $0x4c8] sm:$0xff]
    %v3186 = vld [vmem:[#allocation4 + $0x4d0] sm:$0xff]
    %v3187 = vld [vmem:[#allocation4 + $0x4d8] sm:$0xff]
    %v3188 = vld [vmem:[#allocation4 + $0x4e0] sm:$0xff]
    %v3189 = vld [vmem:[#allocation4 + $0x4e8] sm:$0xff]
    %v3190 = vld [vmem:[#allocation4 + $0x4f0] sm:$0xff]
    %v3191 = vld [vmem:[#allocation4 + $0x4f8] sm:$0xff]
    %v3192 = vld [vmem:[#allocation4 + $0x500] sm:$0xff]
    %v3193 = vld [vmem:[#allocation4 + $0x508] sm:$0xff]
    %v3194 = vld [vmem:[#allocation4 + $0x510] sm:$0xff]
    %v3195 = vld [vmem:[#allocation4 + $0x518] sm:$0xff]
    %v3196 = vld [vmem:[#allocation4 + $0x520] sm:$0xff]
    %v3197 = vld [vmem:[#allocation4 + $0x528] sm:$0xff]
    %v3198 = vld [vmem:[#allocation4 + $0x530] sm:$0xff]
    %v3199 = vld [vmem:[#allocation4 + $0x538] sm:$0xff]
    %v3200 = vld [vmem:[#allocation4 + $0x540] sm:$0xff]
    %v3201 = vld [vmem:[#allocation4 + $0x548] sm:$0xff]
    %v3202 = vld [vmem:[#allocation4 + $0x550] sm:$0xff]
    %v3203 = vld [vmem:[#allocation4 + $0x558] sm:$0xff]
    %v3204 = vld [vmem:[#allocation4 + $0x560] sm:$0xff]
    %v3205 = vld [vmem:[#allocation4 + $0x568] sm:$0xff]
    %v3206 = vld [vmem:[#allocation4 + $0x570] sm:$0xff]
    %v3207 = vld [vmem:[#allocation4 + $0x578] sm:$0xff]
    %v3208 = vld [vmem:[#allocation4 + $0x580] sm:$0xff]
    %v3209 = vld [vmem:[#allocation4 + $0x588] sm:$0xff]
    %v3210 = vld [vmem:[#allocation4 + $0x590] sm:$0xff]
    %v3211 = vld [vmem:[#allocation4 + $0x598] sm:$0xff]
    %v3212 = vld [vmem:[#allocation4 + $0x5a0] sm:$0xff]
    %v3213 = vld [vmem:[#allocation4 + $0x5a8] sm:$0xff]
    %v3214 = vld [vmem:[#allocation4 + $0x5b0] sm:$0xff]
    %v3215 = vld [vmem:[#allocation4 + $0x5b8] sm:$0xff]
    %v3216 = vld [vmem:[#allocation4 + $0x5c0] sm:$0xff]
    %v3217 = vld [vmem:[#allocation4 + $0x5c8] sm:$0xff]
    %v3218 = vld [vmem:[#allocation4 + $0x5d0] sm:$0xff]
    %v3219 = vld [vmem:[#allocation4 + $0x5d8] sm:$0xff]
    %v3220 = vld [vmem:[#allocation4 + $0x5e0] sm:$0xff]
    %v3221 = vld [vmem:[#allocation4 + $0x5e8] sm:$0xff]
    %v3222 = vld [vmem:[#allocation4 + $0x5f0] sm:$0xff]
    %v3223 = vld [vmem:[#allocation4 + $0x5f8] sm:$0xff]
    %v3224 = vld [vmem:[#allocation4 + $0x600] sm:$0xff]
    %v3225 = vld [vmem:[#allocation4 + $0x608] sm:$0xff]
    %v3226 = vld [vmem:[#allocation4 + $0x610] sm:$0xff]
    %v3227 = vld [vmem:[#allocation4 + $0x618] sm:$0xff]
    %v3228 = vld [vmem:[#allocation4 + $0x620] sm:$0xff]
    %v3229 = vld [vmem:[#allocation4 + $0x628] sm:$0xff]
    %v3230 = vld [vmem:[#allocation4 + $0x630] sm:$0xff]
    %v3231 = vld [vmem:[#allocation4 + $0x638] sm:$0xff]
    %v3232 = vld [vmem:[#allocation4 + $0x640] sm:$0xff]
    %v3233 = vld [vmem:[#allocation4 + $0x648] sm:$0xff]
    %v3234 = vld [vmem:[#allocation4 + $0x650] sm:$0xff]
    %v3235 = vld [vmem:[#allocation4 + $0x658] sm:$0xff]
    %v3236 = vld [vmem:[#allocation4 + $0x660] sm:$0xff]
    %v3237 = vld [vmem:[#allocation4 + $0x668] sm:$0xff]
    %v3238 = vld [vmem:[#allocation4 + $0x670] sm:$0xff]
    %v3239 = vld [vmem:[#allocation4 + $0x678] sm:$0xff]
    %v3240 = vld [vmem:[#allocation4 + $0x680] sm:$0xff]
    %v3241 = vld [vmem:[#allocation4 + $0x688] sm:$0xff]
    %v3242 = vld [vmem:[#allocation4 + $0x690] sm:$0xff]
    %v3243 = vld [vmem:[#allocation4 + $0x698] sm:$0xff]
    %v3244 = vld [vmem:[#allocation4 + $0x6a0] sm:$0xff]
    %v3245 = vld [vmem:[#allocation4 + $0x6a8] sm:$0xff]
    %v3246 = vld [vmem:[#allocation4 + $0x6b0] sm:$0xff]
    %v3247 = vld [vmem:[#allocation4 + $0x6b8] sm:$0xff]
    %v3248 = vld [vmem:[#allocation4 + $0x6c0] sm:$0xff]
    %v3249 = vld [vmem:[#allocation4 + $0x6c8] sm:$0xff]
    %v3250 = vld [vmem:[#allocation4 + $0x6d0] sm:$0xff]
    %v3251 = vld [vmem:[#allocation4 + $0x6d8] sm:$0xff]
    %v3252 = vld [vmem:[#allocation4 + $0x6e0] sm:$0xff]
    %v3253 = vld [vmem:[#allocation4 + $0x6e8] sm:$0xff]
    %v3254 = vld [vmem:[#allocation4 + $0x6f0] sm:$0xff]
    %v3255 = vld [vmem:[#allocation4 + $0x6f8] sm:$0xff]
    %v3256 = vld [vmem:[#allocation4 + $0x700] sm:$0xff]
    %v3257 = vld [vmem:[#allocation4 + $0x708] sm:$0xff]
    %v3258 = vld [vmem:[#allocation4 + $0x710] sm:$0xff]
    %v3259 = vld [vmem:[#allocation4 + $0x718] sm:$0xff]
    %v3260 = vld [vmem:[#allocation4 + $0x720] sm:$0xff]
    %v3261 = vld [vmem:[#allocation4 + $0x728] sm:$0xff]
    %v3262 = vld [vmem:[#allocation4 + $0x730] sm:$0xff]
    %v3263 = vld [vmem:[#allocation4 + $0x738] sm:$0xff]
    %v3264 = vld [vmem:[#allocation4 + $0x740] sm:$0xff]
    %v3265 = vld [vmem:[#allocation4 + $0x748] sm:$0xff]
    %v3266 = vld [vmem:[#allocation4 + $0x750] sm:$0xff]
    %v3267 = vld [vmem:[#allocation4 + $0x758] sm:$0xff]
    %v3268 = vld [vmem:[#allocation4 + $0x760] sm:$0xff]
    %v3269 = vld [vmem:[#allocation4 + $0x768] sm:$0xff]
    %v3270 = vld [vmem:[#allocation4 + $0x770] sm:$0xff]
    %v3271 = vld [vmem:[#allocation4 + $0x778] sm:$0xff]
    %v3272 = vld [vmem:[#allocation4 + $0x780] sm:$0xff]
    %v3273 = vld [vmem:[#allocation4 + $0x788] sm:$0xff]
    %v3274 = vld [vmem:[#allocation4 + $0x790] sm:$0xff]
    %v3275 = vld [vmem:[#allocation4 + $0x798] sm:$0xff]
    %v3276 = vld [vmem:[#allocation4 + $0x7a0] sm:$0xff]
    %v3277 = vld [vmem:[#allocation4 + $0x7a8] sm:$0xff]
    %v3278 = vld [vmem:[#allocation4 + $0x7b0] sm:$0xff]
    %v3279 = vld [vmem:[#allocation4 + $0x7b8] sm:$0xff]
    %v3280 = vld [vmem:[#allocation4 + $0x7c0] sm:$0xff]
    %v3281 = vld [vmem:[#allocation4 + $0x7c8] sm:$0xff]
    %v3282 = vld [vmem:[#allocation4 + $0x7d0] sm:$0xff]
    %v3283 = vld [vmem:[#allocation4 + $0x7d8] sm:$0xff]
    %v3284 = vld [vmem:[#allocation4 + $0x7e0] sm:$0xff]
    %v3285 = vld [vmem:[#allocation4 + $0x7e8] sm:$0xff]
    %v3286 = vld [vmem:[#allocation4 + $0x7f0] sm:$0xff]
    %v3287 = vld [vmem:[#allocation4 + $0x7f8] sm:$0xff]
    %v3288 = vld [vmem:[#allocation10 + $0x8] sm:$0xf]
    %v3290 = vlaneseq
    %v3291 = vshrl.u32 %v3290, 7
    %v3292 = vsub.s32 0, %v3291
    %v3293 = vrot.slane %v3288, %v3292
    %v3294 = vlaneseq
    %v3295 = vshrl.u32 %v3294, 7
    %v3296 = vsub.s32 1, %v3295
    %v3297 = vrot.slane %v3288, %v3296
    %v3298 = vlaneseq
    %v3299 = vshrl.u32 %v3298, 7
    %v3300 = vsub.s32 2, %v3299
    %v3301 = vrot.slane %v3288, %v3300
    %v3302 = vlaneseq
    %v3303 = vshrl.u32 %v3302, 7
    %v3304 = vsub.s32 3, %v3303
    %v3305 = vrot.slane %v3288, %v3304
    %v3566 = vunpack.c.l.b16 %v3032
    %v3567 = vunpack.c.h.b16 %v3032
    %v3568 = vunpack.c.l.b16 %v3033
    %v3569 = vunpack.c.h.b16 %v3033
    %v3570 = vunpack.c.l.b16 %v3034
    %v3571 = vunpack.c.h.b16 %v3034
    %v3572 = vunpack.c.l.b16 %v3035
    %v3573 = vunpack.c.h.b16 %v3035
    %v3574 = vunpack.c.l.b16 %v3036
    %v3575 = vunpack.c.h.b16 %v3036
    %v3576 = vunpack.c.l.b16 %v3037
    %v3577 = vunpack.c.h.b16 %v3037
    %v3578 = vunpack.c.l.b16 %v3038
    %v3579 = vunpack.c.h.b16 %v3038
    %v3580 = vunpack.c.l.b16 %v3039
    %v3581 = vunpack.c.h.b16 %v3039
    %v3582 = vunpack.c.l.b16 %v3040
    %v3583 = vunpack.c.h.b16 %v3040
    %v3584 = vunpack.c.l.b16 %v3041
    %v3585 = vunpack.c.h.b16 %v3041
    %v3586 = vunpack.c.l.b16 %v3042
    %v3587 = vunpack.c.h.b16 %v3042
    %v3588 = vunpack.c.l.b16 %v3043
    %v3589 = vunpack.c.h.b16 %v3043
    %v3590 = vunpack.c.l.b16 %v3044
    %v3591 = vunpack.c.h.b16 %v3044
    %v3592 = vunpack.c.l.b16 %v3045
    %v3593 = vunpack.c.h.b16 %v3045
    %v3594 = vunpack.c.l.b16 %v3046
    %v3595 = vunpack.c.h.b16 %v3046
    %v3596 = vunpack.c.l.b16 %v3047
    %v3597 = vunpack.c.h.b16 %v3047
    %v3598 = vunpack.c.l.b16 %v3048
    %v3599 = vunpack.c.h.b16 %v3048
    %v3600 = vunpack.c.l.b16 %v3049
    %v3601 = vunpack.c.h.b16 %v3049
    %v3602 = vunpack.c.l.b16 %v3050
    %v3603 = vunpack.c.h.b16 %v3050
    %v3604 = vunpack.c.l.b16 %v3051
    %v3605 = vunpack.c.h.b16 %v3051
    %v3606 = vunpack.c.l.b16 %v3052
    %v3607 = vunpack.c.h.b16 %v3052
    %v3608 = vunpack.c.l.b16 %v3053
    %v3609 = vunpack.c.h.b16 %v3053
    %v3610 = vunpack.c.l.b16 %v3054
    %v3611 = vunpack.c.h.b16 %v3054
    %v3612 = vunpack.c.l.b16 %v3055
    %v3613 = vunpack.c.h.b16 %v3055
    %v3614 = vunpack.c.l.b16 %v3056
    %v3615 = vunpack.c.h.b16 %v3056
    %v3616 = vunpack.c.l.b16 %v3057
    %v3617 = vunpack.c.h.b16 %v3057
    %v3618 = vunpack.c.l.b16 %v3058
    %v3619 = vunpack.c.h.b16 %v3058
    %v3620 = vunpack.c.l.b16 %v3059
    %v3621 = vunpack.c.h.b16 %v3059
    %v3622 = vunpack.c.l.b16 %v3060
    %v3623 = vunpack.c.h.b16 %v3060
    %v3624 = vunpack.c.l.b16 %v3061
    %v3625 = vunpack.c.h.b16 %v3061
    %v3626 = vunpack.c.l.b16 %v3062
    %v3627 = vunpack.c.h.b16 %v3062
    %v3628 = vunpack.c.l.b16 %v3063
    %v3629 = vunpack.c.h.b16 %v3063
    %v3630 = vunpack.c.l.b16 %v3064
    %v3631 = vunpack.c.h.b16 %v3064
    %v3632 = vunpack.c.l.b16 %v3065
    %v3633 = vunpack.c.h.b16 %v3065
    %v3634 = vunpack.c.l.b16 %v3066
    %v3635 = vunpack.c.h.b16 %v3066
    %v3636 = vunpack.c.l.b16 %v3067
    %v3637 = vunpack.c.h.b16 %v3067
    %v3638 = vunpack.c.l.b16 %v3068
    %v3639 = vunpack.c.h.b16 %v3068
    %v3640 = vunpack.c.l.b16 %v3069
    %v3641 = vunpack.c.h.b16 %v3069
    %v3642 = vunpack.c.l.b16 %v3070
    %v3643 = vunpack.c.h.b16 %v3070
    %v3644 = vunpack.c.l.b16 %v3071
    %v3645 = vunpack.c.h.b16 %v3071
    %v3646 = vunpack.c.l.b16 %v3072
    %v3647 = vunpack.c.h.b16 %v3072
    %v3648 = vunpack.c.l.b16 %v3073
    %v3649 = vunpack.c.h.b16 %v3073
    %v3650 = vunpack.c.l.b16 %v3074
    %v3651 = vunpack.c.h.b16 %v3074
    %v3652 = vunpack.c.l.b16 %v3075
    %v3653 = vunpack.c.h.b16 %v3075
    %v3654 = vunpack.c.l.b16 %v3076
    %v3655 = vunpack.c.h.b16 %v3076
    %v3656 = vunpack.c.l.b16 %v3077
    %v3657 = vunpack.c.h.b16 %v3077
    %v3658 = vunpack.c.l.b16 %v3078
    %v3659 = vunpack.c.h.b16 %v3078
    %v3660 = vunpack.c.l.b16 %v3079
    %v3661 = vunpack.c.h.b16 %v3079
    %v3662 = vunpack.c.l.b16 %v3080
    %v3663 = vunpack.c.h.b16 %v3080
    %v3664 = vunpack.c.l.b16 %v3081
    %v3665 = vunpack.c.h.b16 %v3081
    %v3666 = vunpack.c.l.b16 %v3082
    %v3667 = vunpack.c.h.b16 %v3082
    %v3668 = vunpack.c.l.b16 %v3083
    %v3669 = vunpack.c.h.b16 %v3083
    %v3670 = vunpack.c.l.b16 %v3084
    %v3671 = vunpack.c.h.b16 %v3084
    %v3672 = vunpack.c.l.b16 %v3085
    %v3673 = vunpack.c.h.b16 %v3085
    %v3674 = vunpack.c.l.b16 %v3086
    %v3675 = vunpack.c.h.b16 %v3086
    %v3676 = vunpack.c.l.b16 %v3087
    %v3677 = vunpack.c.h.b16 %v3087
    %v3678 = vunpack.c.l.b16 %v3088
    %v3679 = vunpack.c.h.b16 %v3088
    %v3680 = vunpack.c.l.b16 %v3089
    %v3681 = vunpack.c.h.b16 %v3089
    %v3682 = vunpack.c.l.b16 %v3090
    %v3683 = vunpack.c.h.b16 %v3090
    %v3684 = vunpack.c.l.b16 %v3091
    %v3685 = vunpack.c.h.b16 %v3091
    %v3686 = vunpack.c.l.b16 %v3092
    %v3687 = vunpack.c.h.b16 %v3092
    %v3688 = vunpack.c.l.b16 %v3093
    %v3689 = vunpack.c.h.b16 %v3093
    %v3690 = vunpack.c.l.b16 %v3094
    %v3691 = vunpack.c.h.b16 %v3094
    %v3692 = vunpack.c.l.b16 %v3095
    %v3693 = vunpack.c.h.b16 %v3095
    %v3694 = vunpack.c.l.b16 %v3096
    %v3695 = vunpack.c.h.b16 %v3096
    %v3696 = vunpack.c.l.b16 %v3097
    %v3697 = vunpack.c.h.b16 %v3097
    %v3698 = vunpack.c.l.b16 %v3098
    %v3699 = vunpack.c.h.b16 %v3098
    %v3700 = vunpack.c.l.b16 %v3099
    %v3701 = vunpack.c.h.b16 %v3099
    %v3702 = vunpack.c.l.b16 %v3100
    %v3703 = vunpack.c.h.b16 %v3100
    %v3704 = vunpack.c.l.b16 %v3101
    %v3705 = vunpack.c.h.b16 %v3101
    %v3706 = vunpack.c.l.b16 %v3102
    %v3707 = vunpack.c.h.b16 %v3102
    %v3708 = vunpack.c.l.b16 %v3103
    %v3709 = vunpack.c.h.b16 %v3103
    %v3710 = vunpack.c.l.b16 %v3104
    %v3711 = vunpack.c.h.b16 %v3104
    %v3712 = vunpack.c.l.b16 %v3105
    %v3713 = vunpack.c.h.b16 %v3105
    %v3714 = vunpack.c.l.b16 %v3106
    %v3715 = vunpack.c.h.b16 %v3106
    %v3716 = vunpack.c.l.b16 %v3107
    %v3717 = vunpack.c.h.b16 %v3107
    %v3718 = vunpack.c.l.b16 %v3108
    %v3719 = vunpack.c.h.b16 %v3108
    %v3720 = vunpack.c.l.b16 %v3109
    %v3721 = vunpack.c.h.b16 %v3109
    %v3722 = vunpack.c.l.b16 %v3110
    %v3723 = vunpack.c.h.b16 %v3110
    %v3724 = vunpack.c.l.b16 %v3111
    %v3725 = vunpack.c.h.b16 %v3111
    %v3726 = vunpack.c.l.b16 %v3112
    %v3727 = vunpack.c.h.b16 %v3112
    %v3728 = vunpack.c.l.b16 %v3113
    %v3729 = vunpack.c.h.b16 %v3113
    %v3730 = vunpack.c.l.b16 %v3114
    %v3731 = vunpack.c.h.b16 %v3114
    %v3732 = vunpack.c.l.b16 %v3115
    %v3733 = vunpack.c.h.b16 %v3115
    %v3734 = vunpack.c.l.b16 %v3116
    %v3735 = vunpack.c.h.b16 %v3116
    %v3736 = vunpack.c.l.b16 %v3117
    %v3737 = vunpack.c.h.b16 %v3117
    %v3738 = vunpack.c.l.b16 %v3118
    %v3739 = vunpack.c.h.b16 %v3118
    %v3740 = vunpack.c.l.b16 %v3119
    %v3741 = vunpack.c.h.b16 %v3119
    %v3742 = vunpack.c.l.b16 %v3120
    %v3743 = vunpack.c.h.b16 %v3120
    %v3744 = vunpack.c.l.b16 %v3121
    %v3745 = vunpack.c.h.b16 %v3121
    %v3746 = vunpack.c.l.b16 %v3122
    %v3747 = vunpack.c.h.b16 %v3122
    %v3748 = vunpack.c.l.b16 %v3123
    %v3749 = vunpack.c.h.b16 %v3123
    %v3750 = vunpack.c.l.b16 %v3124
    %v3751 = vunpack.c.h.b16 %v3124
    %v3752 = vunpack.c.l.b16 %v3125
    %v3753 = vunpack.c.h.b16 %v3125
    %v3754 = vunpack.c.l.b16 %v3126
    %v3755 = vunpack.c.h.b16 %v3126
    %v3756 = vunpack.c.l.b16 %v3127
    %v3757 = vunpack.c.h.b16 %v3127
    %v3758 = vunpack.c.l.b16 %v3128
    %v3759 = vunpack.c.h.b16 %v3128
    %v3760 = vunpack.c.l.b16 %v3129
    %v3761 = vunpack.c.h.b16 %v3129
    %v3762 = vunpack.c.l.b16 %v3130
    %v3763 = vunpack.c.h.b16 %v3130
    %v3764 = vunpack.c.l.b16 %v3131
    %v3765 = vunpack.c.h.b16 %v3131
    %v3766 = vunpack.c.l.b16 %v3132
    %v3767 = vunpack.c.h.b16 %v3132
    %v3768 = vunpack.c.l.b16 %v3133
    %v3769 = vunpack.c.h.b16 %v3133
    %v3770 = vunpack.c.l.b16 %v3134
    %v3771 = vunpack.c.h.b16 %v3134
    %v3772 = vunpack.c.l.b16 %v3135
    %v3773 = vunpack.c.h.b16 %v3135
    %v3774 = vunpack.c.l.b16 %v3136
    %v3775 = vunpack.c.h.b16 %v3136
    %v3776 = vunpack.c.l.b16 %v3137
    %v3777 = vunpack.c.h.b16 %v3137
    %v3778 = vunpack.c.l.b16 %v3138
    %v3779 = vunpack.c.h.b16 %v3138
    %v3780 = vunpack.c.l.b16 %v3139
    %v3781 = vunpack.c.h.b16 %v3139
    %v3782 = vunpack.c.l.b16 %v3140
    %v3783 = vunpack.c.h.b16 %v3140
    %v3784 = vunpack.c.l.b16 %v3141
    %v3785 = vunpack.c.h.b16 %v3141
    %v3786 = vunpack.c.l.b16 %v3142
    %v3787 = vunpack.c.h.b16 %v3142
    %v3788 = vunpack.c.l.b16 %v3143
    %v3789 = vunpack.c.h.b16 %v3143
    %v3790 = vunpack.c.l.b16 %v3144
    %v3791 = vunpack.c.h.b16 %v3144
    %v3792 = vunpack.c.l.b16 %v3145
    %v3793 = vunpack.c.h.b16 %v3145
    %v3794 = vunpack.c.l.b16 %v3146
    %v3795 = vunpack.c.h.b16 %v3146
    %v3796 = vunpack.c.l.b16 %v3147
    %v3797 = vunpack.c.h.b16 %v3147
    %v3798 = vunpack.c.l.b16 %v3148
    %v3799 = vunpack.c.h.b16 %v3148
    %v3800 = vunpack.c.l.b16 %v3149
    %v3801 = vunpack.c.h.b16 %v3149
    %v3802 = vunpack.c.l.b16 %v3150
    %v3803 = vunpack.c.h.b16 %v3150
    %v3804 = vunpack.c.l.b16 %v3151
    %v3805 = vunpack.c.h.b16 %v3151
    %v3806 = vunpack.c.l.b16 %v3152
    %v3807 = vunpack.c.h.b16 %v3152
    %v3808 = vunpack.c.l.b16 %v3153
    %v3809 = vunpack.c.h.b16 %v3153
    %v3810 = vunpack.c.l.b16 %v3154
    %v3811 = vunpack.c.h.b16 %v3154
    %v3812 = vunpack.c.l.b16 %v3155
    %v3813 = vunpack.c.h.b16 %v3155
    %v3814 = vunpack.c.l.b16 %v3156
    %v3815 = vunpack.c.h.b16 %v3156
    %v3816 = vunpack.c.l.b16 %v3157
    %v3817 = vunpack.c.h.b16 %v3157
    %v3818 = vunpack.c.l.b16 %v3158
    %v3819 = vunpack.c.h.b16 %v3158
    %v3820 = vunpack.c.l.b16 %v3159
    %v3821 = vunpack.c.h.b16 %v3159
    %v3822 = vunpack.c.l.b16 %v3160
    %v3823 = vunpack.c.h.b16 %v3160
    %v3824 = vunpack.c.l.b16 %v3161
    %v3825 = vunpack.c.h.b16 %v3161
    %v3826 = vunpack.c.l.b16 %v3162
    %v3827 = vunpack.c.h.b16 %v3162
    %v3828 = vunpack.c.l.b16 %v3163
    %v3829 = vunpack.c.h.b16 %v3163
    %v3830 = vunpack.c.l.b16 %v3164
    %v3831 = vunpack.c.h.b16 %v3164
    %v3832 = vunpack.c.l.b16 %v3165
    %v3833 = vunpack.c.h.b16 %v3165
    %v3834 = vunpack.c.l.b16 %v3166
    %v3835 = vunpack.c.h.b16 %v3166
    %v3836 = vunpack.c.l.b16 %v3167
    %v3837 = vunpack.c.h.b16 %v3167
    %v3838 = vunpack.c.l.b16 %v3168
    %v3839 = vunpack.c.h.b16 %v3168
    %v3840 = vunpack.c.l.b16 %v3169
    %v3841 = vunpack.c.h.b16 %v3169
    %v3842 = vunpack.c.l.b16 %v3170
    %v3843 = vunpack.c.h.b16 %v3170
    %v3844 = vunpack.c.l.b16 %v3171
    %v3845 = vunpack.c.h.b16 %v3171
    %v3846 = vunpack.c.l.b16 %v3172
    %v3847 = vunpack.c.h.b16 %v3172
    %v3848 = vunpack.c.l.b16 %v3173
    %v3849 = vunpack.c.h.b16 %v3173
    %v3850 = vunpack.c.l.b16 %v3174
    %v3851 = vunpack.c.h.b16 %v3174
    %v3852 = vunpack.c.l.b16 %v3175
    %v3853 = vunpack.c.h.b16 %v3175
    %v3854 = vunpack.c.l.b16 %v3176
    %v3855 = vunpack.c.h.b16 %v3176
    %v3856 = vunpack.c.l.b16 %v3177
    %v3857 = vunpack.c.h.b16 %v3177
    %v3858 = vunpack.c.l.b16 %v3178
    %v3859 = vunpack.c.h.b16 %v3178
    %v3860 = vunpack.c.l.b16 %v3179
    %v3861 = vunpack.c.h.b16 %v3179
    %v3862 = vunpack.c.l.b16 %v3180
    %v3863 = vunpack.c.h.b16 %v3180
    %v3864 = vunpack.c.l.b16 %v3181
    %v3865 = vunpack.c.h.b16 %v3181
    %v3866 = vunpack.c.l.b16 %v3182
    %v3867 = vunpack.c.h.b16 %v3182
    %v3868 = vunpack.c.l.b16 %v3183
    %v3869 = vunpack.c.h.b16 %v3183
    %v3870 = vunpack.c.l.b16 %v3184
    %v3871 = vunpack.c.h.b16 %v3184
    %v3872 = vunpack.c.l.b16 %v3185
    %v3873 = vunpack.c.h.b16 %v3185
    %v3874 = vunpack.c.l.b16 %v3186
    %v3875 = vunpack.c.h.b16 %v3186
    %v3876 = vunpack.c.l.b16 %v3187
    %v3877 = vunpack.c.h.b16 %v3187
    %v3878 = vunpack.c.l.b16 %v3188
    %v3879 = vunpack.c.h.b16 %v3188
    %v3880 = vunpack.c.l.b16 %v3189
    %v3881 = vunpack.c.h.b16 %v3189
    %v3882 = vunpack.c.l.b16 %v3190
    %v3883 = vunpack.c.h.b16 %v3190
    %v3884 = vunpack.c.l.b16 %v3191
    %v3885 = vunpack.c.h.b16 %v3191
    %v3886 = vunpack.c.l.b16 %v3192
    %v3887 = vunpack.c.h.b16 %v3192
    %v3888 = vunpack.c.l.b16 %v3193
    %v3889 = vunpack.c.h.b16 %v3193
    %v3890 = vunpack.c.l.b16 %v3194
    %v3891 = vunpack.c.h.b16 %v3194
    %v3892 = vunpack.c.l.b16 %v3195
    %v3893 = vunpack.c.h.b16 %v3195
    %v3894 = vunpack.c.l.b16 %v3196
    %v3895 = vunpack.c.h.b16 %v3196
    %v3896 = vunpack.c.l.b16 %v3197
    %v3897 = vunpack.c.h.b16 %v3197
    %v3898 = vunpack.c.l.b16 %v3198
    %v3899 = vunpack.c.h.b16 %v3198
    %v3900 = vunpack.c.l.b16 %v3199
    %v3901 = vunpack.c.h.b16 %v3199
    %v3902 = vunpack.c.l.b16 %v3200
    %v3903 = vunpack.c.h.b16 %v3200
    %v3904 = vunpack.c.l.b16 %v3201
    %v3905 = vunpack.c.h.b16 %v3201
    %v3906 = vunpack.c.l.b16 %v3202
    %v3907 = vunpack.c.h.b16 %v3202
    %v3908 = vunpack.c.l.b16 %v3203
    %v3909 = vunpack.c.h.b16 %v3203
    %v3910 = vunpack.c.l.b16 %v3204
    %v3911 = vunpack.c.h.b16 %v3204
    %v3912 = vunpack.c.l.b16 %v3205
    %v3913 = vunpack.c.h.b16 %v3205
    %v3914 = vunpack.c.l.b16 %v3206
    %v3915 = vunpack.c.h.b16 %v3206
    %v3916 = vunpack.c.l.b16 %v3207
    %v3917 = vunpack.c.h.b16 %v3207
    %v3918 = vunpack.c.l.b16 %v3208
    %v3919 = vunpack.c.h.b16 %v3208
    %v3920 = vunpack.c.l.b16 %v3209
    %v3921 = vunpack.c.h.b16 %v3209
    %v3922 = vunpack.c.l.b16 %v3210
    %v3923 = vunpack.c.h.b16 %v3210
    %v3924 = vunpack.c.l.b16 %v3211
    %v3925 = vunpack.c.h.b16 %v3211
    %v3926 = vunpack.c.l.b16 %v3212
    %v3927 = vunpack.c.h.b16 %v3212
    %v3928 = vunpack.c.l.b16 %v3213
    %v3929 = vunpack.c.h.b16 %v3213
    %v3930 = vunpack.c.l.b16 %v3214
    %v3931 = vunpack.c.h.b16 %v3214
    %v3932 = vunpack.c.l.b16 %v3215
    %v3933 = vunpack.c.h.b16 %v3215
    %v3934 = vunpack.c.l.b16 %v3216
    %v3935 = vunpack.c.h.b16 %v3216
    %v3936 = vunpack.c.l.b16 %v3217
    %v3937 = vunpack.c.h.b16 %v3217
    %v3938 = vunpack.c.l.b16 %v3218
    %v3939 = vunpack.c.h.b16 %v3218
    %v3940 = vunpack.c.l.b16 %v3219
    %v3941 = vunpack.c.h.b16 %v3219
    %v3942 = vunpack.c.l.b16 %v3220
    %v3943 = vunpack.c.h.b16 %v3220
    %v3944 = vunpack.c.l.b16 %v3221
    %v3945 = vunpack.c.h.b16 %v3221
    %v3946 = vunpack.c.l.b16 %v3222
    %v3947 = vunpack.c.h.b16 %v3222
    %v3948 = vunpack.c.l.b16 %v3223
    %v3949 = vunpack.c.h.b16 %v3223
    %v3950 = vunpack.c.l.b16 %v3224
    %v3951 = vunpack.c.h.b16 %v3224
    %v3952 = vunpack.c.l.b16 %v3225
    %v3953 = vunpack.c.h.b16 %v3225
    %v3954 = vunpack.c.l.b16 %v3226
    %v3955 = vunpack.c.h.b16 %v3226
    %v3956 = vunpack.c.l.b16 %v3227
    %v3957 = vunpack.c.h.b16 %v3227
    %v3958 = vunpack.c.l.b16 %v3228
    %v3959 = vunpack.c.h.b16 %v3228
    %v3960 = vunpack.c.l.b16 %v3229
    %v3961 = vunpack.c.h.b16 %v3229
    %v3962 = vunpack.c.l.b16 %v3230
    %v3963 = vunpack.c.h.b16 %v3230
    %v3964 = vunpack.c.l.b16 %v3231
    %v3965 = vunpack.c.h.b16 %v3231
    %v3966 = vunpack.c.l.b16 %v3232
    %v3967 = vunpack.c.h.b16 %v3232
    %v3968 = vunpack.c.l.b16 %v3233
    %v3969 = vunpack.c.h.b16 %v3233
    %v3970 = vunpack.c.l.b16 %v3234
    %v3971 = vunpack.c.h.b16 %v3234
    %v3972 = vunpack.c.l.b16 %v3235
    %v3973 = vunpack.c.h.b16 %v3235
    %v3974 = vunpack.c.l.b16 %v3236
    %v3975 = vunpack.c.h.b16 %v3236
    %v3976 = vunpack.c.l.b16 %v3237
    %v3977 = vunpack.c.h.b16 %v3237
    %v3978 = vunpack.c.l.b16 %v3238
    %v3979 = vunpack.c.h.b16 %v3238
    %v3980 = vunpack.c.l.b16 %v3239
    %v3981 = vunpack.c.h.b16 %v3239
    %v3982 = vunpack.c.l.b16 %v3240
    %v3983 = vunpack.c.h.b16 %v3240
    %v3984 = vunpack.c.l.b16 %v3241
    %v3985 = vunpack.c.h.b16 %v3241
    %v3986 = vunpack.c.l.b16 %v3242
    %v3987 = vunpack.c.h.b16 %v3242
    %v3988 = vunpack.c.l.b16 %v3243
    %v3989 = vunpack.c.h.b16 %v3243
    %v3990 = vunpack.c.l.b16 %v3244
    %v3991 = vunpack.c.h.b16 %v3244
    %v3992 = vunpack.c.l.b16 %v3245
    %v3993 = vunpack.c.h.b16 %v3245
    %v3994 = vunpack.c.l.b16 %v3246
    %v3995 = vunpack.c.h.b16 %v3246
    %v3996 = vunpack.c.l.b16 %v3247
    %v3997 = vunpack.c.h.b16 %v3247
    %v3998 = vunpack.c.l.b16 %v3248
    %v3999 = vunpack.c.h.b16 %v3248
    %v4000 = vunpack.c.l.b16 %v3249
    %v4001 = vunpack.c.h.b16 %v3249
    %v4002 = vunpack.c.l.b16 %v3250
    %v4003 = vunpack.c.h.b16 %v3250
    %v4004 = vunpack.c.l.b16 %v3251
    %v4005 = vunpack.c.h.b16 %v3251
    %v4006 = vunpack.c.l.b16 %v3252
    %v4007 = vunpack.c.h.b16 %v3252
    %v4008 = vunpack.c.l.b16 %v3253
    %v4009 = vunpack.c.h.b16 %v3253
    %v4010 = vunpack.c.l.b16 %v3254
    %v4011 = vunpack.c.h.b16 %v3254
    %v4012 = vunpack.c.l.b16 %v3255
    %v4013 = vunpack.c.h.b16 %v3255
    %v4014 = vunpack.c.l.b16 %v3256
    %v4015 = vunpack.c.h.b16 %v3256
    %v4016 = vunpack.c.l.b16 %v3257
    %v4017 = vunpack.c.h.b16 %v3257
    %v4018 = vunpack.c.l.b16 %v3258
    %v4019 = vunpack.c.h.b16 %v3258
    %v4020 = vunpack.c.l.b16 %v3259
    %v4021 = vunpack.c.h.b16 %v3259
    %v4022 = vunpack.c.l.b16 %v3260
    %v4023 = vunpack.c.h.b16 %v3260
    %v4024 = vunpack.c.l.b16 %v3261
    %v4025 = vunpack.c.h.b16 %v3261
    %v4026 = vunpack.c.l.b16 %v3262
    %v4027 = vunpack.c.h.b16 %v3262
    %v4028 = vunpack.c.l.b16 %v3263
    %v4029 = vunpack.c.h.b16 %v3263
    %v4030 = vunpack.c.l.b16 %v3264
    %v4031 = vunpack.c.h.b16 %v3264
    %v4032 = vunpack.c.l.b16 %v3265
    %v4033 = vunpack.c.h.b16 %v3265
    %v4034 = vunpack.c.l.b16 %v3266
    %v4035 = vunpack.c.h.b16 %v3266
    %v4036 = vunpack.c.l.b16 %v3267
    %v4037 = vunpack.c.h.b16 %v3267
    %v4038 = vunpack.c.l.b16 %v3268
    %v4039 = vunpack.c.h.b16 %v3268
    %v4040 = vunpack.c.l.b16 %v3269
    %v4041 = vunpack.c.h.b16 %v3269
    %v4042 = vunpack.c.l.b16 %v3270
    %v4043 = vunpack.c.h.b16 %v3270
    %v4044 = vunpack.c.l.b16 %v3271
    %v4045 = vunpack.c.h.b16 %v3271
    %v4046 = vunpack.c.l.b16 %v3272
    %v4047 = vunpack.c.h.b16 %v3272
    %v4048 = vunpack.c.l.b16 %v3273
    %v4049 = vunpack.c.h.b16 %v3273
    %v4050 = vunpack.c.l.b16 %v3274
    %v4051 = vunpack.c.h.b16 %v3274
    %v4052 = vunpack.c.l.b16 %v3275
    %v4053 = vunpack.c.h.b16 %v3275
    %v4054 = vunpack.c.l.b16 %v3276
    %v4055 = vunpack.c.h.b16 %v3276
    %v4056 = vunpack.c.l.b16 %v3277
    %v4057 = vunpack.c.h.b16 %v3277
    %v4058 = vunpack.c.l.b16 %v3278
    %v4059 = vunpack.c.h.b16 %v3278
    %v4060 = vunpack.c.l.b16 %v3279
    %v4061 = vunpack.c.h.b16 %v3279
    %v4062 = vunpack.c.l.b16 %v3280
    %v4063 = vunpack.c.h.b16 %v3280
    %v4064 = vunpack.c.l.b16 %v3281
    %v4065 = vunpack.c.h.b16 %v3281
    %v4066 = vunpack.c.l.b16 %v3282
    %v4067 = vunpack.c.h.b16 %v3282
    %v4068 = vunpack.c.l.b16 %v3283
    %v4069 = vunpack.c.h.b16 %v3283
    %v4070 = vunpack.c.l.b16 %v3284
    %v4071 = vunpack.c.h.b16 %v3284
    %v4072 = vunpack.c.l.b16 %v3285
    %v4073 = vunpack.c.h.b16 %v3285
    %v4074 = vunpack.c.l.b16 %v3286
    %v4075 = vunpack.c.h.b16 %v3286
    %v4076 = vunpack.c.l.b16 %v3287
    %v4077 = vunpack.c.h.b16 %v3287
    %v4078 = vpack.c.b16 %v3570, %v3566
    %v4079 = vpack.c.b16 %v3571, %v3567
    %v4080 = vpack.c.b16 %v3572, %v3568
    %v4081 = vpack.c.b16 %v3573, %v3569
    %v4082 = vpack.c.b16 %v3578, %v3574
    %v4083 = vpack.c.b16 %v3579, %v3575
    %v4084 = vpack.c.b16 %v3580, %v3576
    %v4085 = vpack.c.b16 %v3581, %v3577
    %v4086 = vpack.c.b16 %v3586, %v3582
    %v4087 = vpack.c.b16 %v3587, %v3583
    %v4088 = vpack.c.b16 %v3588, %v3584
    %v4089 = vpack.c.b16 %v3589, %v3585
    %v4090 = vpack.c.b16 %v3594, %v3590
    %v4091 = vpack.c.b16 %v3595, %v3591
    %v4092 = vpack.c.b16 %v3596, %v3592
    %v4093 = vpack.c.b16 %v3597, %v3593
    %v4094 = vpack.c.b16 %v3602, %v3598
    %v4095 = vpack.c.b16 %v3603, %v3599
    %v4096 = vpack.c.b16 %v3604, %v3600
    %v4097 = vpack.c.b16 %v3605, %v3601
    %v4098 = vpack.c.b16 %v3610, %v3606
    %v4099 = vpack.c.b16 %v3611, %v3607
    %v4100 = vpack.c.b16 %v3612, %v3608
    %v4101 = vpack.c.b16 %v3613, %v3609
    %v4102 = vpack.c.b16 %v3618, %v3614
    %v4103 = vpack.c.b16 %v3619, %v3615
    %v4104 = vpack.c.b16 %v3620, %v3616
    %v4105 = vpack.c.b16 %v3621, %v3617
    %v4106 = vpack.c.b16 %v3626, %v3622
    %v4107 = vpack.c.b16 %v3627, %v3623
    %v4108 = vpack.c.b16 %v3628, %v3624
    %v4109 = vpack.c.b16 %v3629, %v3625
    %v4110 = vpack.c.b16 %v3634, %v3630
    %v4111 = vpack.c.b16 %v3635, %v3631
    %v4112 = vpack.c.b16 %v3636, %v3632
    %v4113 = vpack.c.b16 %v3637, %v3633
    %v4114 = vpack.c.b16 %v3642, %v3638
    %v4115 = vpack.c.b16 %v3643, %v3639
    %v4116 = vpack.c.b16 %v3644, %v3640
    %v4117 = vpack.c.b16 %v3645, %v3641
    %v4118 = vpack.c.b16 %v3650, %v3646
    %v4119 = vpack.c.b16 %v3651, %v3647
    %v4120 = vpack.c.b16 %v3652, %v3648
    %v4121 = vpack.c.b16 %v3653, %v3649
    %v4122 = vpack.c.b16 %v3658, %v3654
    %v4123 = vpack.c.b16 %v3659, %v3655
    %v4124 = vpack.c.b16 %v3660, %v3656
    %v4125 = vpack.c.b16 %v3661, %v3657
    %v4126 = vpack.c.b16 %v3666, %v3662
    %v4127 = vpack.c.b16 %v3667, %v3663
    %v4128 = vpack.c.b16 %v3668, %v3664
    %v4129 = vpack.c.b16 %v3669, %v3665
    %v4130 = vpack.c.b16 %v3674, %v3670
    %v4131 = vpack.c.b16 %v3675, %v3671
    %v4132 = vpack.c.b16 %v3676, %v3672
    %v4133 = vpack.c.b16 %v3677, %v3673
    %v4134 = vpack.c.b16 %v3682, %v3678
    %v4135 = vpack.c.b16 %v3683, %v3679
    %v4136 = vpack.c.b16 %v3684, %v3680
    %v4137 = vpack.c.b16 %v3685, %v3681
    %v4138 = vpack.c.b16 %v3690, %v3686
    %v4139 = vpack.c.b16 %v3691, %v3687
    %v4140 = vpack.c.b16 %v3692, %v3688
    %v4141 = vpack.c.b16 %v3693, %v3689
    %v4142 = vpack.c.b16 %v3698, %v3694
    %v4143 = vpack.c.b16 %v3699, %v3695
    %v4144 = vpack.c.b16 %v3700, %v3696
    %v4145 = vpack.c.b16 %v3701, %v3697
    %v4146 = vpack.c.b16 %v3706, %v3702
    %v4147 = vpack.c.b16 %v3707, %v3703
    %v4148 = vpack.c.b16 %v3708, %v3704
    %v4149 = vpack.c.b16 %v3709, %v3705
    %v4150 = vpack.c.b16 %v3714, %v3710
    %v4151 = vpack.c.b16 %v3715, %v3711
    %v4152 = vpack.c.b16 %v3716, %v3712
    %v4153 = vpack.c.b16 %v3717, %v3713
    %v4154 = vpack.c.b16 %v3722, %v3718
    %v4155 = vpack.c.b16 %v3723, %v3719
    %v4156 = vpack.c.b16 %v3724, %v3720
    %v4157 = vpack.c.b16 %v3725, %v3721
    %v4158 = vpack.c.b16 %v3730, %v3726
    %v4159 = vpack.c.b16 %v3731, %v3727
    %v4160 = vpack.c.b16 %v3732, %v3728
    %v4161 = vpack.c.b16 %v3733, %v3729
    %v4162 = vpack.c.b16 %v3738, %v3734
    %v4163 = vpack.c.b16 %v3739, %v3735
    %v4164 = vpack.c.b16 %v3740, %v3736
    %v4165 = vpack.c.b16 %v3741, %v3737
    %v4166 = vpack.c.b16 %v3746, %v3742
    %v4167 = vpack.c.b16 %v3747, %v3743
    %v4168 = vpack.c.b16 %v3748, %v3744
    %v4169 = vpack.c.b16 %v3749, %v3745
    %v4170 = vpack.c.b16 %v3754, %v3750
    %v4171 = vpack.c.b16 %v3755, %v3751
    %v4172 = vpack.c.b16 %v3756, %v3752
    %v4173 = vpack.c.b16 %v3757, %v3753
    %v4174 = vpack.c.b16 %v3762, %v3758
    %v4175 = vpack.c.b16 %v3763, %v3759
    %v4176 = vpack.c.b16 %v3764, %v3760
    %v4177 = vpack.c.b16 %v3765, %v3761
    %v4178 = vpack.c.b16 %v3770, %v3766
    %v4179 = vpack.c.b16 %v3771, %v3767
    %v4180 = vpack.c.b16 %v3772, %v3768
    %v4181 = vpack.c.b16 %v3773, %v3769
    %v4182 = vpack.c.b16 %v3778, %v3774
    %v4183 = vpack.c.b16 %v3779, %v3775
    %v4184 = vpack.c.b16 %v3780, %v3776
    %v4185 = vpack.c.b16 %v3781, %v3777
    %v4186 = vpack.c.b16 %v3786, %v3782
    %v4187 = vpack.c.b16 %v3787, %v3783
    %v4188 = vpack.c.b16 %v3788, %v3784
    %v4189 = vpack.c.b16 %v3789, %v3785
    %v4190 = vpack.c.b16 %v3794, %v3790
    %v4191 = vpack.c.b16 %v3795, %v3791
    %v4192 = vpack.c.b16 %v3796, %v3792
    %v4193 = vpack.c.b16 %v3797, %v3793
    %v4194 = vpack.c.b16 %v3802, %v3798
    %v4195 = vpack.c.b16 %v3803, %v3799
    %v4196 = vpack.c.b16 %v3804, %v3800
    %v4197 = vpack.c.b16 %v3805, %v3801
    %v4198 = vpack.c.b16 %v3810, %v3806
    %v4199 = vpack.c.b16 %v3811, %v3807
    %v4200 = vpack.c.b16 %v3812, %v3808
    %v4201 = vpack.c.b16 %v3813, %v3809
    %v4202 = vpack.c.b16 %v3818, %v3814
    %v4203 = vpack.c.b16 %v3819, %v3815
    %v4204 = vpack.c.b16 %v3820, %v3816
    %v4205 = vpack.c.b16 %v3821, %v3817
    %v4206 = vpack.c.b16 %v3826, %v3822
    %v4207 = vpack.c.b16 %v3827, %v3823
    %v4208 = vpack.c.b16 %v3828, %v3824
    %v4209 = vpack.c.b16 %v3829, %v3825
    %v4210 = vpack.c.b16 %v3834, %v3830
    %v4211 = vpack.c.b16 %v3835, %v3831
    %v4212 = vpack.c.b16 %v3836, %v3832
    %v4213 = vpack.c.b16 %v3837, %v3833
    %v4214 = vpack.c.b16 %v3842, %v3838
    %v4215 = vpack.c.b16 %v3843, %v3839
    %v4216 = vpack.c.b16 %v3844, %v3840
    %v4217 = vpack.c.b16 %v3845, %v3841
    %v4218 = vpack.c.b16 %v3850, %v3846
    %v4219 = vpack.c.b16 %v3851, %v3847
    %v4220 = vpack.c.b16 %v3852, %v3848
    %v4221 = vpack.c.b16 %v3853, %v3849
    %v4222 = vpack.c.b16 %v3858, %v3854
    %v4223 = vpack.c.b16 %v3859, %v3855
    %v4224 = vpack.c.b16 %v3860, %v3856
    %v4225 = vpack.c.b16 %v3861, %v3857
    %v4226 = vpack.c.b16 %v3866, %v3862
    %v4227 = vpack.c.b16 %v3867, %v3863
    %v4228 = vpack.c.b16 %v3868, %v3864
    %v4229 = vpack.c.b16 %v3869, %v3865
    %v4230 = vpack.c.b16 %v3874, %v3870
    %v4231 = vpack.c.b16 %v3875, %v3871
    %v4232 = vpack.c.b16 %v3876, %v3872
    %v4233 = vpack.c.b16 %v3877, %v3873
    %v4234 = vpack.c.b16 %v3882, %v3878
    %v4235 = vpack.c.b16 %v3883, %v3879
    %v4236 = vpack.c.b16 %v3884, %v3880
    %v4237 = vpack.c.b16 %v3885, %v3881
    %v4238 = vpack.c.b16 %v3890, %v3886
    %v4239 = vpack.c.b16 %v3891, %v3887
    %v4240 = vpack.c.b16 %v3892, %v3888
    %v4241 = vpack.c.b16 %v3893, %v3889
    %v4242 = vpack.c.b16 %v3898, %v3894
    %v4243 = vpack.c.b16 %v3899, %v3895
    %v4244 = vpack.c.b16 %v3900, %v3896
    %v4245 = vpack.c.b16 %v3901, %v3897
    %v4246 = vpack.c.b16 %v3906, %v3902
    %v4247 = vpack.c.b16 %v3907, %v3903
    %v4248 = vpack.c.b16 %v3908, %v3904
    %v4249 = vpack.c.b16 %v3909, %v3905
    %v4250 = vpack.c.b16 %v3914, %v3910
    %v4251 = vpack.c.b16 %v3915, %v3911
    %v4252 = vpack.c.b16 %v3916, %v3912
    %v4253 = vpack.c.b16 %v3917, %v3913
    %v4254 = vpack.c.b16 %v3922, %v3918
    %v4255 = vpack.c.b16 %v3923, %v3919
    %v4256 = vpack.c.b16 %v3924, %v3920
    %v4257 = vpack.c.b16 %v3925, %v3921
    %v4258 = vpack.c.b16 %v3930, %v3926
    %v4259 = vpack.c.b16 %v3931, %v3927
    %v4260 = vpack.c.b16 %v3932, %v3928
    %v4261 = vpack.c.b16 %v3933, %v3929
    %v4262 = vpack.c.b16 %v3938, %v3934
    %v4263 = vpack.c.b16 %v3939, %v3935
    %v4264 = vpack.c.b16 %v3940, %v3936
    %v4265 = vpack.c.b16 %v3941, %v3937
    %v4266 = vpack.c.b16 %v3946, %v3942
    %v4267 = vpack.c.b16 %v3947, %v3943
    %v4268 = vpack.c.b16 %v3948, %v3944
    %v4269 = vpack.c.b16 %v3949, %v3945
    %v4270 = vpack.c.b16 %v3954, %v3950
    %v4271 = vpack.c.b16 %v3955, %v3951
    %v4272 = vpack.c.b16 %v3956, %v3952
    %v4273 = vpack.c.b16 %v3957, %v3953
    %v4274 = vpack.c.b16 %v3962, %v3958
    %v4275 = vpack.c.b16 %v3963, %v3959
    %v4276 = vpack.c.b16 %v3964, %v3960
    %v4277 = vpack.c.b16 %v3965, %v3961
    %v4278 = vpack.c.b16 %v3970, %v3966
    %v4279 = vpack.c.b16 %v3971, %v3967
    %v4280 = vpack.c.b16 %v3972, %v3968
    %v4281 = vpack.c.b16 %v3973, %v3969
    %v4282 = vpack.c.b16 %v3978, %v3974
    %v4283 = vpack.c.b16 %v3979, %v3975
    %v4284 = vpack.c.b16 %v3980, %v3976
    %v4285 = vpack.c.b16 %v3981, %v3977
    %v4286 = vpack.c.b16 %v3986, %v3982
    %v4287 = vpack.c.b16 %v3987, %v3983
    %v4288 = vpack.c.b16 %v3988, %v3984
    %v4289 = vpack.c.b16 %v3989, %v3985
    %v4290 = vpack.c.b16 %v3994, %v3990
    %v4291 = vpack.c.b16 %v3995, %v3991
    %v4292 = vpack.c.b16 %v3996, %v3992
    %v4293 = vpack.c.b16 %v3997, %v3993
    %v4294 = vpack.c.b16 %v4002, %v3998
    %v4295 = vpack.c.b16 %v4003, %v3999
    %v4296 = vpack.c.b16 %v4004, %v4000
    %v4297 = vpack.c.b16 %v4005, %v4001
    %v4298 = vpack.c.b16 %v4010, %v4006
    %v4299 = vpack.c.b16 %v4011, %v4007
    %v4300 = vpack.c.b16 %v4012, %v4008
    %v4301 = vpack.c.b16 %v4013, %v4009
    %v4302 = vpack.c.b16 %v4018, %v4014
    %v4303 = vpack.c.b16 %v4019, %v4015
    %v4304 = vpack.c.b16 %v4020, %v4016
    %v4305 = vpack.c.b16 %v4021, %v4017
    %v4306 = vpack.c.b16 %v4026, %v4022
    %v4307 = vpack.c.b16 %v4027, %v4023
    %v4308 = vpack.c.b16 %v4028, %v4024
    %v4309 = vpack.c.b16 %v4029, %v4025
    %v4310 = vpack.c.b16 %v4034, %v4030
    %v4311 = vpack.c.b16 %v4035, %v4031
    %v4312 = vpack.c.b16 %v4036, %v4032
    %v4313 = vpack.c.b16 %v4037, %v4033
    %v4314 = vpack.c.b16 %v4042, %v4038
    %v4315 = vpack.c.b16 %v4043, %v4039
    %v4316 = vpack.c.b16 %v4044, %v4040
    %v4317 = vpack.c.b16 %v4045, %v4041
    %v4318 = vpack.c.b16 %v4050, %v4046
    %v4319 = vpack.c.b16 %v4051, %v4047
    %v4320 = vpack.c.b16 %v4052, %v4048
    %v4321 = vpack.c.b16 %v4053, %v4049
    %v4322 = vpack.c.b16 %v4058, %v4054
    %v4323 = vpack.c.b16 %v4059, %v4055
    %v4324 = vpack.c.b16 %v4060, %v4056
    %v4325 = vpack.c.b16 %v4061, %v4057
    %v4326 = vpack.c.b16 %v4066, %v4062
    %v4327 = vpack.c.b16 %v4067, %v4063
    %v4328 = vpack.c.b16 %v4068, %v4064
    %v4329 = vpack.c.b16 %v4069, %v4065
    %v4330 = vpack.c.b16 %v4074, %v4070
    %v4331 = vpack.c.b16 %v4075, %v4071
    %v4332 = vpack.c.b16 %v4076, %v4072
    %v4333 = vpack.c.b16 %v4077, %v4073
    %4590 = vmatprep.subr.bf16.mxu0 %v4079
    %4591 = vmatpush1.bf16.msra.mxu0 %v4078
    %4592 = vmatprep.subr.bf16.mxu0 %v4083
    %4593 = vmatpush1.bf16.msra.mxu0 %v4082
    %4594 = vmatprep.subr.bf16.mxu0 %v4087
    %4595 = vmatpush1.bf16.msra.mxu0 %v4086
    %4596 = vmatprep.subr.bf16.mxu0 %v4091
    %4597 = vmatpush1.bf16.msra.mxu0 %v4090
    %4598 = vmatprep.subr.bf16.mxu0 %v4095
    %4599 = vmatpush1.bf16.msra.mxu0 %v4094
    %4600 = vmatprep.subr.bf16.mxu0 %v4099
    %4601 = vmatpush1.bf16.msra.mxu0 %v4098
    %4602 = vmatprep.subr.bf16.mxu0 %v4103
    %4603 = vmatpush1.bf16.msra.mxu0 %v4102
    %4604 = vmatprep.subr.bf16.mxu0 %v4107
    %4605 = vmatpush1.bf16.msra.mxu0 %v4106
    %4606 = vmatprep.subr.bf16.mxu0 %v4111
    %4607 = vmatpush1.bf16.msra.mxu0 %v4110
    %4608 = vmatprep.subr.bf16.mxu0 %v4115
    %4609 = vmatpush1.bf16.msra.mxu0 %v4114
    %4610 = vmatprep.subr.bf16.mxu0 %v4119
    %4611 = vmatpush1.bf16.msra.mxu0 %v4118
    %4612 = vmatprep.subr.bf16.mxu0 %v4123
    %4613 = vmatpush1.bf16.msra.mxu0 %v4122
    %4614 = vmatprep.subr.bf16.mxu0 %v4127
    %4615 = vmatpush1.bf16.msra.mxu0 %v4126
    %4616 = vmatprep.subr.bf16.mxu0 %v4131
    %4617 = vmatpush1.bf16.msra.mxu0 %v4130
    %4618 = vmatprep.subr.bf16.mxu0 %v4135
    %4619 = vmatpush1.bf16.msra.mxu0 %v4134
    %4620 = vmatprep.subr.bf16.mxu0 %v4139
    %4621 = vmatpush1.bf16.msra.mxu0 %v4138
    %4622 = vmatprep.mubr.bf16.mxu0 %v3025
    %4623 = vmatmul.mubr.bf16.gmra.mrb[0].mxu0 %v3024
    %v4624 = vpop.f32.mrb[0].mxu0
    %v4625 = vadd.f32 %v3293, %v4624
    %v4626 = vpop.f32.mrb[0].mxu0
    %v4627 = vadd.f32 %v3297, %v4626
    %v4628 = vpop.f32.mrb[0].mxu0
    %v4629 = vadd.f32 %v3293, %v4628
    %v4630 = vpop.f32.mrb[0].mxu0
    %v4631 = vadd.f32 %v3297, %v4630
    %4632 = vdwg.mxu0
    %4633 = vmatprep.subr.bf16.mxu0 %v4143
    %4634 = vmatpush1.bf16.msra.mxu0 %v4142
    %4635 = vmatprep.subr.bf16.mxu0 %v4147
    %4636 = vmatpush1.bf16.msra.mxu0 %v4146
    %4637 = vmatprep.subr.bf16.mxu0 %v4151
    %4638 = vmatpush1.bf16.msra.mxu0 %v4150
    %4639 = vmatprep.subr.bf16.mxu0 %v4155
    %4640 = vmatpush1.bf16.msra.mxu0 %v4154
    %4641 = vmatprep.subr.bf16.mxu0 %v4159
    %4642 = vmatpush1.bf16.msra.mxu0 %v4158
    %4643 = vmatprep.subr.bf16.mxu0 %v4163
    %4644 = vmatpush1.bf16.msra.mxu0 %v4162
    %4645 = vmatprep.subr.bf16.mxu0 %v4167
    %4646 = vmatpush1.bf16.msra.mxu0 %v4166
    %4647 = vmatprep.subr.bf16.mxu0 %v4171
    %4648 = vmatpush1.bf16.msra.mxu0 %v4170
    %4649 = vmatprep.subr.bf16.mxu0 %v4175
    %4650 = vmatpush1.bf16.msra.mxu0 %v4174
    %4651 = vmatprep.subr.bf16.mxu0 %v4179
    %4652 = vmatpush1.bf16.msra.mxu0 %v4178
    %4653 = vmatprep.subr.bf16.mxu0 %v4183
    %4654 = vmatpush1.bf16.msra.mxu0 %v4182
    %4655 = vmatprep.subr.bf16.mxu0 %v4187
    %4656 = vmatpush1.bf16.msra.mxu0 %v4186
    %4657 = vmatprep.subr.bf16.mxu0 %v4191
    %4658 = vmatpush1.bf16.msra.mxu0 %v4190
    %4659 = vmatprep.subr.bf16.mxu0 %v4195
    %4660 = vmatpush1.bf16.msra.mxu0 %v4194
    %4661 = vmatprep.subr.bf16.mxu0 %v4199
    %4662 = vmatpush1.bf16.msra.mxu0 %v4198
    %4663 = vmatprep.subr.bf16.mxu0 %v4203
    %4664 = vmatpush1.bf16.msra.mxu0 %v4202
    %4665 = vmatprep.mubr.bf16.mxu0 %v3027
    %4666 = vmatmul.mubr.bf16.gmra.mrb[0].mxu0 %v3026
    %v4667 = vpop.f32.mrb[0].mxu0
    %v4668 = vadd.f32 %v4625, %v4667
    %v4669 = vpop.f32.mrb[0].mxu0
    %v4670 = vadd.f32 %v4627, %v4669
    %v4671 = vpop.f32.mrb[0].mxu0
    %v4672 = vadd.f32 %v4629, %v4671
    %v4673 = vpop.f32.mrb[0].mxu0
    %v4674 = vadd.f32 %v4631, %v4673
    %4675 = vdwg.mxu0
    %4676 = vmatprep.subr.bf16.mxu0 %v4207
    %4677 = vmatpush1.bf16.msra.mxu0 %v4206
    %4678 = vmatprep.subr.bf16.mxu0 %v4211
    %4679 = vmatpush1.bf16.msra.mxu0 %v4210
    %4680 = vmatprep.subr.bf16.mxu0 %v4215
    %4681 = vmatpush1.bf16.msra.mxu0 %v4214
    %4682 = vmatprep.subr.bf16.mxu0 %v4219
    %4683 = vmatpush1.bf16.msra.mxu0 %v4218
    %4684 = vmatprep.subr.bf16.mxu0 %v4223
    %4685 = vmatpush1.bf16.msra.mxu0 %v4222
    %4686 = vmatprep.subr.bf16.mxu0 %v4227
    %4687 = vmatpush1.bf16.msra.mxu0 %v4226
    %4688 = vmatprep.subr.bf16.mxu0 %v4231
    %4689 = vmatpush1.bf16.msra.mxu0 %v4230
    %4690 = vmatprep.subr.bf16.mxu0 %v4235
    %4691 = vmatpush1.bf16.msra.mxu0 %v4234
    %4692 = vmatprep.subr.bf16.mxu0 %v4239
    %4693 = vmatpush1.bf16.msra.mxu0 %v4238
    %4694 = vmatprep.subr.bf16.mxu0 %v4243
    %4695 = vmatpush1.bf16.msra.mxu0 %v4242
    %4696 = vmatprep.subr.bf16.mxu0 %v4247
    %4697 = vmatpush1.bf16.msra.mxu0 %v4246
    %4698 = vmatprep.subr.bf16.mxu0 %v4251
    %4699 = vmatpush1.bf16.msra.mxu0 %v4250
    %4700 = vmatprep.subr.bf16.mxu0 %v4255
    %4701 = vmatpush1.bf16.msra.mxu0 %v4254
    %4702 = vmatprep.subr.bf16.mxu0 %v4259
    %4703 = vmatpush1.bf16.msra.mxu0 %v4258
    %4704 = vmatprep.subr.bf16.mxu0 %v4263
    %4705 = vmatpush1.bf16.msra.mxu0 %v4262
    %4706 = vmatprep.subr.bf16.mxu0 %v4267
    %4707 = vmatpush1.bf16.msra.mxu0 %v4266
    %4708 = vmatprep.mubr.bf16.mxu0 %v3029
    %4709 = vmatmul.mubr.bf16.gmra.mrb[0].mxu0 %v3028
    %v4710 = vpop.f32.mrb[0].mxu0
    %v4711 = vadd.f32 %v4668, %v4710
    %v4712 = vpop.f32.mrb[0].mxu0
    %v4713 = vadd.f32 %v4670, %v4712
    %v4714 = vpop.f32.mrb[0].mxu0
    %v4715 = vadd.f32 %v4672, %v4714
    %v4716 = vpop.f32.mrb[0].mxu0
    %v4717 = vadd.f32 %v4674, %v4716
    %4718 = vdwg.mxu0
    %4719 = vmatprep.subr.bf16.mxu0 %v4271
    %4720 = vmatpush1.bf16.msra.mxu0 %v4270
    %4721 = vmatprep.subr.bf16.mxu0 %v4275
    %4722 = vmatpush1.bf16.msra.mxu0 %v4274
    %4723 = vmatprep.subr.bf16.mxu0 %v4279
    %4724 = vmatpush1.bf16.msra.mxu0 %v4278
    %4725 = vmatprep.subr.bf16.mxu0 %v4283
    %4726 = vmatpush1.bf16.msra.mxu0 %v4282
    %4727 = vmatprep.subr.bf16.mxu0 %v4287
    %4728 = vmatpush1.bf16.msra.mxu0 %v4286
    %4729 = vmatprep.subr.bf16.mxu0 %v4291
    %4730 = vmatpush1.bf16.msra.mxu0 %v4290
    %4731 = vmatprep.subr.bf16.mxu0 %v4295
    %4732 = vmatpush1.bf16.msra.mxu0 %v4294
    %4733 = vmatprep.subr.bf16.mxu0 %v4299
    %4734 = vmatpush1.bf16.msra.mxu0 %v4298
    %4735 = vmatprep.subr.bf16.mxu0 %v4303
    %4736 = vmatpush1.bf16.msra.mxu0 %v4302
    %4737 = vmatprep.subr.bf16.mxu0 %v4307
    %4738 = vmatpush1.bf16.msra.mxu0 %v4306
    %4739 = vmatprep.subr.bf16.mxu0 %v4311
    %4740 = vmatpush1.bf16.msra.mxu0 %v4310
    %4741 = vmatprep.subr.bf16.mxu0 %v4315
    %4742 = vmatpush1.bf16.msra.mxu0 %v4314
    %4743 = vmatprep.subr.bf16.mxu0 %v4319
    %4744 = vmatpush1.bf16.msra.mxu0 %v4318
    %4745 = vmatprep.subr.bf16.mxu0 %v4323
    %4746 = vmatpush1.bf16.msra.mxu0 %v4322
    %4747 = vmatprep.subr.bf16.mxu0 %v4327
    %4748 = vmatpush1.bf16.msra.mxu0 %v4326
    %4749 = vmatprep.subr.bf16.mxu0 %v4331
    %4750 = vmatpush1.bf16.msra.mxu0 %v4330
    %4751 = vmatprep.mubr.bf16.mxu0 %v3031
    %4752 = vmatmul.mubr.bf16.gmra.mrb[0].mxu0 %v3030
    %v4753 = vpop.f32.mrb[0].mxu0
    %v4754 = vadd.f32 %v4711, %v4753
    %v4755 = vpop.f32.mrb[0].mxu0
    %v4756 = vadd.f32 %v4713, %v4755
    %v4757 = vpop.f32.mrb[0].mxu0
    %v4758 = vadd.f32 %v4715, %v4757
    %v4759 = vpop.f32.mrb[0].mxu0
    %v4760 = vadd.f32 %v4717, %v4759
    %4761 = vdwg.mxu0
    %4762 = vmatprep.subr.bf16.mxu0 %v4081
    %4763 = vmatpush1.bf16.msra.mxu0 %v4080
    %4764 = vmatprep.subr.bf16.mxu0 %v4085
    %4765 = vmatpush1.bf16.msra.mxu0 %v4084
    %4766 = vmatprep.subr.bf16.mxu0 %v4089
    %4767 = vmatpush1.bf16.msra.mxu0 %v4088
    %4768 = vmatprep.subr.bf16.mxu0 %v4093
    %4769 = vmatpush1.bf16.msra.mxu0 %v4092
    %4770 = vmatprep.subr.bf16.mxu0 %v4097
    %4771 = vmatpush1.bf16.msra.mxu0 %v4096
    %4772 = vmatprep.subr.bf16.mxu0 %v4101
    %4773 = vmatpush1.bf16.msra.mxu0 %v4100
    %4774 = vmatprep.subr.bf16.mxu0 %v4105
    %4775 = vmatpush1.bf16.msra.mxu0 %v4104
    %4776 = vmatprep.subr.bf16.mxu0 %v4109
    %4777 = vmatpush1.bf16.msra.mxu0 %v4108
    %4778 = vmatprep.subr.bf16.mxu0 %v4113
    %4779 = vmatpush1.bf16.msra.mxu0 %v4112
    %4780 = vmatprep.subr.bf16.mxu0 %v4117
    %4781 = vmatpush1.bf16.msra.mxu0 %v4116
    %4782 = vmatprep.subr.bf16.mxu0 %v4121
    %4783 = vmatpush1.bf16.msra.mxu0 %v4120
    %4784 = vmatprep.subr.bf16.mxu0 %v4125
    %4785 = vmatpush1.bf16.msra.mxu0 %v4124
    %4786 = vmatprep.subr.bf16.mxu0 %v4129
    %4787 = vmatpush1.bf16.msra.mxu0 %v4128
    %4788 = vmatprep.subr.bf16.mxu0 %v4133
    %4789 = vmatpush1.bf16.msra.mxu0 %v4132
    %4790 = vmatprep.subr.bf16.mxu0 %v4137
    %4791 = vmatpush1.bf16.msra.mxu0 %v4136
    %4792 = vmatprep.subr.bf16.mxu0 %v4141
    %4793 = vmatpush1.bf16.msra.mxu0 %v4140
    %4794 = vmatprep.mubr.bf16.mxu0 %v3025
    %4795 = vmatmul.mubr.bf16.gmra.mrb[0].mxu0 %v3024
    %v4796 = vpop.f32.mrb[0].mxu0
    %v4797 = vadd.f32 %v3301, %v4796
    %v4798 = vpop.f32.mrb[0].mxu0
    %v4799 = vadd.f32 %v3305, %v4798
    %v4800 = vpop.f32.mrb[0].mxu0
    %v4801 = vadd.f32 %v3301, %v4800
    %v4802 = vpop.f32.mrb[0].mxu0
    %v4803 = vadd.f32 %v3305, %v4802
    %4804 = vdwg.mxu0
    %4805 = vmatprep.subr.bf16.mxu0 %v4145
    %4806 = vmatpush1.bf16.msra.mxu0 %v4144
    %4807 = vmatprep.subr.bf16.mxu0 %v4149
    %4808 = vmatpush1.bf16.msra.mxu0 %v4148
    %4809 = vmatprep.subr.bf16.mxu0 %v4153
    %4810 = vmatpush1.bf16.msra.mxu0 %v4152
    %4811 = vmatprep.subr.bf16.mxu0 %v4157
    %4812 = vmatpush1.bf16.msra.mxu0 %v4156
    %4813 = vmatprep.subr.bf16.mxu0 %v4161
    %4814 = vmatpush1.bf16.msra.mxu0 %v4160
    %4815 = vmatprep.subr.bf16.mxu0 %v4165
    %4816 = vmatpush1.bf16.msra.mxu0 %v4164
    %4817 = vmatprep.subr.bf16.mxu0 %v4169
    %4818 = vmatpush1.bf16.msra.mxu0 %v4168
    %4819 = vmatprep.subr.bf16.mxu0 %v4173
    %4820 = vmatpush1.bf16.msra.mxu0 %v4172
    %4821 = vmatprep.subr.bf16.mxu0 %v4177
    %4822 = vmatpush1.bf16.msra.mxu0 %v4176
    %4823 = vmatprep.subr.bf16.mxu0 %v4181
    %4824 = vmatpush1.bf16.msra.mxu0 %v4180
    %4825 = vmatprep.subr.bf16.mxu0 %v4185
    %4826 = vmatpush1.bf16.msra.mxu0 %v4184
    %4827 = vmatprep.subr.bf16.mxu0 %v4189
    %4828 = vmatpush1.bf16.msra.mxu0 %v4188
    %4829 = vmatprep.subr.bf16.mxu0 %v4193
    %4830 = vmatpush1.bf16.msra.mxu0 %v4192
    %4831 = vmatprep.subr.bf16.mxu0 %v4197
    %4832 = vmatpush1.bf16.msra.mxu0 %v4196
    %4833 = vmatprep.subr.bf16.mxu0 %v4201
    %4834 = vmatpush1.bf16.msra.mxu0 %v4200
    %4835 = vmatprep.subr.bf16.mxu0 %v4205
    %4836 = vmatpush1.bf16.msra.mxu0 %v4204
    %4837 = vmatprep.mubr.bf16.mxu0 %v3027
    %4838 = vmatmul.mubr.bf16.gmra.mrb[0].mxu0 %v3026
    %v4839 = vpop.f32.mrb[0].mxu0
    %v4840 = vadd.f32 %v4797, %v4839
    %v4841 = vpop.f32.mrb[0].mxu0
    %v4842 = vadd.f32 %v4799, %v4841
    %v4843 = vpop.f32.mrb[0].mxu0
    %v4844 = vadd.f32 %v4801, %v4843
    %v4845 = vpop.f32.mrb[0].mxu0
    %v4846 = vadd.f32 %v4803, %v4845
    %4847 = vdwg.mxu0
    %4848 = vmatprep.subr.bf16.mxu0 %v4209
    %4849 = vmatpush1.bf16.msra.mxu0 %v4208
    %4850 = vmatprep.subr.bf16.mxu0 %v4213
    %4851 = vmatpush1.bf16.msra.mxu0 %v4212
    %4852 = vmatprep.subr.bf16.mxu0 %v4217
    %4853 = vmatpush1.bf16.msra.mxu0 %v4216
    %4854 = vmatprep.subr.bf16.mxu0 %v4221
    %4855 = vmatpush1.bf16.msra.mxu0 %v4220
    %4856 = vmatprep.subr.bf16.mxu0 %v4225
    %4857 = vmatpush1.bf16.msra.mxu0 %v4224
    %4858 = vmatprep.subr.bf16.mxu0 %v4229
    %4859 = vmatpush1.bf16.msra.mxu0 %v4228
    %4860 = vmatprep.subr.bf16.mxu0 %v4233
    %4861 = vmatpush1.bf16.msra.mxu0 %v4232
    %4862 = vmatprep.subr.bf16.mxu0 %v4237
    %4863 = vmatpush1.bf16.msra.mxu0 %v4236
    %4864 = vmatprep.subr.bf16.mxu0 %v4241
    %4865 = vmatpush1.bf16.msra.mxu0 %v4240
    %4866 = vmatprep.subr.bf16.mxu0 %v4245
    %4867 = vmatpush1.bf16.msra.mxu0 %v4244
    %4868 = vmatprep.subr.bf16.mxu0 %v4249
    %4869 = vmatpush1.bf16.msra.mxu0 %v4248
    %4870 = vmatprep.subr.bf16.mxu0 %v4253
    %4871 = vmatpush1.bf16.msra.mxu0 %v4252
    %4872 = vmatprep.subr.bf16.mxu0 %v4257
    %4873 = vmatpush1.bf16.msra.mxu0 %v4256
    %4874 = vmatprep.subr.bf16.mxu0 %v4261
    %4875 = vmatpush1.bf16.msra.mxu0 %v4260
    %4876 = vmatprep.subr.bf16.mxu0 %v4265
    %4877 = vmatpush1.bf16.msra.mxu0 %v4264
    %4878 = vmatprep.subr.bf16.mxu0 %v4269
    %4879 = vmatpush1.bf16.msra.mxu0 %v4268
    %4880 = vmatprep.mubr.bf16.mxu0 %v3029
    %4881 = vmatmul.mubr.bf16.gmra.mrb[0].mxu0 %v3028
    %v4882 = vpop.f32.mrb[0].mxu0
    %v4883 = vadd.f32 %v4840, %v4882
    %v4884 = vpop.f32.mrb[0].mxu0
    %v4885 = vadd.f32 %v4842, %v4884
    %v4886 = vpop.f32.mrb[0].mxu0
    %v4887 = vadd.f32 %v4844, %v4886
    %v4888 = vpop.f32.mrb[0].mxu0
    %v4889 = vadd.f32 %v4846, %v4888
    %4890 = vdwg.mxu0
    %4891 = vmatprep.subr.bf16.mxu0 %v4273
    %4892 = vmatpush1.bf16.msra.mxu0 %v4272
    %4893 = vmatprep.subr.bf16.mxu0 %v4277
    %4894 = vmatpush1.bf16.msra.mxu0 %v4276
    %4895 = vmatprep.subr.bf16.mxu0 %v4281
    %4896 = vmatpush1.bf16.msra.mxu0 %v4280
    %4897 = vmatprep.subr.bf16.mxu0 %v4285
    %4898 = vmatpush1.bf16.msra.mxu0 %v4284
    %4899 = vmatprep.subr.bf16.mxu0 %v4289
    %4900 = vmatpush1.bf16.msra.mxu0 %v4288
    %4901 = vmatprep.subr.bf16.mxu0 %v4293
    %4902 = vmatpush1.bf16.msra.mxu0 %v4292
    %4903 = vmatprep.subr.bf16.mxu0 %v4297
    %4904 = vmatpush1.bf16.msra.mxu0 %v4296
    %4905 = vmatprep.subr.bf16.mxu0 %v4301
    %4906 = vmatpush1.bf16.msra.mxu0 %v4300
    %4907 = vmatprep.subr.bf16.mxu0 %v4305
    %4908 = vmatpush1.bf16.msra.mxu0 %v4304
    %4909 = vmatprep.subr.bf16.mxu0 %v4309
    %4910 = vmatpush1.bf16.msra.mxu0 %v4308
    %4911 = vmatprep.subr.bf16.mxu0 %v4313
    %4912 = vmatpush1.bf16.msra.mxu0 %v4312
    %4913 = vmatprep.subr.bf16.mxu0 %v4317
    %4914 = vmatpush1.bf16.msra.mxu0 %v4316
    %4915 = vmatprep.subr.bf16.mxu0 %v4321
    %4916 = vmatpush1.bf16.msra.mxu0 %v4320
    %4917 = vmatprep.subr.bf16.mxu0 %v4325
    %4918 = vmatpush1.bf16.msra.mxu0 %v4324
    %4919 = vmatprep.subr.bf16.mxu0 %v4329
    %4920 = vmatpush1.bf16.msra.mxu0 %v4328
    %4921 = vmatprep.subr.bf16.mxu0 %v4333
    %4922 = vmatpush1.bf16.msra.mxu0 %v4332
    %4923 = vmatprep.mubr.bf16.mxu0 %v3031
    %4924 = vmatmul.mubr.bf16.gmra.mrb[0].mxu0 %v3030
    %v4925 = vpop.f32.mrb[0].mxu0
    %v4926 = vadd.f32 %v4883, %v4925
    %v4927 = vpop.f32.mrb[0].mxu0
    %v4928 = vadd.f32 %v4885, %v4927
    %v4929 = vpop.f32.mrb[0].mxu0
    %v4930 = vadd.f32 %v4887, %v4929
    %v4931 = vpop.f32.mrb[0].mxu0
    %v4932 = vadd.f32 %v4889, %v4931
    %4933 = vdwg.mxu0
    %v4934 = vmax.f32 %v4754, 0.0
    %v4935 = vmax.f32 %v4756, 0.0
    %v4936 = vmax.f32 %v4926, 0.0
    %v4937 = vmax.f32 %v4928, 0.0
    %v4938 = vmax.f32 %v4758, 0.0
    %v4939 = vmax.f32 %v4760, 0.0
    %v4940 = vmax.f32 %v4930, 0.0
    %v4941 = vmax.f32 %v4932, 0.0
    %v4942 = vpack.c.bf16 %v4938, %v4934
    %v4943 = vpack.c.bf16 %v4939, %v4935
    %v4944 = vpack.c.bf16 %v4940, %v4936
    %v4945 = vpack.c.bf16 %v4941, %v4937
    %v4946 = vld [vmem:[#allocation6] sm:$0xff]
    %v4947 = vld [vmem:[#allocation6 + $0x8] sm:$0xff]
    %v4948 = vld [vmem:[#allocation6 + $0x10] sm:$0xff]
    %v4949 = vld [vmem:[#allocation6 + $0x18] sm:$0xff]
    %v4950 = vld [vmem:[#allocation6 + $0x20] sm:$0xff]
    %v4951 = vld [vmem:[#allocation6 + $0x28] sm:$0xff]
    %v4952 = vld [vmem:[#allocation6 + $0x30] sm:$0xff]
    %v4953 = vld [vmem:[#allocation6 + $0x38] sm:$0xff]
    %v4954 = vld [vmem:[#allocation6 + $0x40] sm:$0xff]
    %v4955 = vld [vmem:[#allocation6 + $0x48] sm:$0xff]
    %v4956 = vld [vmem:[#allocation6 + $0x50] sm:$0xff]
    %v4957 = vld [vmem:[#allocation6 + $0x58] sm:$0xff]
    %v4958 = vld [vmem:[#allocation6 + $0x60] sm:$0xff]
    %v4959 = vld [vmem:[#allocation6 + $0x68] sm:$0xff]
    %v4960 = vld [vmem:[#allocation6 + $0x70] sm:$0xff]
    %v4961 = vld [vmem:[#allocation6 + $0x78] sm:$0xff]
    %v4962 = vld [vmem:[#allocation6 + $0x80] sm:$0xff]
    %v4963 = vld [vmem:[#allocation6 + $0x88] sm:$0xff]
    %v4964 = vld [vmem:[#allocation6 + $0x90] sm:$0xff]
    %v4965 = vld [vmem:[#allocation6 + $0x98] sm:$0xff]
    %v4966 = vld [vmem:[#allocation6 + $0xa0] sm:$0xff]
    %v4967 = vld [vmem:[#allocation6 + $0xa8] sm:$0xff]
    %v4968 = vld [vmem:[#allocation6 + $0xb0] sm:$0xff]
    %v4969 = vld [vmem:[#allocation6 + $0xb8] sm:$0xff]
    %v4970 = vld [vmem:[#allocation6 + $0xc0] sm:$0xff]
    %v4971 = vld [vmem:[#allocation6 + $0xc8] sm:$0xff]
    %v4972 = vld [vmem:[#allocation6 + $0xd0] sm:$0xff]
    %v4973 = vld [vmem:[#allocation6 + $0xd8] sm:$0xff]
    %v4974 = vld [vmem:[#allocation6 + $0xe0] sm:$0xff]
    %v4975 = vld [vmem:[#allocation6 + $0xe8] sm:$0xff]
    %v4976 = vld [vmem:[#allocation6 + $0xf0] sm:$0xff]
    %v4977 = vld [vmem:[#allocation6 + $0xf8] sm:$0xff]
    %v4978 = vld [vmem:[#allocation6 + $0x100] sm:$0xff]
    %v4979 = vld [vmem:[#allocation6 + $0x108] sm:$0xff]
    %v4980 = vld [vmem:[#allocation6 + $0x110] sm:$0xff]
    %v4981 = vld [vmem:[#allocation6 + $0x118] sm:$0xff]
    %v4982 = vld [vmem:[#allocation6 + $0x120] sm:$0xff]
    %v4983 = vld [vmem:[#allocation6 + $0x128] sm:$0xff]
    %v4984 = vld [vmem:[#allocation6 + $0x130] sm:$0xff]
    %v4985 = vld [vmem:[#allocation6 + $0x138] sm:$0xff]
    %v4986 = vld [vmem:[#allocation6 + $0x140] sm:$0xff]
    %v4987 = vld [vmem:[#allocation6 + $0x148] sm:$0xff]
    %v4988 = vld [vmem:[#allocation6 + $0x150] sm:$0xff]
    %v4989 = vld [vmem:[#allocation6 + $0x158] sm:$0xff]
    %v4990 = vld [vmem:[#allocation6 + $0x160] sm:$0xff]
    %v4991 = vld [vmem:[#allocation6 + $0x168] sm:$0xff]
    %v4992 = vld [vmem:[#allocation6 + $0x170] sm:$0xff]
    %v4993 = vld [vmem:[#allocation6 + $0x178] sm:$0xff]
    %v4994 = vld [vmem:[#allocation6 + $0x180] sm:$0xff]
    %v4995 = vld [vmem:[#allocation6 + $0x188] sm:$0xff]
    %v4996 = vld [vmem:[#allocation6 + $0x190] sm:$0xff]
    %v4997 = vld [vmem:[#allocation6 + $0x198] sm:$0xff]
    %v4998 = vld [vmem:[#allocation6 + $0x1a0] sm:$0xff]
    %v4999 = vld [vmem:[#allocation6 + $0x1a8] sm:$0xff]
    %v5000 = vld [vmem:[#allocation6 + $0x1b0] sm:$0xff]
    %v5001 = vld [vmem:[#allocation6 + $0x1b8] sm:$0xff]
    %v5002 = vld [vmem:[#allocation6 + $0x1c0] sm:$0xff]
    %v5003 = vld [vmem:[#allocation6 + $0x1c8] sm:$0xff]
    %v5004 = vld [vmem:[#allocation6 + $0x1d0] sm:$0xff]
    %v5005 = vld [vmem:[#allocation6 + $0x1d8] sm:$0xff]
    %v5006 = vld [vmem:[#allocation6 + $0x1e0] sm:$0xff]
    %v5007 = vld [vmem:[#allocation6 + $0x1e8] sm:$0xff]
    %v5008 = vld [vmem:[#allocation6 + $0x1f0] sm:$0xff]
    %v5009 = vld [vmem:[#allocation6 + $0x1f8] sm:$0xff]
    %v5010 = vld [vmem:[#allocation10 + $0xc] sm:$0x3]
    %v5012 = vlaneseq
    %v5013 = vshrl.u32 %v5012, 7
    %v5014 = vsub.s32 0, %v5013
    %v5015 = vrot.slane %v5010, %v5014
    %v5016 = vlaneseq
    %v5017 = vshrl.u32 %v5016, 7
    %v5018 = vsub.s32 1, %v5017
    %v5019 = vrot.slane %v5010, %v5018
    %v5086 = vunpack.c.l.b16 %v4946
    %v5087 = vunpack.c.h.b16 %v4946
    %v5088 = vunpack.c.l.b16 %v4947
    %v5089 = vunpack.c.h.b16 %v4947
    %v5090 = vunpack.c.l.b16 %v4948
    %v5091 = vunpack.c.h.b16 %v4948
    %v5092 = vunpack.c.l.b16 %v4949
    %v5093 = vunpack.c.h.b16 %v4949
    %v5094 = vunpack.c.l.b16 %v4950
    %v5095 = vunpack.c.h.b16 %v4950
    %v5096 = vunpack.c.l.b16 %v4951
    %v5097 = vunpack.c.h.b16 %v4951
    %v5098 = vunpack.c.l.b16 %v4952
    %v5099 = vunpack.c.h.b16 %v4952
    %v5100 = vunpack.c.l.b16 %v4953
    %v5101 = vunpack.c.h.b16 %v4953
    %v5102 = vunpack.c.l.b16 %v4954
    %v5103 = vunpack.c.h.b16 %v4954
    %v5104 = vunpack.c.l.b16 %v4955
    %v5105 = vunpack.c.h.b16 %v4955
    %v5106 = vunpack.c.l.b16 %v4956
    %v5107 = vunpack.c.h.b16 %v4956
    %v5108 = vunpack.c.l.b16 %v4957
    %v5109 = vunpack.c.h.b16 %v4957
    %v5110 = vunpack.c.l.b16 %v4958
    %v5111 = vunpack.c.h.b16 %v4958
    %v5112 = vunpack.c.l.b16 %v4959
    %v5113 = vunpack.c.h.b16 %v4959
    %v5114 = vunpack.c.l.b16 %v4960
    %v5115 = vunpack.c.h.b16 %v4960
    %v5116 = vunpack.c.l.b16 %v4961
    %v5117 = vunpack.c.h.b16 %v4961
    %v5118 = vunpack.c.l.b16 %v4962
    %v5119 = vunpack.c.h.b16 %v4962
    %v5120 = vunpack.c.l.b16 %v4963
    %v5121 = vunpack.c.h.b16 %v4963
    %v5122 = vunpack.c.l.b16 %v4964
    %v5123 = vunpack.c.h.b16 %v4964
    %v5124 = vunpack.c.l.b16 %v4965
    %v5125 = vunpack.c.h.b16 %v4965
    %v5126 = vunpack.c.l.b16 %v4966
    %v5127 = vunpack.c.h.b16 %v4966
    %v5128 = vunpack.c.l.b16 %v4967
    %v5129 = vunpack.c.h.b16 %v4967
    %v5130 = vunpack.c.l.b16 %v4968
    %v5131 = vunpack.c.h.b16 %v4968
    %v5132 = vunpack.c.l.b16 %v4969
    %v5133 = vunpack.c.h.b16 %v4969
    %v5134 = vunpack.c.l.b16 %v4970
    %v5135 = vunpack.c.h.b16 %v4970
    %v5136 = vunpack.c.l.b16 %v4971
    %v5137 = vunpack.c.h.b16 %v4971
    %v5138 = vunpack.c.l.b16 %v4972
    %v5139 = vunpack.c.h.b16 %v4972
    %v5140 = vunpack.c.l.b16 %v4973
    %v5141 = vunpack.c.h.b16 %v4973
    %v5142 = vunpack.c.l.b16 %v4974
    %v5143 = vunpack.c.h.b16 %v4974
    %v5144 = vunpack.c.l.b16 %v4975
    %v5145 = vunpack.c.h.b16 %v4975
    %v5146 = vunpack.c.l.b16 %v4976
    %v5147 = vunpack.c.h.b16 %v4976
    %v5148 = vunpack.c.l.b16 %v4977
    %v5149 = vunpack.c.h.b16 %v4977
    %v5150 = vunpack.c.l.b16 %v4978
    %v5151 = vunpack.c.h.b16 %v4978
    %v5152 = vunpack.c.l.b16 %v4979
    %v5153 = vunpack.c.h.b16 %v4979
    %v5154 = vunpack.c.l.b16 %v4980
    %v5155 = vunpack.c.h.b16 %v4980
    %v5156 = vunpack.c.l.b16 %v4981
    %v5157 = vunpack.c.h.b16 %v4981
    %v5158 = vunpack.c.l.b16 %v4982
    %v5159 = vunpack.c.h.b16 %v4982
    %v5160 = vunpack.c.l.b16 %v4983
    %v5161 = vunpack.c.h.b16 %v4983
    %v5162 = vunpack.c.l.b16 %v4984
    %v5163 = vunpack.c.h.b16 %v4984
    %v5164 = vunpack.c.l.b16 %v4985
    %v5165 = vunpack.c.h.b16 %v4985
    %v5166 = vunpack.c.l.b16 %v4986
    %v5167 = vunpack.c.h.b16 %v4986
    %v5168 = vunpack.c.l.b16 %v4987
    %v5169 = vunpack.c.h.b16 %v4987
    %v5170 = vunpack.c.l.b16 %v4988
    %v5171 = vunpack.c.h.b16 %v4988
    %v5172 = vunpack.c.l.b16 %v4989
    %v5173 = vunpack.c.h.b16 %v4989
    %v5174 = vunpack.c.l.b16 %v4990
    %v5175 = vunpack.c.h.b16 %v4990
    %v5176 = vunpack.c.l.b16 %v4991
    %v5177 = vunpack.c.h.b16 %v4991
    %v5178 = vunpack.c.l.b16 %v4992
    %v5179 = vunpack.c.h.b16 %v4992
    %v5180 = vunpack.c.l.b16 %v4993
    %v5181 = vunpack.c.h.b16 %v4993
    %v5182 = vunpack.c.l.b16 %v4994
    %v5183 = vunpack.c.h.b16 %v4994
    %v5184 = vunpack.c.l.b16 %v4995
    %v5185 = vunpack.c.h.b16 %v4995
    %v5186 = vunpack.c.l.b16 %v4996
    %v5187 = vunpack.c.h.b16 %v4996
    %v5188 = vunpack.c.l.b16 %v4997
    %v5189 = vunpack.c.h.b16 %v4997
    %v5190 = vunpack.c.l.b16 %v4998
    %v5191 = vunpack.c.h.b16 %v4998
    %v5192 = vunpack.c.l.b16 %v4999
    %v5193 = vunpack.c.h.b16 %v4999
    %v5194 = vunpack.c.l.b16 %v5000
    %v5195 = vunpack.c.h.b16 %v5000
    %v5196 = vunpack.c.l.b16 %v5001
    %v5197 = vunpack.c.h.b16 %v5001
    %v5198 = vunpack.c.l.b16 %v5002
    %v5199 = vunpack.c.h.b16 %v5002
    %v5200 = vunpack.c.l.b16 %v5003
    %v5201 = vunpack.c.h.b16 %v5003
    %v5202 = vunpack.c.l.b16 %v5004
    %v5203 = vunpack.c.h.b16 %v5004
    %v5204 = vunpack.c.l.b16 %v5005
    %v5205 = vunpack.c.h.b16 %v5005
    %v5206 = vunpack.c.l.b16 %v5006
    %v5207 = vunpack.c.h.b16 %v5006
    %v5208 = vunpack.c.l.b16 %v5007
    %v5209 = vunpack.c.h.b16 %v5007
    %v5210 = vunpack.c.l.b16 %v5008
    %v5211 = vunpack.c.h.b16 %v5008
    %v5212 = vunpack.c.l.b16 %v5009
    %v5213 = vunpack.c.h.b16 %v5009
    %v5214 = vpack.c.b16 %v5088, %v5086
    %v5215 = vpack.c.b16 %v5089, %v5087
    %v5216 = vpack.c.b16 %v5092, %v5090
    %v5217 = vpack.c.b16 %v5093, %v5091
    %v5218 = vpack.c.b16 %v5096, %v5094
    %v5219 = vpack.c.b16 %v5097, %v5095
    %v5220 = vpack.c.b16 %v5100, %v5098
    %v5221 = vpack.c.b16 %v5101, %v5099
    %v5222 = vpack.c.b16 %v5104, %v5102
    %v5223 = vpack.c.b16 %v5105, %v5103
    %v5224 = vpack.c.b16 %v5108, %v5106
    %v5225 = vpack.c.b16 %v5109, %v5107
    %v5226 = vpack.c.b16 %v5112, %v5110
    %v5227 = vpack.c.b16 %v5113, %v5111
    %v5228 = vpack.c.b16 %v5116, %v5114
    %v5229 = vpack.c.b16 %v5117, %v5115
    %v5230 = vpack.c.b16 %v5120, %v5118
    %v5231 = vpack.c.b16 %v5121, %v5119
    %v5232 = vpack.c.b16 %v5124, %v5122
    %v5233 = vpack.c.b16 %v5125, %v5123
    %v5234 = vpack.c.b16 %v5128, %v5126
    %v5235 = vpack.c.b16 %v5129, %v5127
    %v5236 = vpack.c.b16 %v5132, %v5130
    %v5237 = vpack.c.b16 %v5133, %v5131
    %v5238 = vpack.c.b16 %v5136, %v5134
    %v5239 = vpack.c.b16 %v5137, %v5135
    %v5240 = vpack.c.b16 %v5140, %v5138
    %v5241 = vpack.c.b16 %v5141, %v5139
    %v5242 = vpack.c.b16 %v5144, %v5142
    %v5243 = vpack.c.b16 %v5145, %v5143
    %v5244 = vpack.c.b16 %v5148, %v5146
    %v5245 = vpack.c.b16 %v5149, %v5147
    %v5246 = vpack.c.b16 %v5152, %v5150
    %v5247 = vpack.c.b16 %v5153, %v5151
    %v5248 = vpack.c.b16 %v5156, %v5154
    %v5249 = vpack.c.b16 %v5157, %v5155
    %v5250 = vpack.c.b16 %v5160, %v5158
    %v5251 = vpack.c.b16 %v5161, %v5159
    %v5252 = vpack.c.b16 %v5164, %v5162
    %v5253 = vpack.c.b16 %v5165, %v5163
    %v5254 = vpack.c.b16 %v5168, %v5166
    %v5255 = vpack.c.b16 %v5169, %v5167
    %v5256 = vpack.c.b16 %v5172, %v5170
    %v5257 = vpack.c.b16 %v5173, %v5171
    %v5258 = vpack.c.b16 %v5176, %v5174
    %v5259 = vpack.c.b16 %v5177, %v5175
    %v5260 = vpack.c.b16 %v5180, %v5178
    %v5261 = vpack.c.b16 %v5181, %v5179
    %v5262 = vpack.c.b16 %v5184, %v5182
    %v5263 = vpack.c.b16 %v5185, %v5183
    %v5264 = vpack.c.b16 %v5188, %v5186
    %v5265 = vpack.c.b16 %v5189, %v5187
    %v5266 = vpack.c.b16 %v5192, %v5190
    %v5267 = vpack.c.b16 %v5193, %v5191
    %v5268 = vpack.c.b16 %v5196, %v5194
    %v5269 = vpack.c.b16 %v5197, %v5195
    %v5270 = vpack.c.b16 %v5200, %v5198
    %v5271 = vpack.c.b16 %v5201, %v5199
    %v5272 = vpack.c.b16 %v5204, %v5202
    %v5273 = vpack.c.b16 %v5205, %v5203
    %v5274 = vpack.c.b16 %v5208, %v5206
    %v5275 = vpack.c.b16 %v5209, %v5207
    %v5276 = vpack.c.b16 %v5212, %v5210
    %v5277 = vpack.c.b16 %v5213, %v5211
    %5342 = vmatprep.subr.bf16.mxu0 %v5215
    %5343 = vmatpush1.bf16.msra.mxu0 %v5214
    %5344 = vmatprep.subr.bf16.mxu0 %v5217
    %5345 = vmatpush1.bf16.msra.mxu0 %v5216
    %5346 = vmatprep.subr.bf16.mxu0 %v5219
    %5347 = vmatpush1.bf16.msra.mxu0 %v5218
    %5348 = vmatprep.subr.bf16.mxu0 %v5221
    %5349 = vmatpush1.bf16.msra.mxu0 %v5220
    %5350 = vmatprep.subr.bf16.mxu0 %v5223
    %5351 = vmatpush1.bf16.msra.mxu0 %v5222
    %5352 = vmatprep.subr.bf16.mxu0 %v5225
    %5353 = vmatpush1.bf16.msra.mxu0 %v5224
    %5354 = vmatprep.subr.bf16.mxu0 %v5227
    %5355 = vmatpush1.bf16.msra.mxu0 %v5226
    %5356 = vmatprep.subr.bf16.mxu0 %v5229
    %5357 = vmatpush1.bf16.msra.mxu0 %v5228
    %5358 = vmatprep.subr.bf16.mxu0 %v5231
    %5359 = vmatpush1.bf16.msra.mxu0 %v5230
    %5360 = vmatprep.subr.bf16.mxu0 %v5233
    %5361 = vmatpush1.bf16.msra.mxu0 %v5232
    %5362 = vmatprep.subr.bf16.mxu0 %v5235
    %5363 = vmatpush1.bf16.msra.mxu0 %v5234
    %5364 = vmatprep.subr.bf16.mxu0 %v5237
    %5365 = vmatpush1.bf16.msra.mxu0 %v5236
    %5366 = vmatprep.subr.bf16.mxu0 %v5239
    %5367 = vmatpush1.bf16.msra.mxu0 %v5238
    %5368 = vmatprep.subr.bf16.mxu0 %v5241
    %5369 = vmatpush1.bf16.msra.mxu0 %v5240
    %5370 = vmatprep.subr.bf16.mxu0 %v5243
    %5371 = vmatpush1.bf16.msra.mxu0 %v5242
    %5372 = vmatprep.subr.bf16.mxu0 %v5245
    %5373 = vmatpush1.bf16.msra.mxu0 %v5244
    %5374 = vmatprep.mubr.bf16.mxu0 %v4943
    %5375 = vmatmul.mubr.bf16.gmra.mrb[0].mxu0 %v4942
    %v5376 = vpop.f32.mrb[0].mxu0
    %v5377 = vadd.f32 %v5015, %v5376
    %v5378 = vpop.f32.mrb[0].mxu0
    %v5379 = vadd.f32 %v5019, %v5378
    %v5380 = vpop.f32.mrb[0].mxu0
    %v5381 = vadd.f32 %v5015, %v5380
    %v5382 = vpop.f32.mrb[0].mxu0
    %v5383 = vadd.f32 %v5019, %v5382
    %5384 = vdwg.mxu0
    %5385 = vmatprep.subr.bf16.mxu0 %v5247
    %5386 = vmatpush1.bf16.msra.mxu0 %v5246
    %5387 = vmatprep.subr.bf16.mxu0 %v5249
    %5388 = vmatpush1.bf16.msra.mxu0 %v5248
    %5389 = vmatprep.subr.bf16.mxu0 %v5251
    %5390 = vmatpush1.bf16.msra.mxu0 %v5250
    %5391 = vmatprep.subr.bf16.mxu0 %v5253
    %5392 = vmatpush1.bf16.msra.mxu0 %v5252
    %5393 = vmatprep.subr.bf16.mxu0 %v5255
    %5394 = vmatpush1.bf16.msra.mxu0 %v5254
    %5395 = vmatprep.subr.bf16.mxu0 %v5257
    %5396 = vmatpush1.bf16.msra.mxu0 %v5256
    %5397 = vmatprep.subr.bf16.mxu0 %v5259
    %5398 = vmatpush1.bf16.msra.mxu0 %v5258
    %5399 = vmatprep.subr.bf16.mxu0 %v5261
    %5400 = vmatpush1.bf16.msra.mxu0 %v5260
    %5401 = vmatprep.subr.bf16.mxu0 %v5263
    %5402 = vmatpush1.bf16.msra.mxu0 %v5262
    %5403 = vmatprep.subr.bf16.mxu0 %v5265
    %5404 = vmatpush1.bf16.msra.mxu0 %v5264
    %5405 = vmatprep.subr.bf16.mxu0 %v5267
    %5406 = vmatpush1.bf16.msra.mxu0 %v5266
    %5407 = vmatprep.subr.bf16.mxu0 %v5269
    %5408 = vmatpush1.bf16.msra.mxu0 %v5268
    %5409 = vmatprep.subr.bf16.mxu0 %v5271
    %5410 = vmatpush1.bf16.msra.mxu0 %v5270
    %5411 = vmatprep.subr.bf16.mxu0 %v5273
    %5412 = vmatpush1.bf16.msra.mxu0 %v5272
    %5413 = vmatprep.subr.bf16.mxu0 %v5275
    %5414 = vmatpush1.bf16.msra.mxu0 %v5274
    %5415 = vmatprep.subr.bf16.mxu0 %v5277
    %5416 = vmatpush1.bf16.msra.mxu0 %v5276
    %5417 = vmatprep.mubr.bf16.mxu0 %v4945
    %5418 = vmatmul.mubr.bf16.gmra.mrb[0].mxu0 %v4944
    %v5419 = vpop.f32.mrb[0].mxu0
    %v5420 = vadd.f32 %v5377, %v5419
    %v5421 = vpop.f32.mrb[0].mxu0
    %v5422 = vadd.f32 %v5379, %v5421
    %v5423 = vpop.f32.mrb[0].mxu0
    %v5424 = vadd.f32 %v5381, %v5423
    %v5425 = vpop.f32.mrb[0].mxu0
    %v5426 = vadd.f32 %v5383, %v5425
    %5427 = vdwg.mxu0
    %v5428 = vmax.f32 %v5420, 0.0
    %v5429 = vmax.f32 %v5422, 0.0
    %v5430 = vmax.f32 %v5424, 0.0
    %v5431 = vmax.f32 %v5426, 0.0
    %v5432 = vld [vmem:[%s4] sm:$0xf]
    %v5433 = vld [vmem:[%s4 + $0x4] sm:$0xf]
    %v5434 = vld [vmem:[%s4 + $0x8] sm:$0xf]
    %v5435 = vld [vmem:[%s4 + $0xc] sm:$0xf]
    %v5436 = vld [vmem:[%s4 + $0x10] sm:$0xf]
    %v5437 = vld [vmem:[%s4 + $0x14] sm:$0xf]
    %v5438 = vld [vmem:[%s4 + $0x18] sm:$0xf]
    %v5439 = vld [vmem:[%s4 + $0x1c] sm:$0xf]
    %v5440 = vld [vmem:[%s4 + $0x20] sm:$0xf]
    %v5441 = vld [vmem:[%s4 + $0x24] sm:$0xf]
    %v5442 = vld [vmem:[%s4 + $0x28] sm:$0xf]
    %v5443 = vld [vmem:[%s4 + $0x2c] sm:$0xf]
    %v5444 = vld [vmem:[%s4 + $0x30] sm:$0xf]
    %v5445 = vld [vmem:[%s4 + $0x34] sm:$0xf]
    %v5446 = vld [vmem:[%s4 + $0x38] sm:$0xf]
    %v5447 = vld [vmem:[%s4 + $0x3c] sm:$0xf]
    %v5448 = vld [vmem:[%s4 + $0x40] sm:$0xf]
    %v5449 = vld [vmem:[%s4 + $0x44] sm:$0xf]
    %v5450 = vld [vmem:[%s4 + $0x48] sm:$0xf]
    %v5451 = vld [vmem:[%s4 + $0x4c] sm:$0xf]
    %v5452 = vld [vmem:[%s4 + $0x50] sm:$0xf]
    %v5453 = vld [vmem:[%s4 + $0x54] sm:$0xf]
    %v5454 = vld [vmem:[%s4 + $0x58] sm:$0xf]
    %v5455 = vld [vmem:[%s4 + $0x5c] sm:$0xf]
    %v5456 = vld [vmem:[%s4 + $0x60] sm:$0xf]
    %v5457 = vld [vmem:[%s4 + $0x64] sm:$0xf]
    %v5458 = vld [vmem:[%s4 + $0x68] sm:$0xf]
    %v5459 = vld [vmem:[%s4 + $0x6c] sm:$0xf]
    %v5460 = vld [vmem:[%s4 + $0x70] sm:$0xf]
    %v5461 = vld [vmem:[%s4 + $0x74] sm:$0xf]
    %v5462 = vld [vmem:[%s4 + $0x78] sm:$0xf]
    %v5463 = vld [vmem:[%s4 + $0x7c] sm:$0xf]
    %v5464 = vld [vmem:[%s4 + $0x80] sm:$0xf]
    %v5465 = vld [vmem:[%s4 + $0x84] sm:$0xf]
    %v5466 = vld [vmem:[%s4 + $0x88] sm:$0xf]
    %v5467 = vld [vmem:[%s4 + $0x8c] sm:$0xf]
    %v5468 = vld [vmem:[%s4 + $0x90] sm:$0xf]
    %v5469 = vld [vmem:[%s4 + $0x94] sm:$0xf]
    %v5470 = vld [vmem:[%s4 + $0x98] sm:$0xf]
    %v5471 = vld [vmem:[%s4 + $0x9c] sm:$0xf]
    %v5472 = vld [vmem:[%s4 + $0xa0] sm:$0xf]
    %v5473 = vld [vmem:[%s4 + $0xa4] sm:$0xf]
    %v5474 = vld [vmem:[%s4 + $0xa8] sm:$0xf]
    %v5475 = vld [vmem:[%s4 + $0xac] sm:$0xf]
    %v5476 = vld [vmem:[%s4 + $0xb0] sm:$0xf]
    %v5477 = vld [vmem:[%s4 + $0xb4] sm:$0xf]
    %v5478 = vld [vmem:[%s4 + $0xb8] sm:$0xf]
    %v5479 = vld [vmem:[%s4 + $0xbc] sm:$0xf]
    %v5480 = vld [vmem:[%s4 + $0xc0] sm:$0xf]
    %v5481 = vld [vmem:[%s4 + $0xc4] sm:$0xf]
    %v5482 = vld [vmem:[%s4 + $0xc8] sm:$0xf]
    %v5483 = vld [vmem:[%s4 + $0xcc] sm:$0xf]
    %v5484 = vld [vmem:[%s4 + $0xd0] sm:$0xf]
    %v5485 = vld [vmem:[%s4 + $0xd4] sm:$0xf]
    %v5486 = vld [vmem:[%s4 + $0xd8] sm:$0xf]
    %v5487 = vld [vmem:[%s4 + $0xdc] sm:$0xf]
    %v5488 = vld [vmem:[%s4 + $0xe0] sm:$0xf]
    %v5489 = vld [vmem:[%s4 + $0xe4] sm:$0xf]
    %v5490 = vld [vmem:[%s4 + $0xe8] sm:$0xf]
    %v5491 = vld [vmem:[%s4 + $0xec] sm:$0xf]
    %v5492 = vld [vmem:[%s4 + $0xf0] sm:$0xf]
    %v5493 = vld [vmem:[%s4 + $0xf4] sm:$0xf]
    %v5494 = vld [vmem:[%s4 + $0xf8] sm:$0xf]
    %v5495 = vld [vmem:[%s4 + $0xfc] sm:$0xf]
    %v5496 = vld [vmem:[%s4 + $0x100] sm:$0xf]
    %v5497 = vld [vmem:[%s4 + $0x104] sm:$0xf]
    %v5498 = vld [vmem:[%s4 + $0x108] sm:$0xf]
    %v5499 = vld [vmem:[%s4 + $0x10c] sm:$0xf]
    %v5500 = vld [vmem:[%s4 + $0x110] sm:$0xf]
    %v5501 = vld [vmem:[%s4 + $0x114] sm:$0xf]
    %v5502 = vld [vmem:[%s4 + $0x118] sm:$0xf]
    %v5503 = vld [vmem:[%s4 + $0x11c] sm:$0xf]
    %v5504 = vld [vmem:[%s4 + $0x120] sm:$0xf]
    %v5505 = vld [vmem:[%s4 + $0x124] sm:$0xf]
    %v5506 = vld [vmem:[%s4 + $0x128] sm:$0xf]
    %v5507 = vld [vmem:[%s4 + $0x12c] sm:$0xf]
    %v5508 = vld [vmem:[%s4 + $0x130] sm:$0xf]
    %v5509 = vld [vmem:[%s4 + $0x134] sm:$0xf]
    %v5510 = vld [vmem:[%s4 + $0x138] sm:$0xf]
    %v5511 = vld [vmem:[%s4 + $0x13c] sm:$0xf]
    %v5512 = vld [vmem:[%s4 + $0x140] sm:$0xf]
    %v5513 = vld [vmem:[%s4 + $0x144] sm:$0xf]
    %v5514 = vld [vmem:[%s4 + $0x148] sm:$0xf]
    %v5515 = vld [vmem:[%s4 + $0x14c] sm:$0xf]
    %v5516 = vld [vmem:[%s4 + $0x150] sm:$0xf]
    %v5517 = vld [vmem:[%s4 + $0x154] sm:$0xf]
    %v5518 = vld [vmem:[%s4 + $0x158] sm:$0xf]
    %v5519 = vld [vmem:[%s4 + $0x15c] sm:$0xf]
    %v5520 = vld [vmem:[%s4 + $0x160] sm:$0xf]
    %v5521 = vld [vmem:[%s4 + $0x164] sm:$0xf]
    %v5522 = vld [vmem:[%s4 + $0x168] sm:$0xf]
    %v5523 = vld [vmem:[%s4 + $0x16c] sm:$0xf]
    %v5524 = vld [vmem:[%s4 + $0x170] sm:$0xf]
    %v5525 = vld [vmem:[%s4 + $0x174] sm:$0xf]
    %v5526 = vld [vmem:[%s4 + $0x178] sm:$0xf]
    %v5527 = vld [vmem:[%s4 + $0x17c] sm:$0xf]
    %v5528 = vld [vmem:[#allocation10 + $0x10] sm:$0x1]
    %v5530 = vlaneseq
    %v5531 = vshrl.u32 %v5530, 7
    %v5532 = vsub.s32 0, %v5531
    %v5533 = vrot.slane %v5528, %v5532
    %v5631 = vunpack.c.l.b16 %v5432
    %v5632 = vunpack.c.l.b16 %v5433
    %v5633 = vunpack.c.l.b16 %v5434
    %v5634 = vunpack.c.l.b16 %v5435
    %v5635 = vunpack.c.l.b16 %v5436
    %v5636 = vunpack.c.l.b16 %v5437
    %v5637 = vunpack.c.l.b16 %v5438
    %v5638 = vunpack.c.l.b16 %v5439
    %v5639 = vunpack.c.l.b16 %v5440
    %v5640 = vunpack.c.l.b16 %v5441
    %v5641 = vunpack.c.l.b16 %v5442
    %v5642 = vunpack.c.l.b16 %v5443
    %v5643 = vunpack.c.l.b16 %v5444
    %v5644 = vunpack.c.l.b16 %v5445
    %v5645 = vunpack.c.l.b16 %v5446
    %v5646 = vunpack.c.l.b16 %v5447
    %v5647 = vunpack.c.l.b16 %v5448
    %v5648 = vunpack.c.l.b16 %v5449
    %v5649 = vunpack.c.l.b16 %v5450
    %v5650 = vunpack.c.l.b16 %v5451
    %v5651 = vunpack.c.l.b16 %v5452
    %v5652 = vunpack.c.l.b16 %v5453
    %v5653 = vunpack.c.l.b16 %v5454
    %v5654 = vunpack.c.l.b16 %v5455
    %v5655 = vunpack.c.l.b16 %v5456
    %v5656 = vunpack.c.l.b16 %v5457
    %v5657 = vunpack.c.l.b16 %v5458
    %v5658 = vunpack.c.l.b16 %v5459
    %v5659 = vunpack.c.l.b16 %v5460
    %v5660 = vunpack.c.l.b16 %v5461
    %v5661 = vunpack.c.l.b16 %v5462
    %v5662 = vunpack.c.l.b16 %v5463
    %v5663 = vunpack.c.l.b16 %v5464
    %v5664 = vunpack.c.l.b16 %v5465
    %v5665 = vunpack.c.l.b16 %v5466
    %v5666 = vunpack.c.l.b16 %v5467
    %v5667 = vunpack.c.l.b16 %v5468
    %v5668 = vunpack.c.l.b16 %v5469
    %v5669 = vunpack.c.l.b16 %v5470
    %v5670 = vunpack.c.l.b16 %v5471
    %v5671 = vunpack.c.l.b16 %v5472
    %v5672 = vunpack.c.l.b16 %v5473
    %v5673 = vunpack.c.l.b16 %v5474
    %v5674 = vunpack.c.l.b16 %v5475
    %v5675 = vunpack.c.l.b16 %v5476
    %v5676 = vunpack.c.l.b16 %v5477
    %v5677 = vunpack.c.l.b16 %v5478
    %v5678 = vunpack.c.l.b16 %v5479
    %v5679 = vunpack.c.l.b16 %v5480
    %v5680 = vunpack.c.l.b16 %v5481
    %v5681 = vunpack.c.l.b16 %v5482
    %v5682 = vunpack.c.l.b16 %v5483
    %v5683 = vunpack.c.l.b16 %v5484
    %v5684 = vunpack.c.l.b16 %v5485
    %v5685 = vunpack.c.l.b16 %v5486
    %v5686 = vunpack.c.l.b16 %v5487
    %v5687 = vunpack.c.l.b16 %v5488
    %v5688 = vunpack.c.l.b16 %v5489
    %v5689 = vunpack.c.l.b16 %v5490
    %v5690 = vunpack.c.l.b16 %v5491
    %v5691 = vunpack.c.l.b16 %v5492
    %v5692 = vunpack.c.l.b16 %v5493
    %v5693 = vunpack.c.l.b16 %v5494
    %v5694 = vunpack.c.l.b16 %v5495
    %v5695 = vunpack.c.l.b16 %v5496
    %v5696 = vunpack.c.l.b16 %v5497
    %v5697 = vunpack.c.l.b16 %v5498
    %v5698 = vunpack.c.l.b16 %v5499
    %v5699 = vunpack.c.l.b16 %v5500
    %v5700 = vunpack.c.l.b16 %v5501
    %v5701 = vunpack.c.l.b16 %v5502
    %v5702 = vunpack.c.l.b16 %v5503
    %v5703 = vunpack.c.l.b16 %v5504
    %v5704 = vunpack.c.l.b16 %v5505
    %v5705 = vunpack.c.l.b16 %v5506
    %v5706 = vunpack.c.l.b16 %v5507
    %v5707 = vunpack.c.l.b16 %v5508
    %v5708 = vunpack.c.l.b16 %v5509
    %v5709 = vunpack.c.l.b16 %v5510
    %v5710 = vunpack.c.l.b16 %v5511
    %v5711 = vunpack.c.l.b16 %v5512
    %v5712 = vunpack.c.l.b16 %v5513
    %v5713 = vunpack.c.l.b16 %v5514
    %v5714 = vunpack.c.l.b16 %v5515
    %v5715 = vunpack.c.l.b16 %v5516
    %v5716 = vunpack.c.l.b16 %v5517
    %v5717 = vunpack.c.l.b16 %v5518
    %v5718 = vunpack.c.l.b16 %v5519
    %v5719 = vunpack.c.l.b16 %v5520
    %v5720 = vunpack.c.l.b16 %v5521
    %v5721 = vunpack.c.l.b16 %v5522
    %v5722 = vunpack.c.l.b16 %v5523
    %v5723 = vunpack.c.l.b16 %v5524
    %v5724 = vunpack.c.l.b16 %v5525
    %v5725 = vunpack.c.l.b16 %v5526
    %v5726 = vunpack.c.l.b16 %v5527
    %v5727 = vpack.c.b16 %v5632, %v5631
    %v5728 = vpack.c.b16 %v5634, %v5633
    %v5729 = vpack.c.b16 %v5636, %v5635
    %v5730 = vpack.c.b16 %v5638, %v5637
    %v5731 = vpack.c.b16 %v5640, %v5639
    %v5732 = vpack.c.b16 %v5642, %v5641
    %v5733 = vpack.c.b16 %v5644, %v5643
    %v5734 = vpack.c.b16 %v5646, %v5645
    %v5735 = vpack.c.b16 %v5648, %v5647
    %v5736 = vpack.c.b16 %v5650, %v5649
    %v5737 = vpack.c.b16 %v5652, %v5651
    %v5738 = vpack.c.b16 %v5654, %v5653
    %v5739 = vpack.c.b16 %v5656, %v5655
    %v5740 = vpack.c.b16 %v5658, %v5657
    %v5741 = vpack.c.b16 %v5660, %v5659
    %v5742 = vpack.c.b16 %v5662, %v5661
    %v5743 = vpack.c.b16 %v5664, %v5663
    %v5744 = vpack.c.b16 %v5666, %v5665
    %v5745 = vpack.c.b16 %v5668, %v5667
    %v5746 = vpack.c.b16 %v5670, %v5669
    %v5747 = vpack.c.b16 %v5672, %v5671
    %v5748 = vpack.c.b16 %v5674, %v5673
    %v5749 = vpack.c.b16 %v5676, %v5675
    %v5750 = vpack.c.b16 %v5678, %v5677
    %v5751 = vpack.c.b16 %v5680, %v5679
    %v5752 = vpack.c.b16 %v5682, %v5681
    %v5753 = vpack.c.b16 %v5684, %v5683
    %v5754 = vpack.c.b16 %v5686, %v5685
    %v5755 = vpack.c.b16 %v5688, %v5687
    %v5756 = vpack.c.b16 %v5690, %v5689
    %v5757 = vpack.c.b16 %v5692, %v5691
    %v5758 = vpack.c.b16 %v5694, %v5693
    %v5759 = vpack.c.b16 %v5696, %v5695
    %v5760 = vpack.c.b16 %v5698, %v5697
    %v5761 = vpack.c.b16 %v5700, %v5699
    %v5762 = vpack.c.b16 %v5702, %v5701
    %v5763 = vpack.c.b16 %v5704, %v5703
    %v5764 = vpack.c.b16 %v5706, %v5705
    %v5765 = vpack.c.b16 %v5708, %v5707
    %v5766 = vpack.c.b16 %v5710, %v5709
    %v5767 = vpack.c.b16 %v5712, %v5711
    %v5768 = vpack.c.b16 %v5714, %v5713
    %v5769 = vpack.c.b16 %v5716, %v5715
    %v5770 = vpack.c.b16 %v5718, %v5717
    %v5771 = vpack.c.b16 %v5720, %v5719
    %v5772 = vpack.c.b16 %v5722, %v5721
    %v5773 = vpack.c.b16 %v5724, %v5723
    %v5774 = vpack.c.b16 %v5726, %v5725
    %5823 = vmatprep.subr.bf16.mxu0 0
    %5824 = vmatpush1.bf16.msra.mxu0 %v5727
    %5825 = vmatprep.subr.bf16.mxu0 0
    %5826 = vmatpush1.bf16.msra.mxu0 %v5728
    %5827 = vmatprep.subr.bf16.mxu0 0
    %5828 = vmatpush1.bf16.msra.mxu0 %v5729
    %5829 = vmatprep.subr.bf16.mxu0 0
    %5830 = vmatpush1.bf16.msra.mxu0 %v5730
    %5831 = vmatprep.subr.bf16.mxu0 0
    %5832 = vmatpush1.bf16.msra.mxu0 %v5731
    %5833 = vmatprep.subr.bf16.mxu0 0
    %5834 = vmatpush1.bf16.msra.mxu0 %v5732
    %5835 = vmatprep.subr.bf16.mxu0 0
    %5836 = vmatpush1.bf16.msra.mxu0 %v5733
    %5837 = vmatprep.subr.bf16.mxu0 0
    %5838 = vmatpush1.bf16.msra.mxu0 %v5734
    %5839 = vmatprep.subr.bf16.mxu0 0
    %5840 = vmatpush1.bf16.msra.mxu0 %v5735
    %5841 = vmatprep.subr.bf16.mxu0 0
    %5842 = vmatpush1.bf16.msra.mxu0 %v5736
    %5843 = vmatprep.subr.bf16.mxu0 0
    %5844 = vmatpush1.bf16.msra.mxu0 %v5737
    %5845 = vmatprep.subr.bf16.mxu0 0
    %5846 = vmatpush1.bf16.msra.mxu0 %v5738
    %5847 = vmatprep.subr.bf16.mxu0 0
    %5848 = vmatpush1.bf16.msra.mxu0 %v5739
    %5849 = vmatprep.subr.bf16.mxu0 0
    %5850 = vmatpush1.bf16.msra.mxu0 %v5740
    %5851 = vmatprep.subr.bf16.mxu0 0
    %5852 = vmatpush1.bf16.msra.mxu0 %v5741
    %5853 = vmatprep.subr.bf16.mxu0 0
    %5854 = vmatpush1.bf16.msra.mxu0 %v5742
    %5855 = vmatprep.mubr.bf16.mxu0 %v141
    %5856 = vmatmul.mubr.bf16.gmra.mrb[0].mxu0 %v140
    %v5857 = vpop.f32.mrb[0].mxu0
    %v5858 = vadd.f32 %v5533, %v5857
    %v5859 = vpop.f32.mrb[0].mxu0
    %v5860 = vpop.f32.mrb[0].mxu0
    %v5861 = vadd.f32 %v5533, %v5860
    %v5862 = vpop.f32.mrb[0].mxu0
    %5863 = vdwg.mxu0
    %5864 = vmatprep.subr.bf16.mxu0 0
    %5865 = vmatpush1.bf16.msra.mxu0 %v5743
    %5866 = vmatprep.subr.bf16.mxu0 0
    %5867 = vmatpush1.bf16.msra.mxu0 %v5744
    %5868 = vmatprep.subr.bf16.mxu0 0
    %5869 = vmatpush1.bf16.msra.mxu0 %v5745
    %5870 = vmatprep.subr.bf16.mxu0 0
    %5871 = vmatpush1.bf16.msra.mxu0 %v5746
    %5872 = vmatprep.subr.bf16.mxu0 0
    %5873 = vmatpush1.bf16.msra.mxu0 %v5747
    %5874 = vmatprep.subr.bf16.mxu0 0
    %5875 = vmatpush1.bf16.msra.mxu0 %v5748
    %5876 = vmatprep.subr.bf16.mxu0 0
    %5877 = vmatpush1.bf16.msra.mxu0 %v5749
    %5878 = vmatprep.subr.bf16.mxu0 0
    %5879 = vmatpush1.bf16.msra.mxu0 %v5750
    %5880 = vmatprep.subr.bf16.mxu0 0
    %5881 = vmatpush1.bf16.msra.mxu0 %v5751
    %5882 = vmatprep.subr.bf16.mxu0 0
    %5883 = vmatpush1.bf16.msra.mxu0 %v5752
    %5884 = vmatprep.subr.bf16.mxu0 0
    %5885 = vmatpush1.bf16.msra.mxu0 %v5753
    %5886 = vmatprep.subr.bf16.mxu0 0
    %5887 = vmatpush1.bf16.msra.mxu0 %v5754
    %5888 = vmatprep.subr.bf16.mxu0 0
    %5889 = vmatpush1.bf16.msra.mxu0 %v5755
    %5890 = vmatprep.subr.bf16.mxu0 0
    %5891 = vmatpush1.bf16.msra.mxu0 %v5756
    %5892 = vmatprep.subr.bf16.mxu0 0
    %5893 = vmatpush1.bf16.msra.mxu0 %v5757
    %5894 = vmatprep.subr.bf16.mxu0 0
    %5895 = vmatpush1.bf16.msra.mxu0 %v5758
    %5896 = vmatprep.mubr.bf16.mxu0 %v143
    %5897 = vmatmul.mubr.bf16.gmra.mrb[0].mxu0 %v142
    %v5898 = vpop.f32.mrb[0].mxu0
    %v5899 = vadd.f32 %v5858, %v5898
    %v5900 = vpop.f32.mrb[0].mxu0
    %v5901 = vpop.f32.mrb[0].mxu0
    %v5902 = vadd.f32 %v5861, %v5901
    %v5903 = vpop.f32.mrb[0].mxu0
    %5904 = vdwg.mxu0
    %5905 = vmatprep.subr.bf16.mxu0 0
    %5906 = vmatpush1.bf16.msra.mxu0 %v5759
    %5907 = vmatprep.subr.bf16.mxu0 0
    %5908 = vmatpush1.bf16.msra.mxu0 %v5760
    %5909 = vmatprep.subr.bf16.mxu0 0
    %5910 = vmatpush1.bf16.msra.mxu0 %v5761
    %5911 = vmatprep.subr.bf16.mxu0 0
    %5912 = vmatpush1.bf16.msra.mxu0 %v5762
    %5913 = vmatprep.subr.bf16.mxu0 0
    %5914 = vmatpush1.bf16.msra.mxu0 %v5763
    %5915 = vmatprep.subr.bf16.mxu0 0
    %5916 = vmatpush1.bf16.msra.mxu0 %v5764
    %5917 = vmatprep.subr.bf16.mxu0 0
    %5918 = vmatpush1.bf16.msra.mxu0 %v5765
    %5919 = vmatprep.subr.bf16.mxu0 0
    %5920 = vmatpush1.bf16.msra.mxu0 %v5766
    %5921 = vmatprep.subr.bf16.mxu0 0
    %5922 = vmatpush1.bf16.msra.mxu0 %v5767
    %5923 = vmatprep.subr.bf16.mxu0 0
    %5924 = vmatpush1.bf16.msra.mxu0 %v5768
    %5925 = vmatprep.subr.bf16.mxu0 0
    %5926 = vmatpush1.bf16.msra.mxu0 %v5769
    %5927 = vmatprep.subr.bf16.mxu0 0
    %5928 = vmatpush1.bf16.msra.mxu0 %v5770
    %5929 = vmatprep.subr.bf16.mxu0 0
    %5930 = vmatpush1.bf16.msra.mxu0 %v5771
    %5931 = vmatprep.subr.bf16.mxu0 0
    %5932 = vmatpush1.bf16.msra.mxu0 %v5772
    %5933 = vmatprep.subr.bf16.mxu0 0
    %5934 = vmatpush1.bf16.msra.mxu0 %v5773
    %5935 = vmatprep.subr.bf16.mxu0 0
    %5936 = vmatpush1.bf16.msra.mxu0 %v5774
    %5937 = vmatprep.mubr.bf16.mxu0 %v145
    %5938 = vmatmul.mubr.bf16.gmra.mrb[0].mxu0 %v144
    %v5939 = vpop.f32.mrb[0].mxu0
    %v5940 = vadd.f32 %v5899, %v5939
    %v5941 = vpop.f32.mrb[0].mxu0
    %v5942 = vpop.f32.mrb[0].mxu0
    %v5943 = vadd.f32 %v5902, %v5942
    %v5944 = vpop.f32.mrb[0].mxu0
    %5945 = vdwg.mxu0
    %v5946 = vmax.f32 %v5940, 0.0
    %v5947 = vmax.f32 %v5943, 0.0
    %v5948 = vpack.c.bf16 %v5947, %v5946
    %v5949 = vld [vmem:[#allocation7] sm:$0xf]
    %v5950 = vld [vmem:[#allocation7 + $0x4] sm:$0xf]
    %v5951 = vld [vmem:[#allocation7 + $0x8] sm:$0xf]
    %v5952 = vld [vmem:[#allocation7 + $0xc] sm:$0xf]
    %v5953 = vld [vmem:[#allocation10 + $0x11] sm:$0x1]
    %v5955 = vlaneseq
    %v5956 = vshrl.u32 %v5955, 7
    %v5957 = vsub.s32 0, %v5956
    %v5958 = vrot.slane %v5953, %v5957
    %v5964 = vunpack.c.l.b16 %v5949
    %v5965 = vunpack.c.l.b16 %v5950
    %v5966 = vunpack.c.l.b16 %v5951
    %v5967 = vunpack.c.l.b16 %v5952
    %v5968 = vpack.c.b16 %v5965, %v5964
    %v5969 = vpack.c.b16 %v5967, %v5966
    %vm5972 = vcmask 261120
    %v5974 = vsel %vm5972, %v5948, 0
    %5976 = vmatprep.subr.bf16.mxu0 0
    %5977 = vmatpush1.bf16.msra.mxu0 %v5968
    %5978 = vmatprep.subr.bf16.mxu0 0
    %5979 = vmatpush1.bf16.msra.mxu0 %v5969
    %5980 = vmatprep.subr.bf16.mxu0 0
    %5981 = vmatpush1.bf16.msra.mxu0 0
    %5982 = vmatprep.subr.bf16.mxu0 0
    %5983 = vmatpush1.bf16.msra.mxu0 0
    %5984 = vmatprep.subr.bf16.mxu0 0
    %5985 = vmatpush1.bf16.msra.mxu0 0
    %5986 = vmatprep.subr.bf16.mxu0 0
    %5987 = vmatpush1.bf16.msra.mxu0 0
    %5988 = vmatprep.subr.bf16.mxu0 0
    %5989 = vmatpush1.bf16.msra.mxu0 0
    %5990 = vmatprep.subr.bf16.mxu0 0
    %5991 = vmatpush1.bf16.msra.mxu0 0
    %5992 = vmatprep.subr.bf16.mxu0 0
    %5993 = vmatpush1.bf16.msra.mxu0 0
    %5994 = vmatprep.subr.bf16.mxu0 0
    %5995 = vmatpush1.bf16.msra.mxu0 0
    %5996 = vmatprep.subr.bf16.mxu0 0
    %5997 = vmatpush1.bf16.msra.mxu0 0
    %5998 = vmatprep.subr.bf16.mxu0 0
    %5999 = vmatpush1.bf16.msra.mxu0 0
    %6000 = vmatprep.subr.bf16.mxu0 0
    %6001 = vmatpush1.bf16.msra.mxu0 0
    %6002 = vmatprep.subr.bf16.mxu0 0
    %6003 = vmatpush1.bf16.msra.mxu0 0
    %6004 = vmatprep.subr.bf16.mxu0 0
    %6005 = vmatpush1.bf16.msra.mxu0 0
    %6006 = vmatprep.subr.bf16.mxu0 0
    %6007 = vmatpush1.bf16.msra.mxu0 0
    %6008 = vmatprep.mubr.bf16.mxu0 0
    %6009 = vmatmul.mubr.bf16.gmra.mrb[0].mxu0 %v5974
    %v6010 = vpop.f32.mrb[0].mxu0
    %v6011 = vadd.f32 %v5958, %v6010
    %v6012 = vpop.f32.mrb[0].mxu0
    %v6013 = vpop.f32.mrb[0].mxu0
    %v6014 = vadd.f32 %v5958, %v6013
    %v6015 = vpop.f32.mrb[0].mxu0
    %6016 = vdwg.mxu0
    %v6017 = vmax.f32 %v6011, 0.0
    %v6018 = vmax.f32 %v6014, 0.0
    %v6019 = vpack.c.bf16 %v5430, %v5428
    %v6020 = vpack.c.bf16 %v5431, %v5429
    %v6021 = vld [vmem:[#allocation9] sm:$0xff]
    %v6022 = vld [vmem:[#allocation9 + $0x8] sm:$0xff]
    %v6023 = vld [vmem:[#allocation9 + $0x10] sm:$0xff]
    %v6024 = vld [vmem:[#allocation9 + $0x18] sm:$0xff]
    %v6025 = vld [vmem:[#allocation9 + $0x20] sm:$0xff]
    %v6026 = vld [vmem:[#allocation9 + $0x28] sm:$0xff]
    %v6027 = vld [vmem:[#allocation9 + $0x30] sm:$0xff]
    %v6028 = vld [vmem:[#allocation9 + $0x38] sm:$0xff]
    %v6029 = vld [vmem:[#allocation9 + $0x40] sm:$0xff]
    %v6030 = vld [vmem:[#allocation9 + $0x48] sm:$0xff]
    %v6031 = vld [vmem:[#allocation9 + $0x50] sm:$0xff]
    %v6032 = vld [vmem:[#allocation9 + $0x58] sm:$0xff]
    %v6033 = vld [vmem:[#allocation9 + $0x60] sm:$0xff]
    %v6034 = vld [vmem:[#allocation9 + $0x68] sm:$0xff]
    %v6035 = vld [vmem:[#allocation9 + $0x70] sm:$0xff]
    %v6036 = vld [vmem:[#allocation9 + $0x78] sm:$0xff]
    %v6037 = vld [vmem:[#allocation9 + $0x80] sm:$0xff]
    %v6038 = vld [vmem:[#allocation9 + $0x88] sm:$0xff]
    %v6039 = vld [vmem:[#allocation9 + $0x90] sm:$0xff]
    %v6040 = vld [vmem:[#allocation9 + $0x98] sm:$0xff]
    %v6041 = vld [vmem:[#allocation9 + $0xa0] sm:$0xff]
    %v6042 = vld [vmem:[#allocation9 + $0xa8] sm:$0xff]
    %v6043 = vld [vmem:[#allocation9 + $0xb0] sm:$0xff]
    %v6044 = vld [vmem:[#allocation9 + $0xb8] sm:$0xff]
    %v6045 = vld [vmem:[#allocation9 + $0xc0] sm:$0xff]
    %v6046 = vld [vmem:[#allocation9 + $0xc8] sm:$0xff]
    %v6047 = vld [vmem:[#allocation9 + $0xd0] sm:$0xff]
    %v6048 = vld [vmem:[#allocation9 + $0xd8] sm:$0xff]
    %v6049 = vld [vmem:[#allocation9 + $0xe0] sm:$0xff]
    %v6050 = vld [vmem:[#allocation9 + $0xe8] sm:$0xff]
    %v6051 = vld [vmem:[#allocation9 + $0xf0] sm:$0xff]
    %v6052 = vld [vmem:[#allocation9 + $0xf8] sm:$0xff]
    %v6053 = vpack.c.bf16 %v6018, %v6017
    %v6054 = vld [vmem:[#allocation9 + $0x100] sm:$0xff]
    %v6055 = vld [vmem:[#allocation9 + $0x108] sm:$0xff]
    %v6056 = vld [vmem:[#allocation9 + $0x110] sm:$0xff]
    %v6057 = vld [vmem:[#allocation9 + $0x118] sm:$0xff]
    %v6058 = vld [vmem:[#allocation9 + $0x120] sm:$0xff]
    %v6059 = vld [vmem:[#allocation9 + $0x128] sm:$0xff]
    %v6060 = vld [vmem:[#allocation9 + $0x130] sm:$0xff]
    %v6061 = vld [vmem:[#allocation9 + $0x138] sm:$0xff]
    %v6070 = vunpack.c.l.b16 %v6054
    %v6071 = vunpack.c.h.b16 %v6054
    %v6072 = vunpack.c.l.b16 %v6055
    %v6073 = vunpack.c.h.b16 %v6055
    %v6074 = vunpack.c.l.b16 %v6056
    %v6075 = vunpack.c.h.b16 %v6056
    %v6076 = vunpack.c.l.b16 %v6057
    %v6077 = vunpack.c.h.b16 %v6057
    %v6078 = vunpack.c.l.b16 %v6058
    %v6079 = vunpack.c.h.b16 %v6058
    %v6080 = vunpack.c.l.b16 %v6059
    %v6081 = vunpack.c.h.b16 %v6059
    %v6082 = vunpack.c.l.b16 %v6060
    %v6083 = vunpack.c.h.b16 %v6060
    %v6084 = vunpack.c.l.b16 %v6061
    %v6085 = vunpack.c.h.b16 %v6061
    %v6086 = vpack.c.b16 %v6072, %v6070
    %v6087 = vpack.c.b16 %v6073, %v6071
    %v6088 = vpack.c.b16 %v6076, %v6074
    %v6089 = vpack.c.b16 %v6077, %v6075
    %v6090 = vpack.c.b16 %v6080, %v6078
    %v6091 = vpack.c.b16 %v6081, %v6079
    %v6092 = vpack.c.b16 %v6084, %v6082
    %v6093 = vpack.c.b16 %v6085, %v6083
    %vm6102 = vcmask 523264
    %v6104 = vsel %vm6102, %v6053, 0
    %6106 = vmatprep.subr.bf16.mxu0 %v6087
    %6107 = vmatpush1.bf16.msra.mxu0 %v6086
    %6108 = vmatprep.subr.bf16.mxu0 %v6089
    %6109 = vmatpush1.bf16.msra.mxu0 %v6088
    %6110 = vmatprep.subr.bf16.mxu0 %v6091
    %6111 = vmatpush1.bf16.msra.mxu0 %v6090
    %6112 = vmatprep.subr.bf16.mxu0 %v6093
    %6113 = vmatpush1.bf16.msra.mxu0 %v6092
    %6114 = vmatprep.subr.bf16.mxu0 0
    %6115 = vmatpush1.bf16.msra.mxu0 0
    %6116 = vmatprep.subr.bf16.mxu0 0
    %6117 = vmatpush1.bf16.msra.mxu0 0
    %6118 = vmatprep.subr.bf16.mxu0 0
    %6119 = vmatpush1.bf16.msra.mxu0 0
    %6120 = vmatprep.subr.bf16.mxu0 0
    %6121 = vmatpush1.bf16.msra.mxu0 0
    %6122 = vmatprep.subr.bf16.mxu0 0
    %6123 = vmatpush1.bf16.msra.mxu0 0
    %6124 = vmatprep.subr.bf16.mxu0 0
    %6125 = vmatpush1.bf16.msra.mxu0 0
    %6126 = vmatprep.subr.bf16.mxu0 0
    %6127 = vmatpush1.bf16.msra.mxu0 0
    %6128 = vmatprep.subr.bf16.mxu0 0
    %6129 = vmatpush1.bf16.msra.mxu0 0
    %6130 = vmatprep.subr.bf16.mxu0 0
    %6131 = vmatpush1.bf16.msra.mxu0 0
    %6132 = vmatprep.subr.bf16.mxu0 0
    %6133 = vmatpush1.bf16.msra.mxu0 0
    %6134 = vmatprep.subr.bf16.mxu0 0
    %6135 = vmatpush1.bf16.msra.mxu0 0
    %6136 = vmatprep.subr.bf16.mxu0 0
    %6137 = vmatpush1.bf16.msra.mxu0 0
    %6138 = vmatprep.mubr.bf16.mxu0 0
    %6139 = vmatmul.mubr.bf16.gmra.mrb[0].mxu0 %v6104
    %v6140 = vpop.f32.mrb[0].mxu0
    %v6141 = vadd.f32 0.0, %v6140
    %v6142 = vpop.f32.mrb[0].mxu0
    %v6143 = vadd.f32 0.0, %v6142
    %v6144 = vpop.f32.mrb[0].mxu0
    %v6145 = vadd.f32 0.0, %v6144
    %v6146 = vpop.f32.mrb[0].mxu0
    %v6147 = vadd.f32 0.0, %v6146
    %6148 = vdwg.mxu0
    %v6181 = vunpack.c.l.b16 %v6021
    %v6182 = vunpack.c.h.b16 %v6021
    %v6183 = vunpack.c.l.b16 %v6022
    %v6184 = vunpack.c.h.b16 %v6022
    %v6185 = vunpack.c.l.b16 %v6023
    %v6186 = vunpack.c.h.b16 %v6023
    %v6187 = vunpack.c.l.b16 %v6024
    %v6188 = vunpack.c.h.b16 %v6024
    %v6189 = vunpack.c.l.b16 %v6025
    %v6190 = vunpack.c.h.b16 %v6025
    %v6191 = vunpack.c.l.b16 %v6026
    %v6192 = vunpack.c.h.b16 %v6026
    %v6193 = vunpack.c.l.b16 %v6027
    %v6194 = vunpack.c.h.b16 %v6027
    %v6195 = vunpack.c.l.b16 %v6028
    %v6196 = vunpack.c.h.b16 %v6028
    %v6197 = vunpack.c.l.b16 %v6029
    %v6198 = vunpack.c.h.b16 %v6029
    %v6199 = vunpack.c.l.b16 %v6030
    %v6200 = vunpack.c.h.b16 %v6030
    %v6201 = vunpack.c.l.b16 %v6031
    %v6202 = vunpack.c.h.b16 %v6031
    %v6203 = vunpack.c.l.b16 %v6032
    %v6204 = vunpack.c.h.b16 %v6032
    %v6205 = vunpack.c.l.b16 %v6033
    %v6206 = vunpack.c.h.b16 %v6033
    %v6207 = vunpack.c.l.b16 %v6034
    %v6208 = vunpack.c.h.b16 %v6034
    %v6209 = vunpack.c.l.b16 %v6035
    %v6210 = vunpack.c.h.b16 %v6035
    %v6211 = vunpack.c.l.b16 %v6036
    %v6212 = vunpack.c.h.b16 %v6036
    %v6213 = vunpack.c.l.b16 %v6037
    %v6214 = vunpack.c.h.b16 %v6037
    %v6215 = vunpack.c.l.b16 %v6038
    %v6216 = vunpack.c.h.b16 %v6038
    %v6217 = vunpack.c.l.b16 %v6039
    %v6218 = vunpack.c.h.b16 %v6039
    %v6219 = vunpack.c.l.b16 %v6040
    %v6220 = vunpack.c.h.b16 %v6040
    %v6221 = vunpack.c.l.b16 %v6041
    %v6222 = vunpack.c.h.b16 %v6041
    %v6223 = vunpack.c.l.b16 %v6042
    %v6224 = vunpack.c.h.b16 %v6042
    %v6225 = vunpack.c.l.b16 %v6043
    %v6226 = vunpack.c.h.b16 %v6043
    %v6227 = vunpack.c.l.b16 %v6044
    %v6228 = vunpack.c.h.b16 %v6044
    %v6229 = vunpack.c.l.b16 %v6045
    %v6230 = vunpack.c.h.b16 %v6045
    %v6231 = vunpack.c.l.b16 %v6046
    %v6232 = vunpack.c.h.b16 %v6046
    %v6233 = vunpack.c.l.b16 %v6047
    %v6234 = vunpack.c.h.b16 %v6047
    %v6235 = vunpack.c.l.b16 %v6048
    %v6236 = vunpack.c.h.b16 %v6048
    %v6237 = vunpack.c.l.b16 %v6049
    %v6238 = vunpack.c.h.b16 %v6049
    %v6239 = vunpack.c.l.b16 %v6050
    %v6240 = vunpack.c.h.b16 %v6050
    %v6241 = vunpack.c.l.b16 %v6051
    %v6242 = vunpack.c.h.b16 %v6051
    %v6243 = vunpack.c.l.b16 %v6052
    %v6244 = vunpack.c.h.b16 %v6052
    %v6245 = vpack.c.b16 %v6183, %v6181
    %v6246 = vpack.c.b16 %v6184, %v6182
    %v6247 = vpack.c.b16 %v6187, %v6185
    %v6248 = vpack.c.b16 %v6188, %v6186
    %v6249 = vpack.c.b16 %v6191, %v6189
    %v6250 = vpack.c.b16 %v6192, %v6190
    %v6251 = vpack.c.b16 %v6195, %v6193
    %v6252 = vpack.c.b16 %v6196, %v6194
    %v6253 = vpack.c.b16 %v6199, %v6197
    %v6254 = vpack.c.b16 %v6200, %v6198
    %v6255 = vpack.c.b16 %v6203, %v6201
    %v6256 = vpack.c.b16 %v6204, %v6202
    %v6257 = vpack.c.b16 %v6207, %v6205
    %v6258 = vpack.c.b16 %v6208, %v6206
    %v6259 = vpack.c.b16 %v6211, %v6209
    %v6260 = vpack.c.b16 %v6212, %v6210
    %v6261 = vpack.c.b16 %v6215, %v6213
    %v6262 = vpack.c.b16 %v6216, %v6214
    %v6263 = vpack.c.b16 %v6219, %v6217
    %v6264 = vpack.c.b16 %v6220, %v6218
    %v6265 = vpack.c.b16 %v6223, %v6221
    %v6266 = vpack.c.b16 %v6224, %v6222
    %v6267 = vpack.c.b16 %v6227, %v6225
    %v6268 = vpack.c.b16 %v6228, %v6226
    %v6269 = vpack.c.b16 %v6231, %v6229
    %v6270 = vpack.c.b16 %v6232, %v6230
    %v6271 = vpack.c.b16 %v6235, %v6233
    %v6272 = vpack.c.b16 %v6236, %v6234
    %v6273 = vpack.c.b16 %v6239, %v6237
    %v6274 = vpack.c.b16 %v6240, %v6238
    %v6275 = vpack.c.b16 %v6243, %v6241
    %v6276 = vpack.c.b16 %v6244, %v6242
    %6309 = vmatprep.subr.bf16.mxu0 %v6246
    %6310 = vmatpush1.bf16.msra.mxu0 %v6245
    %6311 = vmatprep.subr.bf16.mxu0 %v6248
    %6312 = vmatpush1.bf16.msra.mxu0 %v6247
    %6313 = vmatprep.subr.bf16.mxu0 %v6250
    %6314 = vmatpush1.bf16.msra.mxu0 %v6249
    %6315 = vmatprep.subr.bf16.mxu0 %v6252
    %6316 = vmatpush1.bf16.msra.mxu0 %v6251
    %6317 = vmatprep.subr.bf16.mxu0 %v6254
    %6318 = vmatpush1.bf16.msra.mxu0 %v6253
    %6319 = vmatprep.subr.bf16.mxu0 %v6256
    %6320 = vmatpush1.bf16.msra.mxu0 %v6255
    %6321 = vmatprep.subr.bf16.mxu0 %v6258
    %6322 = vmatpush1.bf16.msra.mxu0 %v6257
    %6323 = vmatprep.subr.bf16.mxu0 %v6260
    %6324 = vmatpush1.bf16.msra.mxu0 %v6259
    %6325 = vmatprep.subr.bf16.mxu0 %v6262
    %6326 = vmatpush1.bf16.msra.mxu0 %v6261
    %6327 = vmatprep.subr.bf16.mxu0 %v6264
    %6328 = vmatpush1.bf16.msra.mxu0 %v6263
    %6329 = vmatprep.subr.bf16.mxu0 %v6266
    %6330 = vmatpush1.bf16.msra.mxu0 %v6265
    %6331 = vmatprep.subr.bf16.mxu0 %v6268
    %6332 = vmatpush1.bf16.msra.mxu0 %v6267
    %6333 = vmatprep.subr.bf16.mxu0 %v6270
    %6334 = vmatpush1.bf16.msra.mxu0 %v6269
    %6335 = vmatprep.subr.bf16.mxu0 %v6272
    %6336 = vmatpush1.bf16.msra.mxu0 %v6271
    %6337 = vmatprep.subr.bf16.mxu0 %v6274
    %6338 = vmatpush1.bf16.msra.mxu0 %v6273
    %6339 = vmatprep.subr.bf16.mxu0 %v6276
    %6340 = vmatpush1.bf16.msra.mxu0 %v6275
    %6341 = vmatprep.mubr.bf16.mxu0 %v6020
    %6342 = vmatmul.mubr.bf16.gmra.mrb[0].mxu0 %v6019
    %v6343 = vpop.f32.mrb[0].mxu0
    %v6344 = vadd.f32 %v6141, %v6343
    %v6345 = vpop.f32.mrb[0].mxu0
    %v6346 = vadd.f32 %v6143, %v6345
    %v6347 = vpop.f32.mrb[0].mxu0
    %v6348 = vadd.f32 %v6145, %v6347
    %v6349 = vpop.f32.mrb[0].mxu0
    %v6350 = vadd.f32 %v6147, %v6349
    %6351 = vdwg.mxu0
    %v6352 = vld [vmem:[#allocation10 + $0xe] sm:$0x3]
    %v6354 = vlaneseq
    %v6355 = vshrl.u32 %v6354, 7
    %v6356 = vsub.s32 0, %v6355
    %v6357 = vrot.slane %v6352, %v6356
    %v6358 = vlaneseq
    %v6359 = vshrl.u32 %v6358, 7
    %v6360 = vsub.s32 1, %v6359
    %v6361 = vrot.slane %v6352, %v6360
    %v6364 = vadd.f32 %v6344, %v6357
    %v6365 = vadd.f32 %v6346, %v6361
    %v6366 = vadd.f32 %v6348, %v6357
    %v6367 = vadd.f32 %v6350, %v6361
    %v6368 = vmax.f32 %v6364, 0.0
    %v6369 = vmax.f32 %v6365, 0.0
    %v6370 = vmax.f32 %v6366, 0.0
    %v6371 = vmax.f32 %v6367, 0.0
    %6372 = vst [vmem:[%s8] sm:$0xff] %v6368
    %6373 = vst [vmem:[%s8 + $0x8] sm:$0xff] %v6369
    %6374 = vst [vmem:[%s8 + $0x10] sm:$0xff] %v6370
    %6375 = vst [vmem:[%s8 + $0x18] sm:$0xff] %v6371
    // Predicated region
    $region58: #{combined_encoder.1} parent=1 // pred_check
      _
    $region59: #{combined_encoder.1} parent=1 // pred_check_branch
      %6377 = sbr.rel (0) target = $region61
    $region60: #{combined_encoder.1} parent=1 // pred_region
      _
    $region61: #{combined_encoder.1} parent=1 // pred_fallthru
      _
    // Predicated region
    $region62: #{combined_encoder.1} parent=1 // pred_check
      _
    $region63: #{combined_encoder.1} parent=1 // pred_check_branch
      %6379 = sbr.rel (0) target = $region65
    $region64: #{combined_encoder.1} parent=1 // pred_region
      _
    $region65: #{combined_encoder.1} parent=1 // pred_fallthru
      _
    %6380 = vsyncpa [#allocation3], 1
    %6381 = vsyncpa [#allocation5], 1
    %6382 = vsyncpa [#allocation8], 1
    %6383 = vsyncpa [#allocation11], 1

</llo_original>
